<compile_context>
chip_gen: v6e
topology: v6e:2x2x1
jax: 0.10.0
libtpu: 0.0.40
codegen_flags: <defaults>
</compile_context>

<pallas_src>
import functools

import jax
import jax.numpy as jnp
from jax.experimental import pallas as pl
from jax.experimental.pallas import tpu as pltpu


# ----------------------------------------------------------------------------
# helpers
# ----------------------------------------------------------------------------
def _round_up(x, m):
    return (x + m - 1) // m * m


def _largest_divisor(d, prefs):
    for t in prefs:
        if d % t == 0:
            return t
    return d


# ----------------------------------------------------------------------------
# Pallas kernel: tiled matmul + bias + activation (the hot path of every layer)
# ----------------------------------------------------------------------------
def _mm_bias_act_kernel(a_ref, w_ref, b_ref, o_ref, acc_ref, *, act):
    @pl.when(pl.program_id(2) == 0)
    def _init():
        acc_ref[...] = jnp.zeros_like(acc_ref)

    acc_ref[...] += jnp.dot(a_ref[...], w_ref[...],
                            preferred_element_type=jnp.float32)

    @pl.when(pl.program_id(2) == pl.num_programs(2) - 1)
    def _finish():
        acc = acc_ref[...] + b_ref[...]              # (TM,TN) + (1,TN) f32
        if act == "relu":
            acc = jnp.maximum(acc, 0.0)
        elif act == "sigmoid":
            acc = 1.0 / (1.0 + jnp.exp(-acc))        # exact: stays in [0, 1]
        o_ref[...] = acc.astype(o_ref.dtype)


def pallas_matmul(a, w_p, b_p, *, n_out, act="none", out_dtype=jnp.float32):
    """act(a @ w_p + b_p)[:, :n_out].

    a   : (M, K) activations (any float dtype; cast to bf16 here).
    w_p : (Kp, Np) bf16, prepared/padded once at init time.
    b_p : (1, Np) f32, prepared once at init time.
    """
    M, K = a.shape
    Kp, Np = w_p.shape

    # --- tile selection (VMEM-bounded, generation independent) ---
    if M <= 256:
        Mp = _round_up(M, 16)      # sublane multiple (bf16-safe)
        TM = Mp
    else:
        Mp = _round_up(M, 256)
        TM = 256
    TK = Kp if Kp < 128 else _largest_divisor(Kp, (512, 256, 128))
    TN = Np if Np < 128 else _largest_divisor(Np, (256, 128))

    a_bf = a.astype(jnp.bfloat16)
    if (Mp, Kp) != (M, K):
        a_bf = jnp.pad(a_bf, ((0, Mp - M), (0, Kp - K)))

    grid = (Mp // TM, Np // TN, Kp // TK)
    out = pl.pallas_call(
        functools.partial(_mm_bias_act_kernel, act=act),
        out_shape=jax.ShapeDtypeStruct((Mp, Np), out_dtype),
        grid_spec=pltpu.PrefetchScalarGridSpec(
            num_scalar_prefetch=0,
            grid=grid,
            in_specs=[
                pl.BlockSpec((TM, TK), lambda i, j, k: (i, k)),
                pl.BlockSpec((TK, TN), lambda i, j, k: (k, j)),
                pl.BlockSpec((1, TN), lambda i, j, k: (0, j)),
            ],
            out_specs=pl.BlockSpec((TM, TN), lambda i, j, k: (i, j)),
            scratch_shapes=[pltpu.VMEM((TM, TN), jnp.float32)],
        ),
        compiler_params=pltpu.CompilerParams(
            dimension_semantics=("parallel", "parallel", "arbitrary")),
    )(a_bf, w_p, b_p)
    return out[:M, :n_out]


# ----------------------------------------------------------------------------
# XLA glue: patch extraction (im2col) and layer wrappers
# ----------------------------------------------------------------------------
def _im2col(x, k, stride, pad):
    """x: (B, H, W, C) -> (B*oh*ow, k*k*C), patch element order (ki, kj, c)."""
    x = jnp.pad(x, ((0, 0), (pad, pad), (pad, pad), (0, 0)))
    B, H, W, C = x.shape
    oh = (H - k) // stride + 1
    ow = (W - k) // stride + 1
    cols = []
    for i in range(k):
        for j in range(k):
            cols.append(x[:, i:i + stride * oh:stride, j:j + stride * ow:stride, :])
    cols = jnp.concatenate(cols, axis=-1)               # (B, oh, ow, k*k*C)
    return cols.reshape(B * oh * ow, k * k * C), (B, oh, ow)


def conv2d(x_nhwc, layer, *, k, stride, pad, act, out_dtype):
    """Standard conv via im2col + one fused Pallas matmul."""
    cols, (B, oh, ow) = _im2col(x_nhwc, k, stride, pad)
    out = pallas_matmul(cols, layer["w"], layer["b"], n_out=layer["N"],
                        act=act, out_dtype=out_dtype)
    return out.reshape(B, oh, ow, layer["N"])


def conv_transpose2d(x_nhwc, layer, *, act, out_dtype):
    """ConvTranspose2d(k=4, s=2, p=1) via output-phase split (no zero-dilation).

    out[:, 2m+dy, 2n+dx, :] = sum_{a,b} xpad[m+dy+a, n+dx+b] * W[3-(2a+dy), 3-(2b+dx)]
    -> one matmul of the 2x2/stride-1 im2col of pad-1(x) against the
       phase-stacked weight (4*Cin, 4*Cout), then interleave the 4 phases.
    """
    B, H, W, _ = x_nhwc.shape
    Cout = layer["Cout"]
    cols, _ = _im2col(x_nhwc, k=2, stride=1, pad=1)      # (B*(H+1)*(W+1), 4*Cin)
    out = pallas_matmul(cols, layer["w"], layer["b"], n_out=4 * Cout,
                        act=act, out_dtype=out_dtype)
    out = out.reshape(B, H + 1, W + 1, 2, 2, Cout)       # [.., dy, dx, co]
    p00 = out[:, 0:H,     0:W,     0, 0, :]
    p01 = out[:, 0:H,     1:W + 1, 0, 1, :]
    p10 = out[:, 1:H + 1, 0:W,     1, 0, :]
    p11 = out[:, 1:H + 1, 1:W + 1, 1, 1, :]
    row0 = jnp.stack([p00, p01], axis=3)                 # (B, H, W, 2, C)
    row1 = jnp.stack([p10, p11], axis=3)
    y = jnp.stack([row0, row1], axis=2)                  # (B, H, 2, W, 2, C)
    return y.reshape(B, 2 * H, 2 * W, Cout)


# ----------------------------------------------------------------------------
# Parameters: torch-layout init + one-time prepare (layout / pad / bf16 cast)
# ----------------------------------------------------------------------------
def init_params(key, s_dim, colour_channels, resolution):
    r8 = resolution // 8
    flat = 128 * r8 * r8
    ks = jax.random.split(key, 16)

    def w(k, shape, fan_in):
        return jax.random.normal(k, shape, jnp.float32) * (1.0 / jnp.sqrt(fan_in))

    p = {}
    # encoder (torch Conv2d layout: (Cout, Cin, kH, kW); Linear: (out, in))
    p["e1_w"] = w(ks[0], (32, colour_channels, 4, 4), colour_channels * 16)
    p["e1_b"] = w(ks[1], (32,), 32)
    p["e2_w"] = w(ks[2], (64, 32, 4, 4), 32 * 16)
    p["e2_b"] = w(ks[3], (64,), 64)
    p["e3_w"] = w(ks[4], (128, 64, 4, 4), 64 * 16)
    p["e3_b"] = w(ks[5], (128,), 128)
    p["e4_w"] = w(ks[6], (s_dim, flat), flat)
    p["e4_b"] = w(ks[7], (s_dim,), s_dim)
    # decoder (torch ConvTranspose2d layout: (Cin, Cout, kH, kW))
    p["d1_w"] = w(ks[8], (flat, s_dim), s_dim)
    p["d1_b"] = w(ks[9], (flat,), flat)
    p["d2_w"] = w(ks[10], (128, 64, 4, 4), 128 * 16)
    p["d2_b"] = w(ks[11], (64,), 64)
    p["d3_w"] = w(ks[12], (64, 32, 4, 4), 64 * 16)
    p["d3_b"] = w(ks[13], (32,), 32)
    p["d4_w"] = w(ks[14], (32, colour_channels, 4, 4), 32 * 16)
    p["d4_b"] = w(ks[15], (colour_channels,), colour_channels)
    return p


def _prep_layer(w_mat, bias):
    """Pad (only when >=128 and ragged), cast weight to bf16, bias to (1,Np) f32."""
    K, N = w_mat.shape
    Kp = K if K < 128 else _round_up(K, 128)
    Np = N if N < 128 else _round_up(N, 128)
    w_p = jnp.pad(w_mat, ((0, Kp - K), (0, Np - N))).astype(jnp.bfloat16)
    b_p = jnp.pad(bias, (0, Np - N)).astype(jnp.float32).reshape(1, Np)
    return {"w": w_p, "b": b_p, "K": K, "N": N}


def _convT_phase_weight(w):
    """torch ConvTranspose weight (Cin, Cout, 4, 4) -> (4*Cin, 4*Cout) phase matrix.

    Row order matches the 2x2 im2col (tap (a,b), channel fastest); column block
    p = 2*dy + dx holds the weights for output phase (dy, dx):
      W_stack[(2a+b)*Cin + ci, p*Cout + co] = w[ci, co, 3-(2a+dy), 3-(2b+dx)]
    """
    rows = []
    for a in range(2):
        for b in range(2):
            cols = []
            for dy in range(2):
                for dx in range(2):
                    cols.append(w[:, :, 3 - (2 * a + dy), 3 - (2 * b + dx)])
            rows.append(jnp.concatenate(cols, axis=1))   # (Cin, 4*Cout)
    return jnp.concatenate(rows, axis=0)                 # (4*Cin, 4*Cout)


def prepare_params(raw):
    p = {}
    for name in ("e1", "e2", "e3"):
        w = raw[name + "_w"]                              # (Cout, Cin, 4, 4)
        O, C, kh, kw = w.shape
        w_mat = jnp.transpose(w, (2, 3, 1, 0)).reshape(kh * kw * C, O)
        p[name] = _prep_layer(w_mat, raw[name + "_b"])
    p["e4"] = _prep_layer(raw["e4_w"].T, raw["e4_b"])     # Linear (in, out)
    p["d1"] = _prep_layer(raw["d1_w"].T, raw["d1_b"])
    for name in ("d2", "d3", "d4"):
        w = raw[name + "_w"]                              # (Cin, Cout, 4, 4)
        cout = w.shape[1]
        layer = _prep_layer(_convT_phase_weight(w), jnp.tile(raw[name + "_b"], 4))
        layer["Cout"] = cout
        p[name] = layer
    return p


# ----------------------------------------------------------------------------
# Model forward
# ----------------------------------------------------------------------------
def encoder(x_nchw, p):
    x = jnp.transpose(x_nchw, (0, 2, 3, 1)).astype(jnp.bfloat16)   # NCHW -> NHWC
    h = conv2d(x, p["e1"], k=4, stride=2, pad=1, act="relu", out_dtype=jnp.bfloat16)
    h = conv2d(h, p["e2"], k=4, stride=2, pad=1, act="relu", out_dtype=jnp.bfloat16)
    h = conv2d(h, p["e3"], k=4, stride=2, pad=1, act="relu", out_dtype=jnp.bfloat16)
    # nn.Flatten on NCHW -> flatten in (C, H, W) order
    hf = jnp.transpose(h, (0, 3, 1, 2)).reshape(h.shape[0], -1)
    s = pallas_matmul(hf, p["e4"]["w"], p["e4"]["b"], n_out=p["e4"]["N"],
                      act="none", out_dtype=jnp.float32)
    return s


def decoder(s, p, resolution):
    r8 = resolution // 8
    d = pallas_matmul(s, p["d1"]["w"], p["d1"]["b"], n_out=p["d1"]["N"],
                      act="relu", out_dtype=jnp.bfloat16)
    d = d.reshape(-1, 128, r8, r8)                                  # Unflatten (NCHW)
    d = jnp.transpose(d, (0, 2, 3, 1))                              # -> NHWC
    d = conv_transpose2d(d, p["d2"], act="relu", out_dtype=jnp.bfloat16)
    d = conv_transpose2d(d, p["d3"], act="relu", out_dtype=jnp.bfloat16)
    d = conv_transpose2d(d, p["d4"], act="sigmoid", out_dtype=jnp.float32)
    return jnp.transpose(d, (0, 3, 1, 2))                           # NHWC -> NCHW


def forward(x_nchw, p, colour_channels, resolution):
    s = encoder(x_nchw, p)
    x_recon = decoder(s, p, resolution)
    return x_recon, s


def counterfactual(x_nchw, intervention, p, colour_channels, resolution):
    s = encoder(x_nchw, p) + intervention
    return decoder(s, p, resolution), s


# ----------------------------------------------------------------------------
if __name__ == "__main__":
    s_dim = 32
    colour_channels = 4
    resolution = 16
    batch = 2
    # gamma / beta_s / beta_o are hyperparameters unused in forward().

    key = jax.random.PRNGKey(0)
    k_param, k_x, k_iv = jax.random.split(key, 3)
    raw_params = init_params(k_param, s_dim, colour_channels, resolution)
    params = prepare_params(raw_params)          # one-time layout / bf16 / pad
    x = jax.random.uniform(k_x, (batch, colour_channels, resolution, resolution),
                           jnp.float32)

    fwd = jax.jit(lambda xx: forward(xx, params, colour_channels, resolution))
    x_recon, s = fwd(x)
    jax.block_until_ready((x_recon, s))

    assert x_recon.shape == (batch, colour_channels, resolution, resolution)
    assert s.shape == (batch, s_dim)
    assert bool(jnp.all(x_recon >= 0.0)) and bool(jnp.all(x_recon <= 1.0))

    # also exercise the counterfactual path
    iv = jax.random.normal(k_iv, (batch, s_dim), jnp.float32) * 0.1
    cf = jax.jit(lambda xx, vv: counterfactual(xx, vv, params,
                                               colour_channels, resolution))
    xr_cf, s_cf = cf(x, iv)
    jax.block_until_ready((xr_cf, s_cf))
    assert xr_cf.shape == x_recon.shape and s_cf.shape == s.shape

    print("KERNEL_OK")
</pallas_src>

<mosaic_0001>
module attributes {stable_mosaic.version = 11 : i64} {
  func.func @_mm_bias_act_kernel(%arg0: i32, %arg1: i32, %arg2: i32, %arg3: memref<128x64xbf16, #tpu.memory_space<vmem>>, %arg4: memref<64x32xbf16, #tpu.memory_space<vmem>>, %arg5: memref<1x32xf32, #tpu.memory_space<vmem>>, %arg6: memref<128x32xbf16, #tpu.memory_space<vmem>>, %arg7: memref<128x32xf32, #tpu.memory_space<vmem>>) attributes {dimension_semantics = [#tpu.dimension_semantics<parallel>, #tpu.dimension_semantics<parallel>, #tpu.dimension_semantics<arbitrary>], iteration_bounds = array<i64: 1, 1, 1>, scalar_prefetch = 0 : i64, scratch_operands = 1 : i64, tpu.core_type = #tpu.core_type<tc>, window_params = [{transform_indices = @transform_0, window_bounds = array<i64: 128, 64>}, {transform_indices = @transform_1, window_bounds = array<i64: 64, 32>}, {transform_indices = @transform_2, window_bounds = array<i64: 1, 32>}, {transform_indices = @transform_3, window_bounds = array<i64: 128, 32>}]} {
    %c0_i32 = arith.constant 0 : i32
    %0 = arith.cmpi eq, %arg2, %c0_i32 : i32
    %1 = arith.extui %0 : i1 to i32
    %c0_i32_0 = arith.constant 0 : i32
    %2 = arith.cmpi ne, %1, %c0_i32_0 : i32
    scf.if %2 {
      %cst_10 = arith.constant 0.000000e+00 : f32
      %12 = vector.broadcast %cst_10 : f32 to vector<128x32xf32>
      %c0_11 = arith.constant 0 : index
      %c0_12 = arith.constant 0 : index
      %13 = vector.load %arg7[%c0_11, %c0_12] : memref<128x32xf32, #tpu.memory_space<vmem>>, vector<128x32xf32>
      tpu.vector_store %arg7[%c0_11, %c0_12], %12 {strides = array<i32>} : memref<128x32xf32, #tpu.memory_space<vmem>>, vector<128x32xf32>,
    } else {
    }
    %c0 = arith.constant 0 : index
    %c0_1 = arith.constant 0 : index
    %3 = vector.load %arg7[%c0, %c0_1] : memref<128x32xf32, #tpu.memory_space<vmem>>, vector<128x32xf32>
    %c0_2 = arith.constant 0 : index
    %c0_3 = arith.constant 0 : index
    %4 = vector.load %arg3[%c0_2, %c0_3] : memref<128x64xbf16, #tpu.memory_space<vmem>>, vector<128x64xbf16>
    %c0_4 = arith.constant 0 : index
    %c0_5 = arith.constant 0 : index
    %5 = vector.load %arg4[%c0_4, %c0_5] : memref<64x32xbf16, #tpu.memory_space<vmem>>, vector<64x32xbf16>
    %cst = arith.constant dense<0.000000e+00> : vector<128x32xf32>
    %6 = tpu.matmul %4, %5, %cst {dimension_numbers = #tpu.dot_dimension_numbers<[1], [0], [0], [1], [0, 0, 1, 1], [], []>} : vector<128x64xbf16>, vector<64x32xbf16>, vector<128x32xf32> -> vector<128x32xf32>
    %7 = arith.addf %3, %6 : vector<128x32xf32>
    %c0_6 = arith.constant 0 : index
    %c0_7 = arith.constant 0 : index
    %8 = vector.load %arg7[%c0_6, %c0_7] : memref<128x32xf32, #tpu.memory_space<vmem>>, vector<128x32xf32>
    tpu.vector_store %arg7[%c0_6, %c0_7], %7 {strides = array<i32>} : memref<128x32xf32, #tpu.memory_space<vmem>>, vector<128x32xf32>,
    %c0_i32_8 = arith.constant 0 : i32
    %9 = arith.cmpi eq, %arg2, %c0_i32_8 : i32
    %10 = arith.extui %9 : i1 to i32
    %c0_i32_9 = arith.constant 0 : i32
    %11 = arith.cmpi ne, %10, %c0_i32_9 : i32
    scf.if %11 {
      %c0_10 = arith.constant 0 : index
      %c0_11 = arith.constant 0 : index
      %12 = vector.load %arg7[%c0_10, %c0_11] : memref<128x32xf32, #tpu.memory_space<vmem>>, vector<128x32xf32>
      %c0_12 = arith.constant 0 : index
      %c0_13 = arith.constant 0 : index
      %13 = vector.load %arg5[%c0_12, %c0_13] : memref<1x32xf32, #tpu.memory_space<vmem>>, vector<1x32xf32>
      %14 = vector.broadcast %13 : vector<1x32xf32> to vector<128x32xf32>
      %15 = arith.addf %12, %14 : vector<128x32xf32>
      %cst_14 = arith.constant 0.000000e+00 : f32
      %16 = vector.broadcast %cst_14 : f32 to vector<128x32xf32>
      %17 = arith.maximumf %15, %16 : vector<128x32xf32>
      %18 = arith.truncf %17 : vector<128x32xf32> to vector<128x32xbf16>
      %c0_15 = arith.constant 0 : index
      %c0_16 = arith.constant 0 : index
      %19 = vector.load %arg6[%c0_15, %c0_16] : memref<128x32xbf16, #tpu.memory_space<vmem>>, vector<128x32xbf16>
      tpu.vector_store %arg6[%c0_15, %c0_16], %18 {strides = array<i32>} : memref<128x32xbf16, #tpu.memory_space<vmem>>, vector<128x32xbf16>,
    } else {
    }
    return
  }
  func.func @transform_0(%arg0: i32, %arg1: i32, %arg2: i32) -> (i32, i32) {
    %c0_i32 = arith.constant 0 : i32
    return %arg0, %arg2 : i32, i32
  }
  func.func @transform_1(%arg0: i32, %arg1: i32, %arg2: i32) -> (i32, i32) {
    %c0_i32 = arith.constant 0 : i32
    return %arg2, %arg1 : i32, i32
  }
  func.func @transform_2(%arg0: i32, %arg1: i32, %arg2: i32) -> (i32, i32) {
    %c0_i32 = arith.constant 0 : i32
    %c0_i32_0 = arith.constant 0 : i32
    return %c0_i32, %arg1 : i32, i32
  }
  func.func @transform_3(%arg0: i32, %arg1: i32, %arg2: i32) -> (i32, i32) {
    %c0_i32 = arith.constant 0 : i32
    return %arg0, %arg1 : i32, i32
  }
}

module attributes {stable_mosaic.version = 11 : i64} {
  func.func @_mm_bias_act_kernel(%arg0: i32, %arg1: i32, %arg2: i32, %arg3: memref<32x512xbf16, #tpu.memory_space<vmem>>, %arg4: memref<512x64xbf16, #tpu.memory_space<vmem>>, %arg5: memref<1x64xf32, #tpu.memory_space<vmem>>, %arg6: memref<32x64xbf16, #tpu.memory_space<vmem>>, %arg7: memref<32x64xf32, #tpu.memory_space<vmem>>) attributes {dimension_semantics = [#tpu.dimension_semantics<parallel>, #tpu.dimension_semantics<parallel>, #tpu.dimension_semantics<arbitrary>], iteration_bounds = array<i64: 1, 1, 1>, scalar_prefetch = 0 : i64, scratch_operands = 1 : i64, tpu.core_type = #tpu.core_type<tc>, window_params = [{transform_indices = @transform_0, window_bounds = array<i64: 32, 512>}, {transform_indices = @transform_1, window_bounds = array<i64: 512, 64>}, {transform_indices = @transform_2, window_bounds = array<i64: 1, 64>}, {transform_indices = @transform_3, window_bounds = array<i64: 32, 64>}]} {
    %c0_i32 = arith.constant 0 : i32
    %0 = arith.cmpi eq, %arg2, %c0_i32 : i32
    %1 = arith.extui %0 : i1 to i32
    %c0_i32_0 = arith.constant 0 : i32
    %2 = arith.cmpi ne, %1, %c0_i32_0 : i32
    scf.if %2 {
      %cst_10 = arith.constant 0.000000e+00 : f32
      %12 = vector.broadcast %cst_10 : f32 to vector<32x64xf32>
      %c0_11 = arith.constant 0 : index
      %c0_12 = arith.constant 0 : index
      %13 = vector.load %arg7[%c0_11, %c0_12] : memref<32x64xf32, #tpu.memory_space<vmem>>, vector<32x64xf32>
      tpu.vector_store %arg7[%c0_11, %c0_12], %12 {strides = array<i32>} : memref<32x64xf32, #tpu.memory_space<vmem>>, vector<32x64xf32>,
    } else {
    }
    %c0 = arith.constant 0 : index
    %c0_1 = arith.constant 0 : index
    %3 = vector.load %arg7[%c0, %c0_1] : memref<32x64xf32, #tpu.memory_space<vmem>>, vector<32x64xf32>
    %c0_2 = arith.constant 0 : index
    %c0_3 = arith.constant 0 : index
    %4 = vector.load %arg3[%c0_2, %c0_3] : memref<32x512xbf16, #tpu.memory_space<vmem>>, vector<32x512xbf16>
    %c0_4 = arith.constant 0 : index
    %c0_5 = arith.constant 0 : index
    %5 = vector.load %arg4[%c0_4, %c0_5] : memref<512x64xbf16, #tpu.memory_space<vmem>>, vector<512x64xbf16>
    %cst = arith.constant dense<0.000000e+00> : vector<32x64xf32>
    %6 = tpu.matmul %4, %5, %cst {dimension_numbers = #tpu.dot_dimension_numbers<[1], [0], [0], [1], [0, 0, 1, 1], [], []>} : vector<32x512xbf16>, vector<512x64xbf16>, vector<32x64xf32> -> vector<32x64xf32>
    %7 = arith.addf %3, %6 : vector<32x64xf32>
    %c0_6 = arith.constant 0 : index
    %c0_7 = arith.constant 0 : index
    %8 = vector.load %arg7[%c0_6, %c0_7] : memref<32x64xf32, #tpu.memory_space<vmem>>, vector<32x64xf32>
    tpu.vector_store %arg7[%c0_6, %c0_7], %7 {strides = array<i32>} : memref<32x64xf32, #tpu.memory_space<vmem>>, vector<32x64xf32>,
    %c0_i32_8 = arith.constant 0 : i32
    %9 = arith.cmpi eq, %arg2, %c0_i32_8 : i32
    %10 = arith.extui %9 : i1 to i32
    %c0_i32_9 = arith.constant 0 : i32
    %11 = arith.cmpi ne, %10, %c0_i32_9 : i32
    scf.if %11 {
      %c0_10 = arith.constant 0 : index
      %c0_11 = arith.constant 0 : index
      %12 = vector.load %arg7[%c0_10, %c0_11] : memref<32x64xf32, #tpu.memory_space<vmem>>, vector<32x64xf32>
      %c0_12 = arith.constant 0 : index
      %c0_13 = arith.constant 0 : index
      %13 = vector.load %arg5[%c0_12, %c0_13] : memref<1x64xf32, #tpu.memory_space<vmem>>, vector<1x64xf32>
      %14 = vector.broadcast %13 : vector<1x64xf32> to vector<32x64xf32>
      %15 = arith.addf %12, %14 : vector<32x64xf32>
      %cst_14 = arith.constant 0.000000e+00 : f32
      %16 = vector.broadcast %cst_14 : f32 to vector<32x64xf32>
      %17 = arith.maximumf %15, %16 : vector<32x64xf32>
      %18 = arith.truncf %17 : vector<32x64xf32> to vector<32x64xbf16>
      %c0_15 = arith.constant 0 : index
      %c0_16 = arith.constant 0 : index
      %19 = vector.load %arg6[%c0_15, %c0_16] : memref<32x64xbf16, #tpu.memory_space<vmem>>, vector<32x64xbf16>
      tpu.vector_store %arg6[%c0_15, %c0_16], %18 {strides = array<i32>} : memref<32x64xbf16, #tpu.memory_space<vmem>>, vector<32x64xbf16>,
    } else {
    }
    return
  }
  func.func @transform_0(%arg0: i32, %arg1: i32, %arg2: i32) -> (i32, i32) {
    %c0_i32 = arith.constant 0 : i32
    return %arg0, %arg2 : i32, i32
  }
  func.func @transform_1(%arg0: i32, %arg1: i32, %arg2: i32) -> (i32, i32) {
    %c0_i32 = arith.constant 0 : i32
    return %arg2, %arg1 : i32, i32
  }
  func.func @transform_2(%arg0: i32, %arg1: i32, %arg2: i32) -> (i32, i32) {
    %c0_i32 = arith.constant 0 : i32
    %c0_i32_0 = arith.constant 0 : i32
    return %c0_i32, %arg1 : i32, i32
  }
  func.func @transform_3(%arg0: i32, %arg1: i32, %arg2: i32) -> (i32, i32) {
    %c0_i32 = arith.constant 0 : i32
    return %arg0, %arg1 : i32, i32
  }
}

module attributes {stable_mosaic.version = 11 : i64} {
  func.func @_mm_bias_act_kernel(%arg0: i32, %arg1: i32, %arg2: i32, %arg3: memref<16x512xbf16, #tpu.memory_space<vmem>>, %arg4: memref<512x128xbf16, #tpu.memory_space<vmem>>, %arg5: memref<1x128xf32, #tpu.memory_space<vmem>>, %arg6: memref<16x128xbf16, #tpu.memory_space<vmem>>, %arg7: memref<16x128xf32, #tpu.memory_space<vmem>>) attributes {dimension_semantics = [#tpu.dimension_semantics<parallel>, #tpu.dimension_semantics<parallel>, #tpu.dimension_semantics<arbitrary>], iteration_bounds = array<i64: 1, 1, 2>, scalar_prefetch = 0 : i64, scratch_operands = 1 : i64, tpu.core_type = #tpu.core_type<tc>, window_params = [{transform_indices = @transform_0, window_bounds = array<i64: 16, 512>}, {transform_indices = @transform_1, window_bounds = array<i64: 512, 128>}, {transform_indices = @transform_2, window_bounds = array<i64: 1, 128>}, {transform_indices = @transform_3, window_bounds = array<i64: 16, 128>}]} {
    %c0_i32 = arith.constant 0 : i32
    %0 = arith.cmpi eq, %arg2, %c0_i32 : i32
    %1 = arith.extui %0 : i1 to i32
    %c0_i32_0 = arith.constant 0 : i32
    %2 = arith.cmpi ne, %1, %c0_i32_0 : i32
    scf.if %2 {
      %cst_9 = arith.constant 0.000000e+00 : f32
      %12 = vector.broadcast %cst_9 : f32 to vector<16x128xf32>
      %c0_10 = arith.constant 0 : index
      %c0_11 = arith.constant 0 : index
      %13 = vector.load %arg7[%c0_10, %c0_11] : memref<16x128xf32, #tpu.memory_space<vmem>>, vector<16x128xf32>
      tpu.vector_store %arg7[%c0_10, %c0_11], %12 {strides = array<i32>} : memref<16x128xf32, #tpu.memory_space<vmem>>, vector<16x128xf32>,
    } else {
    }
    %c0 = arith.constant 0 : index
    %c0_1 = arith.constant 0 : index
    %3 = vector.load %arg7[%c0, %c0_1] : memref<16x128xf32, #tpu.memory_space<vmem>>, vector<16x128xf32>
    %c0_2 = arith.constant 0 : index
    %c0_3 = arith.constant 0 : index
    %4 = vector.load %arg3[%c0_2, %c0_3] : memref<16x512xbf16, #tpu.memory_space<vmem>>, vector<16x512xbf16>
    %c0_4 = arith.constant 0 : index
    %c0_5 = arith.constant 0 : index
    %5 = vector.load %arg4[%c0_4, %c0_5] : memref<512x128xbf16, #tpu.memory_space<vmem>>, vector<512x128xbf16>
    %cst = arith.constant dense<0.000000e+00> : vector<16x128xf32>
    %6 = tpu.matmul %4, %5, %cst {dimension_numbers = #tpu.dot_dimension_numbers<[1], [0], [0], [1], [0, 0, 1, 1], [], []>} : vector<16x512xbf16>, vector<512x128xbf16>, vector<16x128xf32> -> vector<16x128xf32>
    %7 = arith.addf %3, %6 : vector<16x128xf32>
    %c0_6 = arith.constant 0 : index
    %c0_7 = arith.constant 0 : index
    %8 = vector.load %arg7[%c0_6, %c0_7] : memref<16x128xf32, #tpu.memory_space<vmem>>, vector<16x128xf32>
    tpu.vector_store %arg7[%c0_6, %c0_7], %7 {strides = array<i32>} : memref<16x128xf32, #tpu.memory_space<vmem>>, vector<16x128xf32>,
    %c1_i32 = arith.constant 1 : i32
    %9 = arith.cmpi eq, %arg2, %c1_i32 : i32
    %10 = arith.extui %9 : i1 to i32
    %c0_i32_8 = arith.constant 0 : i32
    %11 = arith.cmpi ne, %10, %c0_i32_8 : i32
    scf.if %11 {
      %c0_9 = arith.constant 0 : index
      %c0_10 = arith.constant 0 : index
      %12 = vector.load %arg7[%c0_9, %c0_10] : memref<16x128xf32, #tpu.memory_space<vmem>>, vector<16x128xf32>
      %c0_11 = arith.constant 0 : index
      %c0_12 = arith.constant 0 : index
      %13 = vector.load %arg5[%c0_11, %c0_12] : memref<1x128xf32, #tpu.memory_space<vmem>>, vector<1x128xf32>
      %14 = vector.broadcast %13 : vector<1x128xf32> to vector<16x128xf32>
      %15 = arith.addf %12, %14 : vector<16x128xf32>
      %cst_13 = arith.constant 0.000000e+00 : f32
      %16 = vector.broadcast %cst_13 : f32 to vector<16x128xf32>
      %17 = arith.maximumf %15, %16 : vector<16x128xf32>
      %18 = arith.truncf %17 : vector<16x128xf32> to vector<16x128xbf16>
      %c0_14 = arith.constant 0 : index
      %c0_15 = arith.constant 0 : index
      %19 = vector.load %arg6[%c0_14, %c0_15] : memref<16x128xbf16, #tpu.memory_space<vmem>>, vector<16x128xbf16>
      tpu.vector_store %arg6[%c0_14, %c0_15], %18 {strides = array<i32>} : memref<16x128xbf16, #tpu.memory_space<vmem>>, vector<16x128xbf16>,
    } else {
    }
    return
  }
  func.func @transform_0(%arg0: i32, %arg1: i32, %arg2: i32) -> (i32, i32) {
    %c0_i32 = arith.constant 0 : i32
    return %arg0, %arg2 : i32, i32
  }
  func.func @transform_1(%arg0: i32, %arg1: i32, %arg2: i32) -> (i32, i32) {
    %c0_i32 = arith.constant 0 : i32
    return %arg2, %arg1 : i32, i32
  }
  func.func @transform_2(%arg0: i32, %arg1: i32, %arg2: i32) -> (i32, i32) {
    %c0_i32 = arith.constant 0 : i32
    %c0_i32_0 = arith.constant 0 : i32
    return %c0_i32, %arg1 : i32, i32
  }
  func.func @transform_3(%arg0: i32, %arg1: i32, %arg2: i32) -> (i32, i32) {
    %c0_i32 = arith.constant 0 : i32
    return %arg0, %arg1 : i32, i32
  }
}

module attributes {stable_mosaic.version = 11 : i64} {
  func.func @_mm_bias_act_kernel(%arg0: i32, %arg1: i32, %arg2: i32, %arg3: memref<16x512xbf16, #tpu.memory_space<vmem>>, %arg4: memref<512x32xbf16, #tpu.memory_space<vmem>>, %arg5: memref<1x32xf32, #tpu.memory_space<vmem>>, %arg6: memref<16x32xf32, #tpu.memory_space<vmem>>, %arg7: memref<16x32xf32, #tpu.memory_space<vmem>>) attributes {dimension_semantics = [#tpu.dimension_semantics<parallel>, #tpu.dimension_semantics<parallel>, #tpu.dimension_semantics<arbitrary>], iteration_bounds = array<i64: 1, 1, 1>, scalar_prefetch = 0 : i64, scratch_operands = 1 : i64, tpu.core_type = #tpu.core_type<tc>, window_params = [{transform_indices = @transform_0, window_bounds = array<i64: 16, 512>}, {transform_indices = @transform_1, window_bounds = array<i64: 512, 32>}, {transform_indices = @transform_2, window_bounds = array<i64: 1, 32>}, {transform_indices = @transform_3, window_bounds = array<i64: 16, 32>}]} {
    %c0_i32 = arith.constant 0 : i32
    %0 = arith.cmpi eq, %arg2, %c0_i32 : i32
    %1 = arith.extui %0 : i1 to i32
    %c0_i32_0 = arith.constant 0 : i32
    %2 = arith.cmpi ne, %1, %c0_i32_0 : i32
    scf.if %2 {
      %cst_10 = arith.constant 0.000000e+00 : f32
      %12 = vector.broadcast %cst_10 : f32 to vector<16x32xf32>
      %c0_11 = arith.constant 0 : index
      %c0_12 = arith.constant 0 : index
      %13 = vector.load %arg7[%c0_11, %c0_12] : memref<16x32xf32, #tpu.memory_space<vmem>>, vector<16x32xf32>
      tpu.vector_store %arg7[%c0_11, %c0_12], %12 {strides = array<i32>} : memref<16x32xf32, #tpu.memory_space<vmem>>, vector<16x32xf32>,
    } else {
    }
    %c0 = arith.constant 0 : index
    %c0_1 = arith.constant 0 : index
    %3 = vector.load %arg7[%c0, %c0_1] : memref<16x32xf32, #tpu.memory_space<vmem>>, vector<16x32xf32>
    %c0_2 = arith.constant 0 : index
    %c0_3 = arith.constant 0 : index
    %4 = vector.load %arg3[%c0_2, %c0_3] : memref<16x512xbf16, #tpu.memory_space<vmem>>, vector<16x512xbf16>
    %c0_4 = arith.constant 0 : index
    %c0_5 = arith.constant 0 : index
    %5 = vector.load %arg4[%c0_4, %c0_5] : memref<512x32xbf16, #tpu.memory_space<vmem>>, vector<512x32xbf16>
    %cst = arith.constant dense<0.000000e+00> : vector<16x32xf32>
    %6 = tpu.matmul %4, %5, %cst {dimension_numbers = #tpu.dot_dimension_numbers<[1], [0], [0], [1], [0, 0, 1, 1], [], []>} : vector<16x512xbf16>, vector<512x32xbf16>, vector<16x32xf32> -> vector<16x32xf32>
    %7 = arith.addf %3, %6 : vector<16x32xf32>
    %c0_6 = arith.constant 0 : index
    %c0_7 = arith.constant 0 : index
    %8 = vector.load %arg7[%c0_6, %c0_7] : memref<16x32xf32, #tpu.memory_space<vmem>>, vector<16x32xf32>
    tpu.vector_store %arg7[%c0_6, %c0_7], %7 {strides = array<i32>} : memref<16x32xf32, #tpu.memory_space<vmem>>, vector<16x32xf32>,
    %c0_i32_8 = arith.constant 0 : i32
    %9 = arith.cmpi eq, %arg2, %c0_i32_8 : i32
    %10 = arith.extui %9 : i1 to i32
    %c0_i32_9 = arith.constant 0 : i32
    %11 = arith.cmpi ne, %10, %c0_i32_9 : i32
    scf.if %11 {
      %c0_10 = arith.constant 0 : index
      %c0_11 = arith.constant 0 : index
      %12 = vector.load %arg7[%c0_10, %c0_11] : memref<16x32xf32, #tpu.memory_space<vmem>>, vector<16x32xf32>
      %c0_12 = arith.constant 0 : index
      %c0_13 = arith.constant 0 : index
      %13 = vector.load %arg5[%c0_12, %c0_13] : memref<1x32xf32, #tpu.memory_space<vmem>>, vector<1x32xf32>
      %14 = vector.broadcast %13 : vector<1x32xf32> to vector<16x32xf32>
      %15 = arith.addf %12, %14 : vector<16x32xf32>
      %c0_14 = arith.constant 0 : index
      %c0_15 = arith.constant 0 : index
      %16 = vector.load %arg6[%c0_14, %c0_15] : memref<16x32xf32, #tpu.memory_space<vmem>>, vector<16x32xf32>
      tpu.vector_store %arg6[%c0_14, %c0_15], %15 {strides = array<i32>} : memref<16x32xf32, #tpu.memory_space<vmem>>, vector<16x32xf32>,
    } else {
    }
    return
  }
  func.func @transform_0(%arg0: i32, %arg1: i32, %arg2: i32) -> (i32, i32) {
    %c0_i32 = arith.constant 0 : i32
    return %arg0, %arg2 : i32, i32
  }
  func.func @transform_1(%arg0: i32, %arg1: i32, %arg2: i32) -> (i32, i32) {
    %c0_i32 = arith.constant 0 : i32
    return %arg2, %arg1 : i32, i32
  }
  func.func @transform_2(%arg0: i32, %arg1: i32, %arg2: i32) -> (i32, i32) {
    %c0_i32 = arith.constant 0 : i32
    %c0_i32_0 = arith.constant 0 : i32
    return %c0_i32, %arg1 : i32, i32
  }
  func.func @transform_3(%arg0: i32, %arg1: i32, %arg2: i32) -> (i32, i32) {
    %c0_i32 = arith.constant 0 : i32
    return %arg0, %arg1 : i32, i32
  }
}

module attributes {stable_mosaic.version = 11 : i64} {
  func.func @_mm_bias_act_kernel(%arg0: i32, %arg1: i32, %arg2: i32, %arg3: memref<16x32xbf16, #tpu.memory_space<vmem>>, %arg4: memref<32x256xbf16, #tpu.memory_space<vmem>>, %arg5: memref<1x256xf32, #tpu.memory_space<vmem>>, %arg6: memref<16x256xbf16, #tpu.memory_space<vmem>>, %arg7: memref<16x256xf32, #tpu.memory_space<vmem>>) attributes {dimension_semantics = [#tpu.dimension_semantics<parallel>, #tpu.dimension_semantics<parallel>, #tpu.dimension_semantics<arbitrary>], iteration_bounds = array<i64: 1, 2, 1>, scalar_prefetch = 0 : i64, scratch_operands = 1 : i64, tpu.core_type = #tpu.core_type<tc>, window_params = [{transform_indices = @transform_0, window_bounds = array<i64: 16, 32>}, {transform_indices = @transform_1, window_bounds = array<i64: 32, 256>}, {transform_indices = @transform_2, window_bounds = array<i64: 1, 256>}, {transform_indices = @transform_3, window_bounds = array<i64: 16, 256>}]} {
    %c0_i32 = arith.constant 0 : i32
    %0 = arith.cmpi eq, %arg2, %c0_i32 : i32
    %1 = arith.extui %0 : i1 to i32
    %c0_i32_0 = arith.constant 0 : i32
    %2 = arith.cmpi ne, %1, %c0_i32_0 : i32
    scf.if %2 {
      %cst_10 = arith.constant 0.000000e+00 : f32
      %12 = vector.broadcast %cst_10 : f32 to vector<16x256xf32>
      %c0_11 = arith.constant 0 : index
      %c0_12 = arith.constant 0 : index
      %13 = vector.load %arg7[%c0_11, %c0_12] : memref<16x256xf32, #tpu.memory_space<vmem>>, vector<16x256xf32>
      tpu.vector_store %arg7[%c0_11, %c0_12], %12 {strides = array<i32>} : memref<16x256xf32, #tpu.memory_space<vmem>>, vector<16x256xf32>,
    } else {
    }
    %c0 = arith.constant 0 : index
    %c0_1 = arith.constant 0 : index
    %3 = vector.load %arg7[%c0, %c0_1] : memref<16x256xf32, #tpu.memory_space<vmem>>, vector<16x256xf32>
    %c0_2 = arith.constant 0 : index
    %c0_3 = arith.constant 0 : index
    %4 = vector.load %arg3[%c0_2, %c0_3] : memref<16x32xbf16, #tpu.memory_space<vmem>>, vector<16x32xbf16>
    %c0_4 = arith.constant 0 : index
    %c0_5 = arith.constant 0 : index
    %5 = vector.load %arg4[%c0_4, %c0_5] : memref<32x256xbf16, #tpu.memory_space<vmem>>, vector<32x256xbf16>
    %cst = arith.constant dense<0.000000e+00> : vector<16x256xf32>
    %6 = tpu.matmul %4, %5, %cst {dimension_numbers = #tpu.dot_dimension_numbers<[1], [0], [0], [1], [0, 0, 1, 1], [], []>} : vector<16x32xbf16>, vector<32x256xbf16>, vector<16x256xf32> -> vector<16x256xf32>
    %7 = arith.addf %3, %6 : vector<16x256xf32>
    %c0_6 = arith.constant 0 : index
    %c0_7 = arith.constant 0 : index
    %8 = vector.load %arg7[%c0_6, %c0_7] : memref<16x256xf32, #tpu.memory_space<vmem>>, vector<16x256xf32>
    tpu.vector_store %arg7[%c0_6, %c0_7], %7 {strides = array<i32>} : memref<16x256xf32, #tpu.memory_space<vmem>>, vector<16x256xf32>,
    %c0_i32_8 = arith.constant 0 : i32
    %9 = arith.cmpi eq, %arg2, %c0_i32_8 : i32
    %10 = arith.extui %9 : i1 to i32
    %c0_i32_9 = arith.constant 0 : i32
    %11 = arith.cmpi ne, %10, %c0_i32_9 : i32
    scf.if %11 {
      %c0_10 = arith.constant 0 : index
      %c0_11 = arith.constant 0 : index
      %12 = vector.load %arg7[%c0_10, %c0_11] : memref<16x256xf32, #tpu.memory_space<vmem>>, vector<16x256xf32>
      %c0_12 = arith.constant 0 : index
      %c0_13 = arith.constant 0 : index
      %13 = vector.load %arg5[%c0_12, %c0_13] : memref<1x256xf32, #tpu.memory_space<vmem>>, vector<1x256xf32>
      %14 = vector.broadcast %13 : vector<1x256xf32> to vector<16x256xf32>
      %15 = arith.addf %12, %14 : vector<16x256xf32>
      %cst_14 = arith.constant 0.000000e+00 : f32
      %16 = vector.broadcast %cst_14 : f32 to vector<16x256xf32>
      %17 = arith.maximumf %15, %16 : vector<16x256xf32>
      %18 = arith.truncf %17 : vector<16x256xf32> to vector<16x256xbf16>
      %c0_15 = arith.constant 0 : index
      %c0_16 = arith.constant 0 : index
      %19 = vector.load %arg6[%c0_15, %c0_16] : memref<16x256xbf16, #tpu.memory_space<vmem>>, vector<16x256xbf16>
      tpu.vector_store %arg6[%c0_15, %c0_16], %18 {strides = array<i32>} : memref<16x256xbf16, #tpu.memory_space<vmem>>, vector<16x256xbf16>,
    } else {
    }
    return
  }
  func.func @transform_0(%arg0: i32, %arg1: i32, %arg2: i32) -> (i32, i32) {
    %c0_i32 = arith.constant 0 : i32
    return %arg0, %arg2 : i32, i32
  }
  func.func @transform_1(%arg0: i32, %arg1: i32, %arg2: i32) -> (i32, i32) {
    %c0_i32 = arith.constant 0 : i32
    return %arg2, %arg1 : i32, i32
  }
  func.func @transform_2(%arg0: i32, %arg1: i32, %arg2: i32) -> (i32, i32) {
    %c0_i32 = arith.constant 0 : i32
    %c0_i32_0 = arith.constant 0 : i32
    return %c0_i32, %arg1 : i32, i32
  }
  func.func @transform_3(%arg0: i32, %arg1: i32, %arg2: i32) -> (i32, i32) {
    %c0_i32 = arith.constant 0 : i32
    return %arg0, %arg1 : i32, i32
  }
}

module attributes {stable_mosaic.version = 11 : i64} {
  func.func @_mm_bias_act_kernel(%arg0: i32, %arg1: i32, %arg2: i32, %arg3: memref<32x512xbf16, #tpu.memory_space<vmem>>, %arg4: memref<512x256xbf16, #tpu.memory_space<vmem>>, %arg5: memref<1x256xf32, #tpu.memory_space<vmem>>, %arg6: memref<32x256xbf16, #tpu.memory_space<vmem>>, %arg7: memref<32x256xf32, #tpu.memory_space<vmem>>) attributes {dimension_semantics = [#tpu.dimension_semantics<parallel>, #tpu.dimension_semantics<parallel>, #tpu.dimension_semantics<arbitrary>], iteration_bounds = array<i64: 1, 1, 1>, scalar_prefetch = 0 : i64, scratch_operands = 1 : i64, tpu.core_type = #tpu.core_type<tc>, window_params = [{transform_indices = @transform_0, window_bounds = array<i64: 32, 512>}, {transform_indices = @transform_1, window_bounds = array<i64: 512, 256>}, {transform_indices = @transform_2, window_bounds = array<i64: 1, 256>}, {transform_indices = @transform_3, window_bounds = array<i64: 32, 256>}]} {
    %c0_i32 = arith.constant 0 : i32
    %0 = arith.cmpi eq, %arg2, %c0_i32 : i32
    %1 = arith.extui %0 : i1 to i32
    %c0_i32_0 = arith.constant 0 : i32
    %2 = arith.cmpi ne, %1, %c0_i32_0 : i32
    scf.if %2 {
      %cst_10 = arith.constant 0.000000e+00 : f32
      %12 = vector.broadcast %cst_10 : f32 to vector<32x256xf32>
      %c0_11 = arith.constant 0 : index
      %c0_12 = arith.constant 0 : index
      %13 = vector.load %arg7[%c0_11, %c0_12] : memref<32x256xf32, #tpu.memory_space<vmem>>, vector<32x256xf32>
      tpu.vector_store %arg7[%c0_11, %c0_12], %12 {strides = array<i32>} : memref<32x256xf32, #tpu.memory_space<vmem>>, vector<32x256xf32>,
    } else {
    }
    %c0 = arith.constant 0 : index
    %c0_1 = arith.constant 0 : index
    %3 = vector.load %arg7[%c0, %c0_1] : memref<32x256xf32, #tpu.memory_space<vmem>>, vector<32x256xf32>
    %c0_2 = arith.constant 0 : index
    %c0_3 = arith.constant 0 : index
    %4 = vector.load %arg3[%c0_2, %c0_3] : memref<32x512xbf16, #tpu.memory_space<vmem>>, vector<32x512xbf16>
    %c0_4 = arith.constant 0 : index
    %c0_5 = arith.constant 0 : index
    %5 = vector.load %arg4[%c0_4, %c0_5] : memref<512x256xbf16, #tpu.memory_space<vmem>>, vector<512x256xbf16>
    %cst = arith.constant dense<0.000000e+00> : vector<32x256xf32>
    %6 = tpu.matmul %4, %5, %cst {dimension_numbers = #tpu.dot_dimension_numbers<[1], [0], [0], [1], [0, 0, 1, 1], [], []>} : vector<32x512xbf16>, vector<512x256xbf16>, vector<32x256xf32> -> vector<32x256xf32>
    %7 = arith.addf %3, %6 : vector<32x256xf32>
    %c0_6 = arith.constant 0 : index
    %c0_7 = arith.constant 0 : index
    %8 = vector.load %arg7[%c0_6, %c0_7] : memref<32x256xf32, #tpu.memory_space<vmem>>, vector<32x256xf32>
    tpu.vector_store %arg7[%c0_6, %c0_7], %7 {strides = array<i32>} : memref<32x256xf32, #tpu.memory_space<vmem>>, vector<32x256xf32>,
    %c0_i32_8 = arith.constant 0 : i32
    %9 = arith.cmpi eq, %arg2, %c0_i32_8 : i32
    %10 = arith.extui %9 : i1 to i32
    %c0_i32_9 = arith.constant 0 : i32
    %11 = arith.cmpi ne, %10, %c0_i32_9 : i32
    scf.if %11 {
      %c0_10 = arith.constant 0 : index
      %c0_11 = arith.constant 0 : index
      %12 = vector.load %arg7[%c0_10, %c0_11] : memref<32x256xf32, #tpu.memory_space<vmem>>, vector<32x256xf32>
      %c0_12 = arith.constant 0 : index
      %c0_13 = arith.constant 0 : index
      %13 = vector.load %arg5[%c0_12, %c0_13] : memref<1x256xf32, #tpu.memory_space<vmem>>, vector<1x256xf32>
      %14 = vector.broadcast %13 : vector<1x256xf32> to vector<32x256xf32>
      %15 = arith.addf %12, %14 : vector<32x256xf32>
      %cst_14 = arith.constant 0.000000e+00 : f32
      %16 = vector.broadcast %cst_14 : f32 to vector<32x256xf32>
      %17 = arith.maximumf %15, %16 : vector<32x256xf32>
      %18 = arith.truncf %17 : vector<32x256xf32> to vector<32x256xbf16>
      %c0_15 = arith.constant 0 : index
      %c0_16 = arith.constant 0 : index
      %19 = vector.load %arg6[%c0_15, %c0_16] : memref<32x256xbf16, #tpu.memory_space<vmem>>, vector<32x256xbf16>
      tpu.vector_store %arg6[%c0_15, %c0_16], %18 {strides = array<i32>} : memref<32x256xbf16, #tpu.memory_space<vmem>>, vector<32x256xbf16>,
    } else {
    }
    return
  }
  func.func @transform_0(%arg0: i32, %arg1: i32, %arg2: i32) -> (i32, i32) {
    %c0_i32 = arith.constant 0 : i32
    return %arg0, %arg2 : i32, i32
  }
  func.func @transform_1(%arg0: i32, %arg1: i32, %arg2: i32) -> (i32, i32) {
    %c0_i32 = arith.constant 0 : i32
    return %arg2, %arg1 : i32, i32
  }
  func.func @transform_2(%arg0: i32, %arg1: i32, %arg2: i32) -> (i32, i32) {
    %c0_i32 = arith.constant 0 : i32
    %c0_i32_0 = arith.constant 0 : i32
    return %c0_i32, %arg1 : i32, i32
  }
  func.func @transform_3(%arg0: i32, %arg1: i32, %arg2: i32) -> (i32, i32) {
    %c0_i32 = arith.constant 0 : i32
    return %arg0, %arg1 : i32, i32
  }
}

module attributes {stable_mosaic.version = 11 : i64} {
  func.func @_mm_bias_act_kernel(%arg0: i32, %arg1: i32, %arg2: i32, %arg3: memref<64x256xbf16, #tpu.memory_space<vmem>>, %arg4: memref<256x128xbf16, #tpu.memory_space<vmem>>, %arg5: memref<1x128xf32, #tpu.memory_space<vmem>>, %arg6: memref<64x128xbf16, #tpu.memory_space<vmem>>, %arg7: memref<64x128xf32, #tpu.memory_space<vmem>>) attributes {dimension_semantics = [#tpu.dimension_semantics<parallel>, #tpu.dimension_semantics<parallel>, #tpu.dimension_semantics<arbitrary>], iteration_bounds = array<i64: 1, 1, 1>, scalar_prefetch = 0 : i64, scratch_operands = 1 : i64, tpu.core_type = #tpu.core_type<tc>, window_params = [{transform_indices = @transform_0, window_bounds = array<i64: 64, 256>}, {transform_indices = @transform_1, window_bounds = array<i64: 256, 128>}, {transform_indices = @transform_2, window_bounds = array<i64: 1, 128>}, {transform_indices = @transform_3, window_bounds = array<i64: 64, 128>}]} {
    %c0_i32 = arith.constant 0 : i32
    %0 = arith.cmpi eq, %arg2, %c0_i32 : i32
    %1 = arith.extui %0 : i1 to i32
    %c0_i32_0 = arith.constant 0 : i32
    %2 = arith.cmpi ne, %1, %c0_i32_0 : i32
    scf.if %2 {
      %cst_10 = arith.constant 0.000000e+00 : f32
      %12 = vector.broadcast %cst_10 : f32 to vector<64x128xf32>
      %c0_11 = arith.constant 0 : index
      %c0_12 = arith.constant 0 : index
      %13 = vector.load %arg7[%c0_11, %c0_12] : memref<64x128xf32, #tpu.memory_space<vmem>>, vector<64x128xf32>
      tpu.vector_store %arg7[%c0_11, %c0_12], %12 {strides = array<i32>} : memref<64x128xf32, #tpu.memory_space<vmem>>, vector<64x128xf32>,
    } else {
    }
    %c0 = arith.constant 0 : index
    %c0_1 = arith.constant 0 : index
    %3 = vector.load %arg7[%c0, %c0_1] : memref<64x128xf32, #tpu.memory_space<vmem>>, vector<64x128xf32>
    %c0_2 = arith.constant 0 : index
    %c0_3 = arith.constant 0 : index
    %4 = vector.load %arg3[%c0_2, %c0_3] : memref<64x256xbf16, #tpu.memory_space<vmem>>, vector<64x256xbf16>
    %c0_4 = arith.constant 0 : index
    %c0_5 = arith.constant 0 : index
    %5 = vector.load %arg4[%c0_4, %c0_5] : memref<256x128xbf16, #tpu.memory_space<vmem>>, vector<256x128xbf16>
    %cst = arith.constant dense<0.000000e+00> : vector<64x128xf32>
    %6 = tpu.matmul %4, %5, %cst {dimension_numbers = #tpu.dot_dimension_numbers<[1], [0], [0], [1], [0, 0, 1, 1], [], []>} : vector<64x256xbf16>, vector<256x128xbf16>, vector<64x128xf32> -> vector<64x128xf32>
    %7 = arith.addf %3, %6 : vector<64x128xf32>
    %c0_6 = arith.constant 0 : index
    %c0_7 = arith.constant 0 : index
    %8 = vector.load %arg7[%c0_6, %c0_7] : memref<64x128xf32, #tpu.memory_space<vmem>>, vector<64x128xf32>
    tpu.vector_store %arg7[%c0_6, %c0_7], %7 {strides = array<i32>} : memref<64x128xf32, #tpu.memory_space<vmem>>, vector<64x128xf32>,
    %c0_i32_8 = arith.constant 0 : i32
    %9 = arith.cmpi eq, %arg2, %c0_i32_8 : i32
    %10 = arith.extui %9 : i1 to i32
    %c0_i32_9 = arith.constant 0 : i32
    %11 = arith.cmpi ne, %10, %c0_i32_9 : i32
    scf.if %11 {
      %c0_10 = arith.constant 0 : index
      %c0_11 = arith.constant 0 : index
      %12 = vector.load %arg7[%c0_10, %c0_11] : memref<64x128xf32, #tpu.memory_space<vmem>>, vector<64x128xf32>
      %c0_12 = arith.constant 0 : index
      %c0_13 = arith.constant 0 : index
      %13 = vector.load %arg5[%c0_12, %c0_13] : memref<1x128xf32, #tpu.memory_space<vmem>>, vector<1x128xf32>
      %14 = vector.broadcast %13 : vector<1x128xf32> to vector<64x128xf32>
      %15 = arith.addf %12, %14 : vector<64x128xf32>
      %cst_14 = arith.constant 0.000000e+00 : f32
      %16 = vector.broadcast %cst_14 : f32 to vector<64x128xf32>
      %17 = arith.maximumf %15, %16 : vector<64x128xf32>
      %18 = arith.truncf %17 : vector<64x128xf32> to vector<64x128xbf16>
      %c0_15 = arith.constant 0 : index
      %c0_16 = arith.constant 0 : index
      %19 = vector.load %arg6[%c0_15, %c0_16] : memref<64x128xbf16, #tpu.memory_space<vmem>>, vector<64x128xbf16>
      tpu.vector_store %arg6[%c0_15, %c0_16], %18 {strides = array<i32>} : memref<64x128xbf16, #tpu.memory_space<vmem>>, vector<64x128xbf16>,
    } else {
    }
    return
  }
  func.func @transform_0(%arg0: i32, %arg1: i32, %arg2: i32) -> (i32, i32) {
    %c0_i32 = arith.constant 0 : i32
    return %arg0, %arg2 : i32, i32
  }
  func.func @transform_1(%arg0: i32, %arg1: i32, %arg2: i32) -> (i32, i32) {
    %c0_i32 = arith.constant 0 : i32
    return %arg2, %arg1 : i32, i32
  }
  func.func @transform_2(%arg0: i32, %arg1: i32, %arg2: i32) -> (i32, i32) {
    %c0_i32 = arith.constant 0 : i32
    %c0_i32_0 = arith.constant 0 : i32
    return %c0_i32, %arg1 : i32, i32
  }
  func.func @transform_3(%arg0: i32, %arg1: i32, %arg2: i32) -> (i32, i32) {
    %c0_i32 = arith.constant 0 : i32
    return %arg0, %arg1 : i32, i32
  }
}

module attributes {stable_mosaic.version = 11 : i64} {
  func.func @_mm_bias_act_kernel(%arg0: i32, %arg1: i32, %arg2: i32, %arg3: memref<176x128xbf16, #tpu.memory_space<vmem>>, %arg4: memref<128x16xbf16, #tpu.memory_space<vmem>>, %arg5: memref<1x16xf32, #tpu.memory_space<vmem>>, %arg6: memref<176x16xf32, #tpu.memory_space<vmem>>, %arg7: memref<176x16xf32, #tpu.memory_space<vmem>>) attributes {dimension_semantics = [#tpu.dimension_semantics<parallel>, #tpu.dimension_semantics<parallel>, #tpu.dimension_semantics<arbitrary>], iteration_bounds = array<i64: 1, 1, 1>, scalar_prefetch = 0 : i64, scratch_operands = 1 : i64, tpu.core_type = #tpu.core_type<tc>, window_params = [{transform_indices = @transform_0, window_bounds = array<i64: 176, 128>}, {transform_indices = @transform_1, window_bounds = array<i64: 128, 16>}, {transform_indices = @transform_2, window_bounds = array<i64: 1, 16>}, {transform_indices = @transform_3, window_bounds = array<i64: 176, 16>}]} {
    %c0_i32 = arith.constant 0 : i32
    %0 = arith.cmpi eq, %arg2, %c0_i32 : i32
    %1 = arith.extui %0 : i1 to i32
    %c0_i32_0 = arith.constant 0 : i32
    %2 = arith.cmpi ne, %1, %c0_i32_0 : i32
    scf.if %2 {
      %cst_10 = arith.constant 0.000000e+00 : f32
      %12 = vector.broadcast %cst_10 : f32 to vector<176x16xf32>
      %c0_11 = arith.constant 0 : index
      %c0_12 = arith.constant 0 : index
      %13 = vector.load %arg7[%c0_11, %c0_12] : memref<176x16xf32, #tpu.memory_space<vmem>>, vector<176x16xf32>
      tpu.vector_store %arg7[%c0_11, %c0_12], %12 {strides = array<i32>} : memref<176x16xf32, #tpu.memory_space<vmem>>, vector<176x16xf32>,
    } else {
    }
    %c0 = arith.constant 0 : index
    %c0_1 = arith.constant 0 : index
    %3 = vector.load %arg7[%c0, %c0_1] : memref<176x16xf32, #tpu.memory_space<vmem>>, vector<176x16xf32>
    %c0_2 = arith.constant 0 : index
    %c0_3 = arith.constant 0 : index
    %4 = vector.load %arg3[%c0_2, %c0_3] : memref<176x128xbf16, #tpu.memory_space<vmem>>, vector<176x128xbf16>
    %c0_4 = arith.constant 0 : index
    %c0_5 = arith.constant 0 : index
    %5 = vector.load %arg4[%c0_4, %c0_5] : memref<128x16xbf16, #tpu.memory_space<vmem>>, vector<128x16xbf16>
    %cst = arith.constant dense<0.000000e+00> : vector<176x16xf32>
    %6 = tpu.matmul %4, %5, %cst {dimension_numbers = #tpu.dot_dimension_numbers<[1], [0], [0], [1], [0, 0, 1, 1], [], []>} : vector<176x128xbf16>, vector<128x16xbf16>, vector<176x16xf32> -> vector<176x16xf32>
    %7 = arith.addf %3, %6 : vector<176x16xf32>
    %c0_6 = arith.constant 0 : index
    %c0_7 = arith.constant 0 : index
    %8 = vector.load %arg7[%c0_6, %c0_7] : memref<176x16xf32, #tpu.memory_space<vmem>>, vector<176x16xf32>
    tpu.vector_store %arg7[%c0_6, %c0_7], %7 {strides = array<i32>} : memref<176x16xf32, #tpu.memory_space<vmem>>, vector<176x16xf32>,
    %c0_i32_8 = arith.constant 0 : i32
    %9 = arith.cmpi eq, %arg2, %c0_i32_8 : i32
    %10 = arith.extui %9 : i1 to i32
    %c0_i32_9 = arith.constant 0 : i32
    %11 = arith.cmpi ne, %10, %c0_i32_9 : i32
    scf.if %11 {
      %c0_10 = arith.constant 0 : index
      %c0_11 = arith.constant 0 : index
      %12 = vector.load %arg7[%c0_10, %c0_11] : memref<176x16xf32, #tpu.memory_space<vmem>>, vector<176x16xf32>
      %c0_12 = arith.constant 0 : index
      %c0_13 = arith.constant 0 : index
      %13 = vector.load %arg5[%c0_12, %c0_13] : memref<1x16xf32, #tpu.memory_space<vmem>>, vector<1x16xf32>
      %14 = vector.broadcast %13 : vector<1x16xf32> to vector<176x16xf32>
      %15 = arith.addf %12, %14 : vector<176x16xf32>
      %cst_14 = arith.constant 0.000000e+00 : f32
      %16 = vector.broadcast %cst_14 : f32 to vector<176x16xf32>
      %17 = arith.subf %16, %15 : vector<176x16xf32>
      %18 = math.exp %17 : vector<176x16xf32>
      %cst_15 = arith.constant 1.000000e+00 : f32
      %19 = vector.broadcast %cst_15 : f32 to vector<176x16xf32>
      %20 = arith.addf %19, %18 : vector<176x16xf32>
      %cst_16 = arith.constant 1.000000e+00 : f32
      %21 = vector.broadcast %cst_16 : f32 to vector<176x16xf32>
      %22 = arith.divf %21, %20 : vector<176x16xf32>
      %c0_17 = arith.constant 0 : index
      %c0_18 = arith.constant 0 : index
      %23 = vector.load %arg6[%c0_17, %c0_18] : memref<176x16xf32, #tpu.memory_space<vmem>>, vector<176x16xf32>
      tpu.vector_store %arg6[%c0_17, %c0_18], %22 {strides = array<i32>} : memref<176x16xf32, #tpu.memory_space<vmem>>, vector<176x16xf32>,
    } else {
    }
    return
  }
  func.func @transform_0(%arg0: i32, %arg1: i32, %arg2: i32) -> (i32, i32) {
    %c0_i32 = arith.constant 0 : i32
    return %arg0, %arg2 : i32, i32
  }
  func.func @transform_1(%arg0: i32, %arg1: i32, %arg2: i32) -> (i32, i32) {
    %c0_i32 = arith.constant 0 : i32
    return %arg2, %arg1 : i32, i32
  }
  func.func @transform_2(%arg0: i32, %arg1: i32, %arg2: i32) -> (i32, i32) {
    %c0_i32 = arith.constant 0 : i32
    %c0_i32_0 = arith.constant 0 : i32
    return %c0_i32, %arg1 : i32, i32
  }
  func.func @transform_3(%arg0: i32, %arg1: i32, %arg2: i32) -> (i32, i32) {
    %c0_i32 = arith.constant 0 : i32
    return %arg0, %arg1 : i32, i32
  }
}

</mosaic_0001>

<llo_original>
// kernel: _lambda_.8
$region0: #{_lambda_.8}
  #allocation0 [shape = 'u32[]', space=smem, size = 0x4, offset = 0x4, fixed_abs, tag = 'smem constant byte address 0x4 - core index']
  #allocation1 [shape = 'u32[144,128]{1,0:T(1,128)}', space=vmem, size = 0x12000, scoped, tag = 'internal scratch']
  #allocation2 [shape = 'f32[128,32]{1,0:T(8,128)}', space=vmem, size = 0x10000, scoped, tag = 'scratch operand']
  %s0 = inlined_call_operand.vmem [shape: bf16[128,64], index: 0, kind: input, shape index: {}]
  %s1 = inlined_call_operand.vmem [shape: bf16[64,32], index: 1, kind: input, shape index: {}]
  %s2 = inlined_call_operand.vmem [shape: f32[1,32], index: 2, kind: input, shape index: {}]
  %s3 = inlined_call_operand.vmem [shape: bf16[128,32], index: 3, kind: output, shape index: {}]
  %s4 = sld [smem:[#allocation0]]
  $region30: #{_lambda_.8} parent=0
    _
  %s6 = ssub.s32 1, %s4
  %s7 = scalar_select 0, %s6, %s4
  // Predicated region
  $region2: #{_lambda_.8} parent=0 // pred_check
    _
  $region3: #{_lambda_.8} parent=0 // pred_check_branch
    %9 = sbr.rel (0) target = $region5
  $region4: #{_lambda_.8} parent=0 // pred_region
    _
  $region5: #{_lambda_.8} parent=0 // pred_fallthru
    _
  // Predicated region
  $region6: #{_lambda_.8} parent=0 // pred_check
    _
  $region7: #{_lambda_.8} parent=0 // pred_check_branch
    %11 = sbr.rel (0) target = $region9
  $region8: #{_lambda_.8} parent=0 // pred_region
    _
  $region9: #{_lambda_.8} parent=0 // pred_fallthru
    _
  // Predicated region
  $region10: #{_lambda_.8} parent=0 // pred_check
    _
  $region11: #{_lambda_.8} parent=0 // pred_check_branch
    %13 = sbr.rel (0) target = $region13
  $region12: #{_lambda_.8} parent=0 // pred_region
    _
  $region13: #{_lambda_.8} parent=0 // pred_fallthru
    _
  %p15 = scmp.eq.s32.totalorder 0, 0
  // Predicated region
  $region14: #{_lambda_.8} parent=0 // pred_check
    %p16 = pneg %p15
  $region15: #{_lambda_.8} parent=0 // pred_check_branch
    %18 = sbr.rel (%p16) target = $region17
  $region16: #{_lambda_.8} parent=0 // pred_region
    %vm19 = vcmask 261120
    %20 = vst.msk [vmem:[#allocation2] sm:$0xff] %vm19, 0.0
    %21 = vst.msk [vmem:[#allocation2 + $0x8] sm:$0xff] %vm19, 0.0
    %22 = vst.msk [vmem:[#allocation2 + $0x10] sm:$0xff] %vm19, 0.0
    %23 = vst.msk [vmem:[#allocation2 + $0x18] sm:$0xff] %vm19, 0.0
    %24 = vst.msk [vmem:[#allocation2 + $0x20] sm:$0xff] %vm19, 0.0
    %25 = vst.msk [vmem:[#allocation2 + $0x28] sm:$0xff] %vm19, 0.0
    %26 = vst.msk [vmem:[#allocation2 + $0x30] sm:$0xff] %vm19, 0.0
    %27 = vst.msk [vmem:[#allocation2 + $0x38] sm:$0xff] %vm19, 0.0
    %28 = vst.msk [vmem:[#allocation2 + $0x40] sm:$0xff] %vm19, 0.0
    %29 = vst.msk [vmem:[#allocation2 + $0x48] sm:$0xff] %vm19, 0.0
    %30 = vst.msk [vmem:[#allocation2 + $0x50] sm:$0xff] %vm19, 0.0
    %31 = vst.msk [vmem:[#allocation2 + $0x58] sm:$0xff] %vm19, 0.0
    %32 = vst.msk [vmem:[#allocation2 + $0x60] sm:$0xff] %vm19, 0.0
    %33 = vst.msk [vmem:[#allocation2 + $0x68] sm:$0xff] %vm19, 0.0
    %34 = vst.msk [vmem:[#allocation2 + $0x70] sm:$0xff] %vm19, 0.0
    %35 = vst.msk [vmem:[#allocation2 + $0x78] sm:$0xff] %vm19, 0.0
  $region17: #{_lambda_.8} parent=0 // pred_fallthru
    _
  %v36 = vld [vmem:[#allocation2] sm:$0xff]
  %v37 = vld [vmem:[#allocation2 + $0x8] sm:$0xff]
  %v38 = vld [vmem:[#allocation2 + $0x10] sm:$0xff]
  %v39 = vld [vmem:[#allocation2 + $0x18] sm:$0xff]
  %v40 = vld [vmem:[#allocation2 + $0x20] sm:$0xff]
  %v41 = vld [vmem:[#allocation2 + $0x28] sm:$0xff]
  %v42 = vld [vmem:[#allocation2 + $0x30] sm:$0xff]
  %v43 = vld [vmem:[#allocation2 + $0x38] sm:$0xff]
  %v44 = vld [vmem:[#allocation2 + $0x40] sm:$0xff]
  %v45 = vld [vmem:[#allocation2 + $0x48] sm:$0xff]
  %v46 = vld [vmem:[#allocation2 + $0x50] sm:$0xff]
  %v47 = vld [vmem:[#allocation2 + $0x58] sm:$0xff]
  %v48 = vld [vmem:[#allocation2 + $0x60] sm:$0xff]
  %v49 = vld [vmem:[#allocation2 + $0x68] sm:$0xff]
  %v50 = vld [vmem:[#allocation2 + $0x70] sm:$0xff]
  %v51 = vld [vmem:[#allocation2 + $0x78] sm:$0xff]
  %v52 = vld [vmem:[%s0] sm:$0xf]
  %v53 = vld [vmem:[%s0 + $0x4] sm:$0xf]
  %v54 = vld [vmem:[%s0 + $0x8] sm:$0xf]
  %v55 = vld [vmem:[%s0 + $0xc] sm:$0xf]
  %v56 = vld [vmem:[%s0 + $0x10] sm:$0xf]
  %v57 = vld [vmem:[%s0 + $0x14] sm:$0xf]
  %v58 = vld [vmem:[%s0 + $0x18] sm:$0xf]
  %v59 = vld [vmem:[%s0 + $0x1c] sm:$0xf]
  %v60 = vld [vmem:[%s0 + $0x20] sm:$0xf]
  %v61 = vld [vmem:[%s0 + $0x24] sm:$0xf]
  %v62 = vld [vmem:[%s0 + $0x28] sm:$0xf]
  %v63 = vld [vmem:[%s0 + $0x2c] sm:$0xf]
  %v64 = vld [vmem:[%s0 + $0x30] sm:$0xf]
  %v65 = vld [vmem:[%s0 + $0x34] sm:$0xf]
  %v66 = vld [vmem:[%s0 + $0x38] sm:$0xf]
  %v67 = vld [vmem:[%s0 + $0x3c] sm:$0xf]
  %v68 = vld [vmem:[%s1] sm:$0xf]
  %v69 = vld [vmem:[%s1 + $0x4] sm:$0xf]
  %v70 = vld [vmem:[%s1 + $0x8] sm:$0xf]
  %v71 = vld [vmem:[%s1 + $0xc] sm:$0xf]
  %v72 = vld [vmem:[%s1 + $0x10] sm:$0xf]
  %v73 = vld [vmem:[%s1 + $0x14] sm:$0xf]
  %v74 = vld [vmem:[%s1 + $0x18] sm:$0xf]
  %v75 = vld [vmem:[%s1 + $0x1c] sm:$0xf]
  %v92 = vunpack.c.l.b16 %v52
  %v93 = vunpack.c.l.b16 %v53
  %v94 = vunpack.c.l.b16 %v54
  %v95 = vunpack.c.l.b16 %v55
  %v96 = vunpack.c.l.b16 %v56
  %v97 = vunpack.c.l.b16 %v57
  %v98 = vunpack.c.l.b16 %v58
  %v99 = vunpack.c.l.b16 %v59
  %v100 = vunpack.c.l.b16 %v60
  %v101 = vunpack.c.l.b16 %v61
  %v102 = vunpack.c.l.b16 %v62
  %v103 = vunpack.c.l.b16 %v63
  %v104 = vunpack.c.l.b16 %v64
  %v105 = vunpack.c.l.b16 %v65
  %v106 = vunpack.c.l.b16 %v66
  %v107 = vunpack.c.l.b16 %v67
  %v108 = vpack.c.b16 %v93, %v92
  %v109 = vpack.c.b16 %v95, %v94
  %v110 = vpack.c.b16 %v97, %v96
  %v111 = vpack.c.b16 %v99, %v98
  %v112 = vpack.c.b16 %v101, %v100
  %v113 = vpack.c.b16 %v103, %v102
  %v114 = vpack.c.b16 %v105, %v104
  %v115 = vpack.c.b16 %v107, %v106
  %v124 = vunpack.c.l.b16 %v68
  %v125 = vunpack.c.l.b16 %v69
  %v126 = vunpack.c.l.b16 %v70
  %v127 = vunpack.c.l.b16 %v71
  %v128 = vunpack.c.l.b16 %v72
  %v129 = vunpack.c.l.b16 %v73
  %v130 = vunpack.c.l.b16 %v74
  %v131 = vunpack.c.l.b16 %v75
  %v132 = vpack.c.b16 %v125, %v124
  %v133 = vpack.c.b16 %v127, %v126
  %v134 = vpack.c.b16 %v129, %v128
  %v135 = vpack.c.b16 %v131, %v130
  %vm140 = vcmask 523264
  %v142 = vsel %vm140, %v108, 0
  %v145 = vsel %vm140, %v109, 0
  %v148 = vsel %vm140, %v110, 0
  %v151 = vsel %vm140, %v111, 0
  %v154 = vsel %vm140, %v112, 0
  %v157 = vsel %vm140, %v113, 0
  %v160 = vsel %vm140, %v114, 0
  %v163 = vsel %vm140, %v115, 0
  %165 = vmatprep.subr.bf16.mxu0 0
  %166 = vmatpush1.bf16.msra.mxu0 0
  %167 = vmatprep.subr.bf16.mxu0 0
  %168 = vmatpush1.bf16.msra.mxu0 0
  %169 = vmatprep.subr.bf16.mxu0 0
  %170 = vmatpush1.bf16.msra.mxu0 0
  %171 = vmatprep.subr.bf16.mxu0 0
  %172 = vmatpush1.bf16.msra.mxu0 0
  %173 = vmatprep.subr.bf16.mxu0 0
  %174 = vmatpush1.bf16.msra.mxu0 %v135
  %175 = vmatprep.subr.bf16.mxu0 0
  %176 = vmatpush1.bf16.msra.mxu0 %v134
  %177 = vmatprep.subr.bf16.mxu0 0
  %178 = vmatpush1.bf16.msra.mxu0 %v133
  %179 = vmatprep.subr.bf16.mxu0 0
  %180 = vmatpush1.bf16.msra.mxu0 %v132
  %181 = vmatprep.subr.bf16.mxu0 0
  %182 = vmatpush2.bf16.msra.mxu0 0
  %183 = vmatprep.subr.bf16.mxu0 0
  %184 = vmatpush2.bf16.msra.mxu0 0
  %185 = vmatprep.subr.bf16.mxu0 0
  %186 = vmatpush2.bf16.msra.mxu0 0
  %187 = vmatprep.subr.bf16.mxu0 0
  %188 = vmatpush2.bf16.msra.mxu0 0
  %189 = vmatprep.subr.bf16.mxu0 0
  %190 = vmatpush2.bf16.msra.mxu0 0
  %191 = vmatprep.subr.bf16.mxu0 0
  %192 = vmatpush2.bf16.msra.mxu0 0
  %193 = vmatprep.subr.bf16.mxu0 0
  %194 = vmatpush2.bf16.msra.mxu0 0
  %195 = vmatprep.subr.bf16.mxu0 0
  %196 = vmatpush2.bf16.msra.mxu0 0
  %197 = vmatprep.mubr.bf16.mxu0 0
  %198 = vmatmul.mubr.bf16.gmra.mxu0 %v142
  %v199 = vpop.f32.mrf.mxu0
  %v200 = vadd.f32 0.0, %v199
  %v201 = vpop.f32.mrf.mxu0
  %v202 = vpop.f32.mrf.mxu0
  %v203 = vadd.f32 0.0, %v202
  %v204 = vpop.f32.mrf.mxu0
  %205 = vmatprep.mubr.bf16.mxu0 0
  %206 = vmatmul.mubr.bf16.gmra.mxu0 %v145
  %v207 = vpop.f32.mrf.mxu0
  %v208 = vadd.f32 0.0, %v207
  %v209 = vpop.f32.mrf.mxu0
  %v210 = vpop.f32.mrf.mxu0
  %v211 = vadd.f32 0.0, %v210
  %v212 = vpop.f32.mrf.mxu0
  %213 = vmatprep.mubr.bf16.mxu0 0
  %214 = vmatmul.mubr.bf16.gmra.mxu0 %v148
  %v215 = vpop.f32.mrf.mxu0
  %v216 = vadd.f32 0.0, %v215
  %v217 = vpop.f32.mrf.mxu0
  %v218 = vpop.f32.mrf.mxu0
  %v219 = vadd.f32 0.0, %v218
  %v220 = vpop.f32.mrf.mxu0
  %221 = vmatprep.mubr.bf16.mxu0 0
  %222 = vmatmul.mubr.bf16.gmra.mxu0 %v151
  %v223 = vpop.f32.mrf.mxu0
  %v224 = vadd.f32 0.0, %v223
  %v225 = vpop.f32.mrf.mxu0
  %v226 = vpop.f32.mrf.mxu0
  %v227 = vadd.f32 0.0, %v226
  %v228 = vpop.f32.mrf.mxu0
  %229 = vmatprep.mubr.bf16.mxu0 0
  %230 = vmatmul.mubr.bf16.gmra.mxu0 %v154
  %v231 = vpop.f32.mrf.mxu0
  %v232 = vadd.f32 0.0, %v231
  %v233 = vpop.f32.mrf.mxu0
  %v234 = vpop.f32.mrf.mxu0
  %v235 = vadd.f32 0.0, %v234
  %v236 = vpop.f32.mrf.mxu0
  %237 = vmatprep.mubr.bf16.mxu0 0
  %238 = vmatmul.mubr.bf16.gmra.mxu0 %v157
  %v239 = vpop.f32.mrf.mxu0
  %v240 = vadd.f32 0.0, %v239
  %v241 = vpop.f32.mrf.mxu0
  %v242 = vpop.f32.mrf.mxu0
  %v243 = vadd.f32 0.0, %v242
  %v244 = vpop.f32.mrf.mxu0
  %245 = vmatprep.mubr.bf16.mxu0 0
  %246 = vmatmul.mubr.bf16.gmra.mxu0 %v160
  %v247 = vpop.f32.mrf.mxu0
  %v248 = vadd.f32 0.0, %v247
  %v249 = vpop.f32.mrf.mxu0
  %v250 = vpop.f32.mrf.mxu0
  %v251 = vadd.f32 0.0, %v250
  %v252 = vpop.f32.mrf.mxu0
  %253 = vmatprep.mubr.bf16.mxu0 0
  %254 = vmatmul.mubr.bf16.gmra.mxu0 %v163
  %v255 = vpop.f32.mrf.mxu0
  %v256 = vadd.f32 0.0, %v255
  %v257 = vpop.f32.mrf.mxu0
  %v258 = vpop.f32.mrf.mxu0
  %v259 = vadd.f32 0.0, %v258
  %v260 = vpop.f32.mrf.mxu0
  %261 = vdwg.mxu0
  %v262 = vadd.f32 %v36, %v200
  %v263 = vadd.f32 %v37, %v203
  %v264 = vadd.f32 %v38, %v208
  %v265 = vadd.f32 %v39, %v211
  %v266 = vadd.f32 %v40, %v216
  %v267 = vadd.f32 %v41, %v219
  %v268 = vadd.f32 %v42, %v224
  %v269 = vadd.f32 %v43, %v227
  %v270 = vadd.f32 %v44, %v232
  %v271 = vadd.f32 %v45, %v235
  %v272 = vadd.f32 %v46, %v240
  %v273 = vadd.f32 %v47, %v243
  %v274 = vadd.f32 %v48, %v248
  %v275 = vadd.f32 %v49, %v251
  %v276 = vadd.f32 %v50, %v256
  %v277 = vadd.f32 %v51, %v259
  %vm278 = vcmask 261120
  %279 = vst.msk [vmem:[#allocation2] sm:$0xff] %vm278, %v262
  %280 = vst.msk [vmem:[#allocation2 + $0x8] sm:$0xff] %vm278, %v263
  %281 = vst.msk [vmem:[#allocation2 + $0x10] sm:$0xff] %vm278, %v264
  %282 = vst.msk [vmem:[#allocation2 + $0x18] sm:$0xff] %vm278, %v265
  %283 = vst.msk [vmem:[#allocation2 + $0x20] sm:$0xff] %vm278, %v266
  %284 = vst.msk [vmem:[#allocation2 + $0x28] sm:$0xff] %vm278, %v267
  %285 = vst.msk [vmem:[#allocation2 + $0x30] sm:$0xff] %vm278, %v268
  %286 = vst.msk [vmem:[#allocation2 + $0x38] sm:$0xff] %vm278, %v269
  %287 = vst.msk [vmem:[#allocation2 + $0x40] sm:$0xff] %vm278, %v270
  %288 = vst.msk [vmem:[#allocation2 + $0x48] sm:$0xff] %vm278, %v271
  %289 = vst.msk [vmem:[#allocation2 + $0x50] sm:$0xff] %vm278, %v272
  %290 = vst.msk [vmem:[#allocation2 + $0x58] sm:$0xff] %vm278, %v273
  %291 = vst.msk [vmem:[#allocation2 + $0x60] sm:$0xff] %vm278, %v274
  %292 = vst.msk [vmem:[#allocation2 + $0x68] sm:$0xff] %vm278, %v275
  %293 = vst.msk [vmem:[#allocation2 + $0x70] sm:$0xff] %vm278, %v276
  %294 = vst.msk [vmem:[#allocation2 + $0x78] sm:$0xff] %vm278, %v277
  // Predicated region
  $region18: #{_lambda_.8} parent=0 // pred_check
    %p295 = pneg %p15
  $region19: #{_lambda_.8} parent=0 // pred_check_branch
    %297 = sbr.rel (%p295) target = $region21
  $region20: #{_lambda_.8} parent=0 // pred_region
    %v298 = vld [vmem:[#allocation2] sm:$0xff]
    %v299 = vld [vmem:[#allocation2 + $0x8] sm:$0xff]
    %v300 = vld [vmem:[#allocation2 + $0x10] sm:$0xff]
    %v301 = vld [vmem:[#allocation2 + $0x18] sm:$0xff]
    %v302 = vld [vmem:[#allocation2 + $0x20] sm:$0xff]
    %v303 = vld [vmem:[#allocation2 + $0x28] sm:$0xff]
    %v304 = vld [vmem:[#allocation2 + $0x30] sm:$0xff]
    %v305 = vld [vmem:[#allocation2 + $0x38] sm:$0xff]
    %v306 = vld [vmem:[#allocation2 + $0x40] sm:$0xff]
    %v307 = vld [vmem:[#allocation2 + $0x48] sm:$0xff]
    %v308 = vld [vmem:[#allocation2 + $0x50] sm:$0xff]
    %v309 = vld [vmem:[#allocation2 + $0x58] sm:$0xff]
    %v310 = vld [vmem:[#allocation2 + $0x60] sm:$0xff]
    %v311 = vld [vmem:[#allocation2 + $0x68] sm:$0xff]
    %v312 = vld [vmem:[#allocation2 + $0x70] sm:$0xff]
    %v313 = vld [vmem:[#allocation2 + $0x78] sm:$0xff]
    %v314 = vld [vmem:[%s2] sm:$0x1]
    %v316 = vlaneseq
    %v317 = vshrl.u32 %v316, 7
    %v318 = vsub.s32 0, %v317
    %v319 = vrot.slane %v314, %v318
    %v321 = vadd.f32 %v298, %v319
    %v322 = vadd.f32 %v299, %v319
    %v323 = vadd.f32 %v300, %v319
    %v324 = vadd.f32 %v301, %v319
    %v325 = vadd.f32 %v302, %v319
    %v326 = vadd.f32 %v303, %v319
    %v327 = vadd.f32 %v304, %v319
    %v328 = vadd.f32 %v305, %v319
    %v329 = vadd.f32 %v306, %v319
    %v330 = vadd.f32 %v307, %v319
    %v331 = vadd.f32 %v308, %v319
    %v332 = vadd.f32 %v309, %v319
    %v333 = vadd.f32 %v310, %v319
    %v334 = vadd.f32 %v311, %v319
    %v335 = vadd.f32 %v312, %v319
    %v336 = vadd.f32 %v313, %v319
    %v337 = vmax.f32 %v321, 0.0
    %v338 = vmax.f32 %v322, 0.0
    %v339 = vmax.f32 %v323, 0.0
    %v340 = vmax.f32 %v324, 0.0
    %v341 = vmax.f32 %v325, 0.0
    %v342 = vmax.f32 %v326, 0.0
    %v343 = vmax.f32 %v327, 0.0
    %v344 = vmax.f32 %v328, 0.0
    %v345 = vmax.f32 %v329, 0.0
    %v346 = vmax.f32 %v330, 0.0
    %v347 = vmax.f32 %v331, 0.0
    %v348 = vmax.f32 %v332, 0.0
    %v349 = vmax.f32 %v333, 0.0
    %v350 = vmax.f32 %v334, 0.0
    %v351 = vmax.f32 %v335, 0.0
    %v352 = vmax.f32 %v336, 0.0
    %v353 = vpack.c.bf16 %v338, %v337
    %v354 = vpack.c.bf16 %v340, %v339
    %v355 = vpack.c.bf16 %v342, %v341
    %v356 = vpack.c.bf16 %v344, %v343
    %v357 = vpack.c.bf16 %v346, %v345
    %v358 = vpack.c.bf16 %v348, %v347
    %v359 = vpack.c.bf16 %v350, %v349
    %v360 = vpack.c.bf16 %v352, %v351
    %v369 = vunpack.c.l.b16 %v353
    %v370 = vunpack.c.h.b16 %v353
    %v371 = vunpack.c.l.b16 %v354
    %v372 = vunpack.c.h.b16 %v354
    %v373 = vunpack.c.l.b16 %v355
    %v374 = vunpack.c.h.b16 %v355
    %v375 = vunpack.c.l.b16 %v356
    %v376 = vunpack.c.h.b16 %v356
    %v377 = vunpack.c.l.b16 %v357
    %v378 = vunpack.c.h.b16 %v357
    %v379 = vunpack.c.l.b16 %v358
    %v380 = vunpack.c.h.b16 %v358
    %v381 = vunpack.c.l.b16 %v359
    %v382 = vunpack.c.h.b16 %v359
    %v383 = vunpack.c.l.b16 %v360
    %v384 = vunpack.c.h.b16 %v360
    %v385 = vpack.c.b16 %v369, %v369
    %v386 = vpack.c.b16 %v370, %v370
    %v387 = vpack.c.b16 %v371, %v371
    %v388 = vpack.c.b16 %v372, %v372
    %v389 = vpack.c.b16 %v373, %v373
    %v390 = vpack.c.b16 %v374, %v374
    %v391 = vpack.c.b16 %v375, %v375
    %v392 = vpack.c.b16 %v376, %v376
    %v393 = vpack.c.b16 %v377, %v377
    %v394 = vpack.c.b16 %v378, %v378
    %v395 = vpack.c.b16 %v379, %v379
    %v396 = vpack.c.b16 %v380, %v380
    %v397 = vpack.c.b16 %v381, %v381
    %v398 = vpack.c.b16 %v382, %v382
    %v399 = vpack.c.b16 %v383, %v383
    %v400 = vpack.c.b16 %v384, %v384
    %vm417 = vcmask 257024
    %418 = vst.msk [vmem:[%s3] sm:$0xf] %vm417, %v385
    %419 = vst.msk [vmem:[%s3 + $0x4] sm:$0xf] %vm417, %v386
    %420 = vst.msk [vmem:[%s3 + $0x8] sm:$0xf] %vm417, %v387
    %421 = vst.msk [vmem:[%s3 + $0xc] sm:$0xf] %vm417, %v388
    %422 = vst.msk [vmem:[%s3 + $0x10] sm:$0xf] %vm417, %v389
    %423 = vst.msk [vmem:[%s3 + $0x14] sm:$0xf] %vm417, %v390
    %424 = vst.msk [vmem:[%s3 + $0x18] sm:$0xf] %vm417, %v391
    %425 = vst.msk [vmem:[%s3 + $0x1c] sm:$0xf] %vm417, %v392
    %426 = vst.msk [vmem:[%s3 + $0x20] sm:$0xf] %vm417, %v393
    %427 = vst.msk [vmem:[%s3 + $0x24] sm:$0xf] %vm417, %v394
    %428 = vst.msk [vmem:[%s3 + $0x28] sm:$0xf] %vm417, %v395
    %429 = vst.msk [vmem:[%s3 + $0x2c] sm:$0xf] %vm417, %v396
    %430 = vst.msk [vmem:[%s3 + $0x30] sm:$0xf] %vm417, %v397
    %431 = vst.msk [vmem:[%s3 + $0x34] sm:$0xf] %vm417, %v398
    %432 = vst.msk [vmem:[%s3 + $0x38] sm:$0xf] %vm417, %v399
    %433 = vst.msk [vmem:[%s3 + $0x3c] sm:$0xf] %vm417, %v400
  $region21: #{_lambda_.8} parent=0 // pred_fallthru
    _
  // Predicated region
  $region22: #{_lambda_.8} parent=0 // pred_check
    _
  $region23: #{_lambda_.8} parent=0 // pred_check_branch
    %435 = sbr.rel (0) target = $region25
  $region24: #{_lambda_.8} parent=0 // pred_region
    _
  $region25: #{_lambda_.8} parent=0 // pred_fallthru
    _
  // Predicated region
  $region26: #{_lambda_.8} parent=0 // pred_check
    _
  $region27: #{_lambda_.8} parent=0 // pred_check_branch
    %437 = sbr.rel (0) target = $region29
  $region28: #{_lambda_.8} parent=0 // pred_region
    _
  $region29: #{_lambda_.8} parent=0 // pred_fallthru
    _

// kernel: _lambda_.9
$region0: #{_lambda_.9}
  #allocation0 [shape = 'u32[]', space=smem, size = 0x4, offset = 0x4, fixed_abs, tag = 'smem constant byte address 0x4 - core index']
  #allocation1 [shape = 'u32[144,128]{1,0:T(1,128)}', space=vmem, size = 0x12000, scoped, tag = 'internal scratch']
  #allocation2 [shape = 'f32[32,64]{1,0:T(8,128)}', space=vmem, size = 0x4000, scoped, tag = 'scratch operand']
  %s0 = inlined_call_operand.vmem [shape: bf16[32,512], index: 0, kind: input, shape index: {}]
  %s1 = inlined_call_operand.vmem [shape: bf16[512,64], index: 1, kind: input, shape index: {}]
  %s2 = inlined_call_operand.vmem [shape: f32[1,64], index: 2, kind: input, shape index: {}]
  %s3 = inlined_call_operand.vmem [shape: bf16[32,64], index: 3, kind: output, shape index: {}]
  %s4 = sld [smem:[#allocation0]]
  $region30: #{_lambda_.9} parent=0
    _
  %s6 = ssub.s32 1, %s4
  %s7 = scalar_select 0, %s6, %s4
  // Predicated region
  $region2: #{_lambda_.9} parent=0 // pred_check
    _
  $region3: #{_lambda_.9} parent=0 // pred_check_branch
    %9 = sbr.rel (0) target = $region5
  $region4: #{_lambda_.9} parent=0 // pred_region
    _
  $region5: #{_lambda_.9} parent=0 // pred_fallthru
    _
  // Predicated region
  $region6: #{_lambda_.9} parent=0 // pred_check
    _
  $region7: #{_lambda_.9} parent=0 // pred_check_branch
    %11 = sbr.rel (0) target = $region9
  $region8: #{_lambda_.9} parent=0 // pred_region
    _
  $region9: #{_lambda_.9} parent=0 // pred_fallthru
    _
  // Predicated region
  $region10: #{_lambda_.9} parent=0 // pred_check
    _
  $region11: #{_lambda_.9} parent=0 // pred_check_branch
    %13 = sbr.rel (0) target = $region13
  $region12: #{_lambda_.9} parent=0 // pred_region
    _
  $region13: #{_lambda_.9} parent=0 // pred_fallthru
    _
  %p15 = scmp.eq.s32.totalorder 0, 0
  // Predicated region
  $region14: #{_lambda_.9} parent=0 // pred_check
    %p16 = pneg %p15
  $region15: #{_lambda_.9} parent=0 // pred_check_branch
    %18 = sbr.rel (%p16) target = $region17
  $region16: #{_lambda_.9} parent=0 // pred_region
    %vm19 = vcmask 523264
    %20 = vst.msk [vmem:[#allocation2] sm:$0xff] %vm19, 0.0
    %21 = vst.msk [vmem:[#allocation2 + $0x8] sm:$0xff] %vm19, 0.0
    %22 = vst.msk [vmem:[#allocation2 + $0x10] sm:$0xff] %vm19, 0.0
    %23 = vst.msk [vmem:[#allocation2 + $0x18] sm:$0xff] %vm19, 0.0
  $region17: #{_lambda_.9} parent=0 // pred_fallthru
    _
  %v24 = vld [vmem:[#allocation2] sm:$0xff]
  %v25 = vld [vmem:[#allocation2 + $0x8] sm:$0xff]
  %v26 = vld [vmem:[#allocation2 + $0x10] sm:$0xff]
  %v27 = vld [vmem:[#allocation2 + $0x18] sm:$0xff]
  %v28 = vld [vmem:[%s0] sm:$0xff]
  %v29 = vld [vmem:[%s0 + $0x8] sm:$0xff]
  %v30 = vld [vmem:[%s0 + $0x10] sm:$0xff]
  %v31 = vld [vmem:[%s0 + $0x18] sm:$0xff]
  %v32 = vld [vmem:[%s0 + $0x20] sm:$0xff]
  %v33 = vld [vmem:[%s0 + $0x28] sm:$0xff]
  %v34 = vld [vmem:[%s0 + $0x30] sm:$0xff]
  %v35 = vld [vmem:[%s0 + $0x38] sm:$0xff]
  %v36 = vld [vmem:[%s1] sm:$0xf]
  %v37 = vld [vmem:[%s1 + $0x4] sm:$0xf]
  %v38 = vld [vmem:[%s1 + $0x8] sm:$0xf]
  %v39 = vld [vmem:[%s1 + $0xc] sm:$0xf]
  %v40 = vld [vmem:[%s1 + $0x10] sm:$0xf]
  %v41 = vld [vmem:[%s1 + $0x14] sm:$0xf]
  %v42 = vld [vmem:[%s1 + $0x18] sm:$0xf]
  %v43 = vld [vmem:[%s1 + $0x1c] sm:$0xf]
  %v44 = vld [vmem:[%s1 + $0x20] sm:$0xf]
  %v45 = vld [vmem:[%s1 + $0x24] sm:$0xf]
  %v46 = vld [vmem:[%s1 + $0x28] sm:$0xf]
  %v47 = vld [vmem:[%s1 + $0x2c] sm:$0xf]
  %v48 = vld [vmem:[%s1 + $0x30] sm:$0xf]
  %v49 = vld [vmem:[%s1 + $0x34] sm:$0xf]
  %v50 = vld [vmem:[%s1 + $0x38] sm:$0xf]
  %v51 = vld [vmem:[%s1 + $0x3c] sm:$0xf]
  %v52 = vld [vmem:[%s1 + $0x40] sm:$0xf]
  %v53 = vld [vmem:[%s1 + $0x44] sm:$0xf]
  %v54 = vld [vmem:[%s1 + $0x48] sm:$0xf]
  %v55 = vld [vmem:[%s1 + $0x4c] sm:$0xf]
  %v56 = vld [vmem:[%s1 + $0x50] sm:$0xf]
  %v57 = vld [vmem:[%s1 + $0x54] sm:$0xf]
  %v58 = vld [vmem:[%s1 + $0x58] sm:$0xf]
  %v59 = vld [vmem:[%s1 + $0x5c] sm:$0xf]
  %v60 = vld [vmem:[%s1 + $0x60] sm:$0xf]
  %v61 = vld [vmem:[%s1 + $0x64] sm:$0xf]
  %v62 = vld [vmem:[%s1 + $0x68] sm:$0xf]
  %v63 = vld [vmem:[%s1 + $0x6c] sm:$0xf]
  %v64 = vld [vmem:[%s1 + $0x70] sm:$0xf]
  %v65 = vld [vmem:[%s1 + $0x74] sm:$0xf]
  %v66 = vld [vmem:[%s1 + $0x78] sm:$0xf]
  %v67 = vld [vmem:[%s1 + $0x7c] sm:$0xf]
  %v68 = vld [vmem:[%s1 + $0x80] sm:$0xf]
  %v69 = vld [vmem:[%s1 + $0x84] sm:$0xf]
  %v70 = vld [vmem:[%s1 + $0x88] sm:$0xf]
  %v71 = vld [vmem:[%s1 + $0x8c] sm:$0xf]
  %v72 = vld [vmem:[%s1 + $0x90] sm:$0xf]
  %v73 = vld [vmem:[%s1 + $0x94] sm:$0xf]
  %v74 = vld [vmem:[%s1 + $0x98] sm:$0xf]
  %v75 = vld [vmem:[%s1 + $0x9c] sm:$0xf]
  %v76 = vld [vmem:[%s1 + $0xa0] sm:$0xf]
  %v77 = vld [vmem:[%s1 + $0xa4] sm:$0xf]
  %v78 = vld [vmem:[%s1 + $0xa8] sm:$0xf]
  %v79 = vld [vmem:[%s1 + $0xac] sm:$0xf]
  %v80 = vld [vmem:[%s1 + $0xb0] sm:$0xf]
  %v81 = vld [vmem:[%s1 + $0xb4] sm:$0xf]
  %v82 = vld [vmem:[%s1 + $0xb8] sm:$0xf]
  %v83 = vld [vmem:[%s1 + $0xbc] sm:$0xf]
  %v84 = vld [vmem:[%s1 + $0xc0] sm:$0xf]
  %v85 = vld [vmem:[%s1 + $0xc4] sm:$0xf]
  %v86 = vld [vmem:[%s1 + $0xc8] sm:$0xf]
  %v87 = vld [vmem:[%s1 + $0xcc] sm:$0xf]
  %v88 = vld [vmem:[%s1 + $0xd0] sm:$0xf]
  %v89 = vld [vmem:[%s1 + $0xd4] sm:$0xf]
  %v90 = vld [vmem:[%s1 + $0xd8] sm:$0xf]
  %v91 = vld [vmem:[%s1 + $0xdc] sm:$0xf]
  %v92 = vld [vmem:[%s1 + $0xe0] sm:$0xf]
  %v93 = vld [vmem:[%s1 + $0xe4] sm:$0xf]
  %v94 = vld [vmem:[%s1 + $0xe8] sm:$0xf]
  %v95 = vld [vmem:[%s1 + $0xec] sm:$0xf]
  %v96 = vld [vmem:[%s1 + $0xf0] sm:$0xf]
  %v97 = vld [vmem:[%s1 + $0xf4] sm:$0xf]
  %v98 = vld [vmem:[%s1 + $0xf8] sm:$0xf]
  %v99 = vld [vmem:[%s1 + $0xfc] sm:$0xf]
  %v108 = vunpack.c.l.b16 %v28
  %v109 = vunpack.c.h.b16 %v28
  %v110 = vunpack.c.l.b16 %v29
  %v111 = vunpack.c.h.b16 %v29
  %v112 = vunpack.c.l.b16 %v30
  %v113 = vunpack.c.h.b16 %v30
  %v114 = vunpack.c.l.b16 %v31
  %v115 = vunpack.c.h.b16 %v31
  %v116 = vunpack.c.l.b16 %v32
  %v117 = vunpack.c.h.b16 %v32
  %v118 = vunpack.c.l.b16 %v33
  %v119 = vunpack.c.h.b16 %v33
  %v120 = vunpack.c.l.b16 %v34
  %v121 = vunpack.c.h.b16 %v34
  %v122 = vunpack.c.l.b16 %v35
  %v123 = vunpack.c.h.b16 %v35
  %v124 = vpack.c.b16 %v112, %v108
  %v125 = vpack.c.b16 %v113, %v109
  %v126 = vpack.c.b16 %v114, %v110
  %v127 = vpack.c.b16 %v115, %v111
  %v128 = vpack.c.b16 %v120, %v116
  %v129 = vpack.c.b16 %v121, %v117
  %v130 = vpack.c.b16 %v122, %v118
  %v131 = vpack.c.b16 %v123, %v119
  %v204 = vunpack.c.l.b16 %v36
  %v205 = vunpack.c.l.b16 %v37
  %v206 = vunpack.c.l.b16 %v38
  %v207 = vunpack.c.l.b16 %v39
  %v208 = vunpack.c.l.b16 %v40
  %v209 = vunpack.c.l.b16 %v41
  %v210 = vunpack.c.l.b16 %v42
  %v211 = vunpack.c.l.b16 %v43
  %v212 = vunpack.c.l.b16 %v44
  %v213 = vunpack.c.l.b16 %v45
  %v214 = vunpack.c.l.b16 %v46
  %v215 = vunpack.c.l.b16 %v47
  %v216 = vunpack.c.l.b16 %v48
  %v217 = vunpack.c.l.b16 %v49
  %v218 = vunpack.c.l.b16 %v50
  %v219 = vunpack.c.l.b16 %v51
  %v220 = vunpack.c.l.b16 %v52
  %v221 = vunpack.c.l.b16 %v53
  %v222 = vunpack.c.l.b16 %v54
  %v223 = vunpack.c.l.b16 %v55
  %v224 = vunpack.c.l.b16 %v56
  %v225 = vunpack.c.l.b16 %v57
  %v226 = vunpack.c.l.b16 %v58
  %v227 = vunpack.c.l.b16 %v59
  %v228 = vunpack.c.l.b16 %v60
  %v229 = vunpack.c.l.b16 %v61
  %v230 = vunpack.c.l.b16 %v62
  %v231 = vunpack.c.l.b16 %v63
  %v232 = vunpack.c.l.b16 %v64
  %v233 = vunpack.c.l.b16 %v65
  %v234 = vunpack.c.l.b16 %v66
  %v235 = vunpack.c.l.b16 %v67
  %v236 = vunpack.c.l.b16 %v68
  %v237 = vunpack.c.l.b16 %v69
  %v238 = vunpack.c.l.b16 %v70
  %v239 = vunpack.c.l.b16 %v71
  %v240 = vunpack.c.l.b16 %v72
  %v241 = vunpack.c.l.b16 %v73
  %v242 = vunpack.c.l.b16 %v74
  %v243 = vunpack.c.l.b16 %v75
  %v244 = vunpack.c.l.b16 %v76
  %v245 = vunpack.c.l.b16 %v77
  %v246 = vunpack.c.l.b16 %v78
  %v247 = vunpack.c.l.b16 %v79
  %v248 = vunpack.c.l.b16 %v80
  %v249 = vunpack.c.l.b16 %v81
  %v250 = vunpack.c.l.b16 %v82
  %v251 = vunpack.c.l.b16 %v83
  %v252 = vunpack.c.l.b16 %v84
  %v253 = vunpack.c.l.b16 %v85
  %v254 = vunpack.c.l.b16 %v86
  %v255 = vunpack.c.l.b16 %v87
  %v256 = vunpack.c.l.b16 %v88
  %v257 = vunpack.c.l.b16 %v89
  %v258 = vunpack.c.l.b16 %v90
  %v259 = vunpack.c.l.b16 %v91
  %v260 = vunpack.c.l.b16 %v92
  %v261 = vunpack.c.l.b16 %v93
  %v262 = vunpack.c.l.b16 %v94
  %v263 = vunpack.c.l.b16 %v95
  %v264 = vunpack.c.l.b16 %v96
  %v265 = vunpack.c.l.b16 %v97
  %v266 = vunpack.c.l.b16 %v98
  %v267 = vunpack.c.l.b16 %v99
  %v268 = vpack.c.b16 %v205, %v204
  %v269 = vpack.c.b16 %v207, %v206
  %v270 = vpack.c.b16 %v209, %v208
  %v271 = vpack.c.b16 %v211, %v210
  %v272 = vpack.c.b16 %v213, %v212
  %v273 = vpack.c.b16 %v215, %v214
  %v274 = vpack.c.b16 %v217, %v216
  %v275 = vpack.c.b16 %v219, %v218
  %v276 = vpack.c.b16 %v221, %v220
  %v277 = vpack.c.b16 %v223, %v222
  %v278 = vpack.c.b16 %v225, %v224
  %v279 = vpack.c.b16 %v227, %v226
  %v280 = vpack.c.b16 %v229, %v228
  %v281 = vpack.c.b16 %v231, %v230
  %v282 = vpack.c.b16 %v233, %v232
  %v283 = vpack.c.b16 %v235, %v234
  %v284 = vpack.c.b16 %v237, %v236
  %v285 = vpack.c.b16 %v239, %v238
  %v286 = vpack.c.b16 %v241, %v240
  %v287 = vpack.c.b16 %v243, %v242
  %v288 = vpack.c.b16 %v245, %v244
  %v289 = vpack.c.b16 %v247, %v246
  %v290 = vpack.c.b16 %v249, %v248
  %v291 = vpack.c.b16 %v251, %v250
  %v292 = vpack.c.b16 %v253, %v252
  %v293 = vpack.c.b16 %v255, %v254
  %v294 = vpack.c.b16 %v257, %v256
  %v295 = vpack.c.b16 %v259, %v258
  %v296 = vpack.c.b16 %v261, %v260
  %v297 = vpack.c.b16 %v263, %v262
  %v298 = vpack.c.b16 %v265, %v264
  %v299 = vpack.c.b16 %v267, %v266
  %332 = vmatprep.subr.bf16.mxu0 0
  %333 = vmatpush1.bf16.msra.mxu0 %v275
  %334 = vmatprep.subr.bf16.mxu0 0
  %335 = vmatpush1.bf16.msra.mxu0 %v274
  %336 = vmatprep.subr.bf16.mxu0 0
  %337 = vmatpush1.bf16.msra.mxu0 %v273
  %338 = vmatprep.subr.bf16.mxu0 0
  %339 = vmatpush1.bf16.msra.mxu0 %v272
  %340 = vmatprep.subr.bf16.mxu0 0
  %341 = vmatpush1.bf16.msra.mxu0 %v271
  %342 = vmatprep.subr.bf16.mxu0 0
  %343 = vmatpush1.bf16.msra.mxu0 %v270
  %344 = vmatprep.subr.bf16.mxu0 0
  %345 = vmatpush1.bf16.msra.mxu0 %v269
  %346 = vmatprep.subr.bf16.mxu0 0
  %347 = vmatpush1.bf16.msra.mxu0 %v268
  %348 = vmatprep.subr.bf16.mxu0 0
  %349 = vmatpush2.bf16.msra.mxu0 %v283
  %350 = vmatprep.subr.bf16.mxu0 0
  %351 = vmatpush2.bf16.msra.mxu0 %v282
  %352 = vmatprep.subr.bf16.mxu0 0
  %353 = vmatpush2.bf16.msra.mxu0 %v281
  %354 = vmatprep.subr.bf16.mxu0 0
  %355 = vmatpush2.bf16.msra.mxu0 %v280
  %356 = vmatprep.subr.bf16.mxu0 0
  %357 = vmatpush2.bf16.msra.mxu0 %v279
  %358 = vmatprep.subr.bf16.mxu0 0
  %359 = vmatpush2.bf16.msra.mxu0 %v278
  %360 = vmatprep.subr.bf16.mxu0 0
  %361 = vmatpush2.bf16.msra.mxu0 %v277
  %362 = vmatprep.subr.bf16.mxu0 0
  %363 = vmatpush2.bf16.msra.mxu0 %v276
  %364 = vmatprep.mubr.bf16.mxu0 %v125
  %365 = vmatmul.mubr.bf16.gmra.mxu0 %v124
  %v366 = vpop.f32.mrf.mxu0
  %v367 = vadd.f32 0.0, %v366
  %v368 = vpop.f32.mrf.mxu0
  %v369 = vpop.f32.mrf.mxu0
  %v370 = vadd.f32 0.0, %v369
  %v371 = vpop.f32.mrf.mxu0
  %372 = vmatprep.mubr.bf16.mxu0 %v129
  %373 = vmatmul.mubr.bf16.gmra.mxu0 %v128
  %v374 = vpop.f32.mrf.mxu0
  %v375 = vadd.f32 0.0, %v374
  %v376 = vpop.f32.mrf.mxu0
  %v377 = vpop.f32.mrf.mxu0
  %v378 = vadd.f32 0.0, %v377
  %v379 = vpop.f32.mrf.mxu0
  %380 = vdwg.mxu0
  %381 = vmatprep.subr.bf16.mxu0 0
  %382 = vmatpush1.bf16.msra.mxu0 %v291
  %383 = vmatprep.subr.bf16.mxu0 0
  %384 = vmatpush1.bf16.msra.mxu0 %v290
  %385 = vmatprep.subr.bf16.mxu0 0
  %386 = vmatpush1.bf16.msra.mxu0 %v289
  %387 = vmatprep.subr.bf16.mxu0 0
  %388 = vmatpush1.bf16.msra.mxu0 %v288
  %389 = vmatprep.subr.bf16.mxu0 0
  %390 = vmatpush1.bf16.msra.mxu0 %v287
  %391 = vmatprep.subr.bf16.mxu0 0
  %392 = vmatpush1.bf16.msra.mxu0 %v286
  %393 = vmatprep.subr.bf16.mxu0 0
  %394 = vmatpush1.bf16.msra.mxu0 %v285
  %395 = vmatprep.subr.bf16.mxu0 0
  %396 = vmatpush1.bf16.msra.mxu0 %v284
  %397 = vmatprep.subr.bf16.mxu0 0
  %398 = vmatpush2.bf16.msra.mxu0 %v299
  %399 = vmatprep.subr.bf16.mxu0 0
  %400 = vmatpush2.bf16.msra.mxu0 %v298
  %401 = vmatprep.subr.bf16.mxu0 0
  %402 = vmatpush2.bf16.msra.mxu0 %v297
  %403 = vmatprep.subr.bf16.mxu0 0
  %404 = vmatpush2.bf16.msra.mxu0 %v296
  %405 = vmatprep.subr.bf16.mxu0 0
  %406 = vmatpush2.bf16.msra.mxu0 %v295
  %407 = vmatprep.subr.bf16.mxu0 0
  %408 = vmatpush2.bf16.msra.mxu0 %v294
  %409 = vmatprep.subr.bf16.mxu0 0
  %410 = vmatpush2.bf16.msra.mxu0 %v293
  %411 = vmatprep.subr.bf16.mxu0 0
  %412 = vmatpush2.bf16.msra.mxu0 %v292
  %413 = vmatprep.mubr.bf16.mxu0 %v127
  %414 = vmatmul.mubr.bf16.gmra.mxu0 %v126
  %v415 = vpop.f32.mrf.mxu0
  %v416 = vadd.f32 %v367, %v415
  %v417 = vpop.f32.mrf.mxu0
  %v418 = vpop.f32.mrf.mxu0
  %v419 = vadd.f32 %v370, %v418
  %v420 = vpop.f32.mrf.mxu0
  %421 = vmatprep.mubr.bf16.mxu0 %v131
  %422 = vmatmul.mubr.bf16.gmra.mxu0 %v130
  %v423 = vpop.f32.mrf.mxu0
  %v424 = vadd.f32 %v375, %v423
  %v425 = vpop.f32.mrf.mxu0
  %v426 = vpop.f32.mrf.mxu0
  %v427 = vadd.f32 %v378, %v426
  %v428 = vpop.f32.mrf.mxu0
  %429 = vdwg.mxu0
  %v430 = vadd.f32 %v24, %v416
  %v431 = vadd.f32 %v25, %v419
  %v432 = vadd.f32 %v26, %v424
  %v433 = vadd.f32 %v27, %v427
  %vm434 = vcmask 523264
  %435 = vst.msk [vmem:[#allocation2] sm:$0xff] %vm434, %v430
  %436 = vst.msk [vmem:[#allocation2 + $0x8] sm:$0xff] %vm434, %v431
  %437 = vst.msk [vmem:[#allocation2 + $0x10] sm:$0xff] %vm434, %v432
  %438 = vst.msk [vmem:[#allocation2 + $0x18] sm:$0xff] %vm434, %v433
  // Predicated region
  $region18: #{_lambda_.9} parent=0 // pred_check
    %p439 = pneg %p15
  $region19: #{_lambda_.9} parent=0 // pred_check_branch
    %441 = sbr.rel (%p439) target = $region21
  $region20: #{_lambda_.9} parent=0 // pred_region
    %v442 = vld [vmem:[#allocation2] sm:$0xff]
    %v443 = vld [vmem:[#allocation2 + $0x8] sm:$0xff]
    %v444 = vld [vmem:[#allocation2 + $0x10] sm:$0xff]
    %v445 = vld [vmem:[#allocation2 + $0x18] sm:$0xff]
    %v446 = vld [vmem:[%s2] sm:$0x1]
    %v448 = vlaneseq
    %v449 = vshrl.u32 %v448, 7
    %v450 = vsub.s32 0, %v449
    %v451 = vrot.slane %v446, %v450
    %v453 = vadd.f32 %v442, %v451
    %v454 = vadd.f32 %v443, %v451
    %v455 = vadd.f32 %v444, %v451
    %v456 = vadd.f32 %v445, %v451
    %v457 = vmax.f32 %v453, 0.0
    %v458 = vmax.f32 %v454, 0.0
    %v459 = vmax.f32 %v455, 0.0
    %v460 = vmax.f32 %v456, 0.0
    %v461 = vpack.c.bf16 %v458, %v457
    %v462 = vpack.c.bf16 %v460, %v459
    %v465 = vunpack.c.l.b16 %v461
    %v466 = vunpack.c.h.b16 %v461
    %v467 = vunpack.c.l.b16 %v462
    %v468 = vunpack.c.h.b16 %v462
    %v469 = vpack.c.b16 %v465, %v465
    %v470 = vpack.c.b16 %v466, %v466
    %v471 = vpack.c.b16 %v467, %v467
    %v472 = vpack.c.b16 %v468, %v468
    %vm477 = vcmask 519168
    %478 = vst.msk [vmem:[%s3] sm:$0xf] %vm477, %v469
    %479 = vst.msk [vmem:[%s3 + $0x4] sm:$0xf] %vm477, %v470
    %480 = vst.msk [vmem:[%s3 + $0x8] sm:$0xf] %vm477, %v471
    %481 = vst.msk [vmem:[%s3 + $0xc] sm:$0xf] %vm477, %v472
  $region21: #{_lambda_.9} parent=0 // pred_fallthru
    _
  // Predicated region
  $region22: #{_lambda_.9} parent=0 // pred_check
    _
  $region23: #{_lambda_.9} parent=0 // pred_check_branch
    %483 = sbr.rel (0) target = $region25
  $region24: #{_lambda_.9} parent=0 // pred_region
    _
  $region25: #{_lambda_.9} parent=0 // pred_fallthru
    _
  // Predicated region
  $region26: #{_lambda_.9} parent=0 // pred_check
    _
  $region27: #{_lambda_.9} parent=0 // pred_check_branch
    %485 = sbr.rel (0) target = $region29
  $region28: #{_lambda_.9} parent=0 // pred_region
    _
  $region29: #{_lambda_.9} parent=0 // pred_fallthru
    _

// kernel: _lambda_.10
$region0: #{_lambda_.10}
  #allocation0 [shape = 'u32[]', space=smem, size = 0x4, offset = 0x4, fixed_abs, tag = 'smem constant byte address 0x4 - core index']
  #allocation1 [shape = 'u32[144,128]{1,0:T(1,128)}', space=vmem, size = 0x12000, scoped, tag = 'internal scratch']
  #allocation2 [shape = 'f32[16,128]{1,0:T(8,128)}', space=vmem, size = 0x2000, scoped, tag = 'scratch operand']
  %s0 = inlined_call_operand.vmem [shape: bf16[16,1024], index: 0, kind: input, shape index: {}]
  %s1 = inlined_call_operand.vmem [shape: bf16[1024,128], index: 1, kind: input, shape index: {}]
  %s2 = inlined_call_operand.vmem [shape: f32[1,128], index: 2, kind: input, shape index: {}]
  %s3 = inlined_call_operand.vmem [shape: bf16[16,128], index: 3, kind: output, shape index: {}]
  %s4 = sld [smem:[#allocation0]]
  $region76: #{_lambda_.10} parent=0
    _
  %s6 = ssub.s32 1, %s4
  %s7 = scalar_select 0, %s6, %s4
  $region1: #{_lambda_.10} parent=0
    #allocation3 [shape = 'u8[32768]{0}', space=vmem, size = 0x8000, scoped, tag = 'input window, operand 0']
    loop: start=0, step=1, limit=4
    $region2: #{_lambda_.10} parent=1 // loop_pre_header
      _
    $region3: #{_lambda_.10} parent=1 // loop_header
      %s9 = sphi 0, %s13
      %p10 = scmp.ge.s32.totalorder %s9, 4
      %s16 = sphi 0, %s35
      %s17 = sphi 0, %s31
      %s18 = sphi 0, %s27
      %s19 = sphi 0, %s16
      %s20 = sphi 0, %s17
      %s21 = sphi 0, %s18
      %s22 = sphi 0, %s19
      %s23 = sphi 0, %s20
      %s24 = sphi 0, %s21
      %s40 = sphi 0, %s42
      %s43 = sphi 0, %s40
      %s44 = sphi 0, %s43
      %s60 = sphi 0, %s44
      %s68 = sphi 0, %s70
      %s71 = sphi 0, %s68
      %s72 = sphi 0, %s71
      %s88 = sphi 0, %s72
      %s94 = sphi 0, %s96
      %s97 = sphi 0, %s94
      %s98 = sphi 0, %s97
      %s114 = sphi 0, %s98
      %s122 = sphi 0, %s124
      %s125 = sphi 0, %s122
      %s126 = sphi 0, %s125
      %s142 = sphi 0, %s126
    $region4: #{_lambda_.10} parent=1 // loop_header_branch
      %12 = sbr.rel (%p10) target = $region8
    $region5: #{_lambda_.10} parent=1 // loop_body
      %s14 = ssub.s32 %s9, 1
      %s15 = ssub.s32 %s9, 2
      %s25 = sadd.s32 1, %s18
      %p26 = scmp.ge.s32.totalorder %s25, 2
      %s27 = scalar_select %p26, 0, %s25
      %s28 = sadd.s32 1, %s17
      %s29 = scalar_select %p26, %s28, %s17
      %p30 = scmp.ge.s32.totalorder %s29, 1
      %s31 = scalar_select %p30, 0, %s29
      %s32 = sadd.s32 1, %s16
      %s33 = scalar_select %p30, %s32, %s16
      %p34 = scmp.ge.s32.totalorder %s33, 1
      %s35 = scalar_select %p34, 0, %s33
      %s36 = ssub.s32 %s16, %s35
      %s37 = ssub.s32 %s18, %s27
      %s38 = sor.u32 %s36, %s37
      %p39 = scmp.eq.s32.totalorder %s38, 0
      %s41 = sadd.s32 %s40, 1
      %s42 = scalar_select %p39, %s40, %s41
      %p45 = pneg %p39
      %p46 = scmp.eq.s32.totalorder %s9, 1
      %p47 = por %p45, %p46
      %p48 = scmp.ne.s32.totalorder %s40, %s43
      %p49 = scmp.eq.s32.totalorder %s9, 0
      %p50 = por %p48, %p49
      %p51 = scmp.ne.s32.totalorder %s40, %s43
      %p52 = scmp.eq.s32.totalorder %s14, 1
      %p53 = por %p51, %p52
      %p54 = scmp.ne.s32.totalorder %s43, %s44
      %p55 = scmp.eq.s32.totalorder %s14, 0
      %p56 = por %p54, %p55
      %p57 = scmp.ne.s32.totalorder %s43, %s44
      %p58 = scmp.eq.s32.totalorder %s15, 1
      %p59 = por %p57, %p58
      %p61 = scmp.ne.s32.totalorder %s44, %s60
      %p62 = scmp.eq.s32.totalorder %s15, 0
      %p63 = por %p61, %p62
      %s64 = ssub.s32 %s18, %s27
      %s65 = ssub.s32 %s17, %s31
      %s66 = sor.u32 %s64, %s65
      %p67 = scmp.eq.s32.totalorder %s66, 0
      %s69 = sadd.s32 %s68, 1
      %s70 = scalar_select %p67, %s68, %s69
      %p73 = pneg %p67
      %p74 = scmp.eq.s32.totalorder %s9, 1
      %p75 = por %p73, %p74
      %p76 = scmp.ne.s32.totalorder %s68, %s71
      %p77 = scmp.eq.s32.totalorder %s9, 0
      %p78 = por %p76, %p77
      %p79 = scmp.ne.s32.totalorder %s68, %s71
      %p80 = scmp.eq.s32.totalorder %s14, 1
      %p81 = por %p79, %p80
      %p82 = scmp.ne.s32.totalorder %s71, %s72
      %p83 = scmp.eq.s32.totalorder %s14, 0
      %p84 = por %p82, %p83
      %p85 = scmp.ne.s32.totalorder %s71, %s72
      %p86 = scmp.eq.s32.totalorder %s15, 1
      %p87 = por %p85, %p86
      %p89 = scmp.ne.s32.totalorder %s72, %s88
      %p90 = scmp.eq.s32.totalorder %s15, 0
      %p91 = por %p89, %p90
      %s92 = ssub.s32 %s17, %s31
      %p93 = scmp.eq.s32.totalorder %s92, 0
      %s95 = sadd.s32 %s94, 1
      %s96 = scalar_select %p93, %s94, %s95
      %p99 = pneg %p93
      %p100 = scmp.eq.s32.totalorder %s9, 1
      %p101 = por %p99, %p100
      %p102 = scmp.ne.s32.totalorder %s94, %s97
      %p103 = scmp.eq.s32.totalorder %s9, 0
      %p104 = por %p102, %p103
      %p105 = scmp.ne.s32.totalorder %s94, %s97
      %p106 = scmp.eq.s32.totalorder %s14, 1
      %p107 = por %p105, %p106
      %p108 = scmp.ne.s32.totalorder %s97, %s98
      %p109 = scmp.eq.s32.totalorder %s14, 0
      %p110 = por %p108, %p109
      %p111 = scmp.ne.s32.totalorder %s97, %s98
      %p112 = scmp.eq.s32.totalorder %s15, 1
      %p113 = por %p111, %p112
      %p115 = scmp.ne.s32.totalorder %s98, %s114
      %p116 = scmp.eq.s32.totalorder %s15, 0
      %p117 = por %p115, %p116
      %s118 = ssub.s32 %s16, %s35
      %s119 = ssub.s32 %s17, %s31
      %s120 = sor.u32 %s118, %s119
      %p121 = scmp.eq.s32.totalorder %s120, 0
      %s123 = sadd.s32 %s122, 1
      %s124 = scalar_select %p121, %s122, %s123
      %p127 = pneg %p121
      %p128 = scmp.eq.s32.totalorder %s9, 1
      %p129 = por %p127, %p128
      %p130 = scmp.ne.s32.totalorder %s122, %s125
      %p131 = scmp.eq.s32.totalorder %s9, 0
      %p132 = por %p130, %p131
      %p133 = scmp.ne.s32.totalorder %s122, %s125
      %p134 = scmp.eq.s32.totalorder %s14, 1
      %p135 = por %p133, %p134
      %p136 = scmp.ne.s32.totalorder %s125, %s126
      %p137 = scmp.eq.s32.totalorder %s14, 0
      %p138 = por %p136, %p137
      %p139 = scmp.ne.s32.totalorder %s125, %s126
      %p140 = scmp.eq.s32.totalorder %s15, 1
      %p141 = por %p139, %p140
      %p143 = scmp.ne.s32.totalorder %s126, %s142
      %p144 = scmp.eq.s32.totalorder %s15, 0
      %p145 = por %p143, %p144
      %p146 = scmp.le.s32.totalorder 1, %s9
      %p147 = scmp.lt.s32.totalorder %s9, 3
      %p148 = pnand %p146, %p147
      %p149 = pneg %p148
      // Predicated region
      $region9: #{_lambda_.10} parent=5 // pred_check
        _
      $region10: #{_lambda_.10} parent=5 // pred_check_branch
        %151 = sbr.rel (%p148) target = $region12
      $region11: #{_lambda_.10} parent=5 // pred_region
        %s152 = ssub.s32 %s9, 1
        // Predicated region
        $region13: #{_lambda_.10} parent=11 // pred_check
          %p153 = pneg %p110
        $region14: #{_lambda_.10} parent=11 // pred_check_branch
          %155 = sbr.rel (%p153) target = $region16
        $region15: #{_lambda_.10} parent=11 // pred_region
          %p156 = scmp.lt.s32.totalorder %s20, 0
          %s157 = scalar_select %p156, %s20, 0
          %s158 = scalar_lea.vmem %s2, %s157
        $region16: #{_lambda_.10} parent=11 // pred_fallthru
          _
      $region12: #{_lambda_.10} parent=5 // pred_fallthru
        _
      %p159 = scmp.lt.s32.totalorder %s9, 2
      // Predicated region
      $region17: #{_lambda_.10} parent=5 // pred_check
        %p160 = pneg %p159
      $region18: #{_lambda_.10} parent=5 // pred_check_branch
        %162 = sbr.rel (%p160) target = $region20
      $region19: #{_lambda_.10} parent=5 // pred_region
        // Predicated region
        $region21: #{_lambda_.10} parent=19 // pred_check
          %p163 = pneg %p50
        $region22: #{_lambda_.10} parent=19 // pred_check_branch
          %165 = sbr.rel (%p163) target = $region24
        $region23: #{_lambda_.10} parent=19 // pred_region
          %s166 = sand.u32 %s40, 1
          %s167 = sand.u32 %s40, 1
          %s168 = smul.addr %s167, 32
          %s169 = scalar_lea.vmem [#allocation3], %s168
          %s170 = smul.u32 2, %s16
          %s171 = smul.u32 4, %s18
          %s172 = smul.addr %s170, 8
          %s173 = sadd.s32 %s171, %s172
          %s174 = smul.addr %s173, 4
          %s175 = scalar_lea.vmem %s0, %s174
          // Predicated region
          $region25: #{_lambda_.10} parent=23 // pred_check
            _
          $region26: #{_lambda_.10} parent=23 // pred_check_branch
            %177 = sbr.rel (0) target = $region28
          $region27: #{_lambda_.10} parent=23 // pred_region
            // Predicated region
            $region29: #{_lambda_.10} parent=27 // pred_check
              _
            $region30: #{_lambda_.10} parent=27 // pred_check_branch
              %179 = sbr.rel (0) target = $region32
            $region31: #{_lambda_.10} parent=27 // pred_region
              loop: start=0, step=1, limit=1
              $region33: #{_lambda_.10} parent=31 // loop_pre_header
                _
              $region34: #{_lambda_.10} parent=31 // loop_header
                %s181 = sphi 0, %s185
                %p182 = scmp.ge.s32.totalorder %s181, 1
                %s186 = sphi %s175, %s175
                %s187 = sphi %s169, %s169
              $region35: #{_lambda_.10} parent=31 // loop_header_branch
                %184 = sbr.rel (%p182) target = $region39
              $region36: #{_lambda_.10} parent=31 // loop_body
                %v188 = vld [vmem:[%s186] sm:$0xff]
                %189 = vst [vmem:[%s187] sm:$0xff] %v188
                %v190 = vld [vmem:[%s186 + $0x8] sm:$0xff]
                %191 = vst [vmem:[%s187 + $0x8] sm:$0xff] %v190
                %v192 = vld [vmem:[%s186 + $0x20] sm:$0xff]
                %193 = vst [vmem:[%s187 + $0x10] sm:$0xff] %v192
                %v194 = vld [vmem:[%s186 + $0x28] sm:$0xff]
                %195 = vst [vmem:[%s187 + $0x18] sm:$0xff] %v194
              $region37: #{_lambda_.10} parent=31 // loop_footer
                %s185 = sadd.s32 1, %s181
              $region38: #{_lambda_.10} parent=31 // loop_footer_branch
                %180 = sbr.rel target = $region34
              $region39: #{_lambda_.10} parent=31 // loop_exit
                _
            $region32: #{_lambda_.10} parent=27 // pred_fallthru
              _
            // Predicated region
            $region40: #{_lambda_.10} parent=27 // pred_check
              _
            $region41: #{_lambda_.10} parent=27 // pred_check_branch
              %197 = sbr.rel target = $region43
            $region42: #{_lambda_.10} parent=27 // pred_region
              _
            $region43: #{_lambda_.10} parent=27 // pred_fallthru
              _
          $region28: #{_lambda_.10} parent=23 // pred_fallthru
            _
          %198 = vnop
        $region24: #{_lambda_.10} parent=19 // pred_fallthru
          _
        // Predicated region
        $region44: #{_lambda_.10} parent=19 // pred_check
          %p199 = pneg %p78
        $region45: #{_lambda_.10} parent=19 // pred_check_branch
          %201 = sbr.rel (%p199) target = $region47
        $region46: #{_lambda_.10} parent=19 // pred_region
          %s202 = smul.u32 64, %s18
          %p203 = scmp.lt.s32.totalorder %s202, 127
          %s204 = scalar_select %p203, %s202, 127
          %p205 = scmp.lt.s32.totalorder %s17, 0
          %s206 = scalar_select %p205, %s17, 0
          %s207 = sadd.s32 %s206, %s204
          %s208 = smul.addr %s207, 4
          %s209 = scalar_lea.vmem %s1, %s208
          %s210 = smul.u32 64, %s18
        $region47: #{_lambda_.10} parent=19 // pred_fallthru
          _
      $region20: #{_lambda_.10} parent=5 // pred_fallthru
        _
      %p211 = scmp.le.s32.totalorder 1, %s9
      %p212 = scmp.lt.s32.totalorder %s9, 3
      %p213 = pnand %p211, %p212
      %p214 = pneg %p213
      // Predicated region
      $region48: #{_lambda_.10} parent=5 // pred_check
        _
      $region49: #{_lambda_.10} parent=5 // pred_check_branch
        %216 = sbr.rel (%p213) target = $region51
      $region50: #{_lambda_.10} parent=5 // pred_region
        %s217 = ssub.s32 %s9, 1
        %s218 = sand.u32 %s43, 1
        %s219 = sand.u32 %s43, 1
        %s220 = smul.addr %s219, 32
        %s221 = scalar_lea.vmem [#allocation3], %s220
        // Predicated region
        $region52: #{_lambda_.10} parent=50 // pred_check
          %p222 = pneg %p56
        $region53: #{_lambda_.10} parent=50 // pred_check_branch
          %224 = sbr.rel (%p222) target = $region55
        $region54: #{_lambda_.10} parent=50 // pred_region
          _
        $region55: #{_lambda_.10} parent=50 // pred_fallthru
          _
        %s225 = sand.u32 %s43, 1
        %s226 = sand.u32 %s43, 1
        %s227 = smul.addr %s226, 32
        %s228 = scalar_lea.vmem [#allocation3], %s227
        %p229 = pneg %p56
        %p230 = pneg %p53
        %s231 = smul.u32 64, %s21
        %p232 = scmp.lt.s32.totalorder %s231, 127
        %s233 = scalar_select %p232, %s231, 127
        %p234 = scmp.lt.s32.totalorder %s20, 0
        %s235 = scalar_select %p234, %s20, 0
        %s236 = sadd.s32 %s235, %s233
        %s237 = smul.addr %s236, 4
        %s238 = scalar_lea.vmem %s1, %s237
        %p239 = pneg %p84
        %p240 = pneg %p81
        %p241 = scmp.lt.s32.totalorder %s20, 0
        %s242 = scalar_select %p241, %s20, 0
        %s243 = scalar_lea.vmem %s2, %s242
        %p244 = pneg %p110
        %p245 = pneg %p107
        %p246 = pneg %p138
        %p247 = pneg %p135
        %s248 = smul.u32 2, %s19
        %p249 = scmp.lt.s32.totalorder %s248, 1
        %s250 = scalar_select %p249, %s248, 1
        %p251 = scmp.lt.s32.totalorder %s20, 0
        %s252 = scalar_select %p251, %s20, 0
        %s253 = sadd.s32 %s252, %s250
        %s254 = smul.addr %s253, 4
        %s255 = scalar_lea.vmem %s3, %s254
        %s256 = smul.u32 2, %s19
        %s257 = smul.u32 4, %s21
        %s258 = smul.u32 64, %s21
        %p259 = scmp.lt.s32.totalorder %s258, 127
        %s260 = scalar_select %p259, %s258, 127
        %p261 = scmp.lt.s32.totalorder %s20, 0
        %s262 = scalar_select %p261, %s20, 0
        %s263 = sadd.s32 %s262, %s260
        %s264 = smul.addr %s263, 4
        %s265 = scalar_lea.vmem %s1, %s264
        %s266 = smul.u32 64, %s21
        %p267 = scmp.lt.s32.totalorder %s20, 0
        %s268 = scalar_select %p267, %s20, 0
        %s269 = scalar_lea.vmem %s2, %s268
        %s270 = smul.u32 2, %s19
        %p271 = scmp.lt.s32.totalorder %s270, 1
        %s272 = scalar_select %p271, %s270, 1
        %p273 = scmp.lt.s32.totalorder %s20, 0
        %s274 = scalar_select %p273, %s20, 0
        %s275 = sadd.s32 %s274, %s272
        %s276 = smul.addr %s275, 4
        %s277 = scalar_lea.vmem %s3, %s276
        %s278 = smul.u32 2, %s19
        %p280 = scmp.eq.s32.totalorder %s21, 0
        // Predicated region
        $region56: #{_lambda_.10} parent=50 // pred_check
          %p281 = pneg %p280
        $region57: #{_lambda_.10} parent=50 // pred_check_branch
          %283 = sbr.rel (%p281) target = $region59
        $region58: #{_lambda_.10} parent=50 // pred_region
          %284 = vst [vmem:[#allocation2] sm:$0xff] 0.0
          %285 = vst [vmem:[#allocation2 + $0x8] sm:$0xff] 0.0
        $region59: #{_lambda_.10} parent=50 // pred_fallthru
          _
        %v286 = vld [vmem:[#allocation2] sm:$0xff]
        %v287 = vld [vmem:[#allocation2 + $0x8] sm:$0xff]
        %v288 = vld [vmem:[%s221] sm:$0xff]
        %v289 = vld [vmem:[%s221 + $0x8] sm:$0xff]
        %v290 = vld [vmem:[%s221 + $0x10] sm:$0xff]
        %v291 = vld [vmem:[%s221 + $0x18] sm:$0xff]
        %v292 = vld [vmem:[%s265] sm:$0xf]
        %v293 = vld [vmem:[%s265 + $0x4] sm:$0xf]
        %v294 = vld [vmem:[%s265 + $0x8] sm:$0xf]
        %v295 = vld [vmem:[%s265 + $0xc] sm:$0xf]
        %v296 = vld [vmem:[%s265 + $0x10] sm:$0xf]
        %v297 = vld [vmem:[%s265 + $0x14] sm:$0xf]
        %v298 = vld [vmem:[%s265 + $0x18] sm:$0xf]
        %v299 = vld [vmem:[%s265 + $0x1c] sm:$0xf]
        %v300 = vld [vmem:[%s265 + $0x20] sm:$0xf]
        %v301 = vld [vmem:[%s265 + $0x24] sm:$0xf]
        %v302 = vld [vmem:[%s265 + $0x28] sm:$0xf]
        %v303 = vld [vmem:[%s265 + $0x2c] sm:$0xf]
        %v304 = vld [vmem:[%s265 + $0x30] sm:$0xf]
        %v305 = vld [vmem:[%s265 + $0x34] sm:$0xf]
        %v306 = vld [vmem:[%s265 + $0x38] sm:$0xf]
        %v307 = vld [vmem:[%s265 + $0x3c] sm:$0xf]
        %v308 = vld [vmem:[%s265 + $0x40] sm:$0xf]
        %v309 = vld [vmem:[%s265 + $0x44] sm:$0xf]
        %v310 = vld [vmem:[%s265 + $0x48] sm:$0xf]
        %v311 = vld [vmem:[%s265 + $0x4c] sm:$0xf]
        %v312 = vld [vmem:[%s265 + $0x50] sm:$0xf]
        %v313 = vld [vmem:[%s265 + $0x54] sm:$0xf]
        %v314 = vld [vmem:[%s265 + $0x58] sm:$0xf]
        %v315 = vld [vmem:[%s265 + $0x5c] sm:$0xf]
        %v316 = vld [vmem:[%s265 + $0x60] sm:$0xf]
        %v317 = vld [vmem:[%s265 + $0x64] sm:$0xf]
        %v318 = vld [vmem:[%s265 + $0x68] sm:$0xf]
        %v319 = vld [vmem:[%s265 + $0x6c] sm:$0xf]
        %v320 = vld [vmem:[%s265 + $0x70] sm:$0xf]
        %v321 = vld [vmem:[%s265 + $0x74] sm:$0xf]
        %v322 = vld [vmem:[%s265 + $0x78] sm:$0xf]
        %v323 = vld [vmem:[%s265 + $0x7c] sm:$0xf]
        %v324 = vld [vmem:[%s265 + $0x80] sm:$0xf]
        %v325 = vld [vmem:[%s265 + $0x84] sm:$0xf]
        %v326 = vld [vmem:[%s265 + $0x88] sm:$0xf]
        %v327 = vld [vmem:[%s265 + $0x8c] sm:$0xf]
        %v328 = vld [vmem:[%s265 + $0x90] sm:$0xf]
        %v329 = vld [vmem:[%s265 + $0x94] sm:$0xf]
        %v330 = vld [vmem:[%s265 + $0x98] sm:$0xf]
        %v331 = vld [vmem:[%s265 + $0x9c] sm:$0xf]
        %v332 = vld [vmem:[%s265 + $0xa0] sm:$0xf]
        %v333 = vld [vmem:[%s265 + $0xa4] sm:$0xf]
        %v334 = vld [vmem:[%s265 + $0xa8] sm:$0xf]
        %v335 = vld [vmem:[%s265 + $0xac] sm:$0xf]
        %v336 = vld [vmem:[%s265 + $0xb0] sm:$0xf]
        %v337 = vld [vmem:[%s265 + $0xb4] sm:$0xf]
        %v338 = vld [vmem:[%s265 + $0xb8] sm:$0xf]
        %v339 = vld [vmem:[%s265 + $0xbc] sm:$0xf]
        %v340 = vld [vmem:[%s265 + $0xc0] sm:$0xf]
        %v341 = vld [vmem:[%s265 + $0xc4] sm:$0xf]
        %v342 = vld [vmem:[%s265 + $0xc8] sm:$0xf]
        %v343 = vld [vmem:[%s265 + $0xcc] sm:$0xf]
        %v344 = vld [vmem:[%s265 + $0xd0] sm:$0xf]
        %v345 = vld [vmem:[%s265 + $0xd4] sm:$0xf]
        %v346 = vld [vmem:[%s265 + $0xd8] sm:$0xf]
        %v347 = vld [vmem:[%s265 + $0xdc] sm:$0xf]
        %v348 = vld [vmem:[%s265 + $0xe0] sm:$0xf]
        %v349 = vld [vmem:[%s265 + $0xe4] sm:$0xf]
        %v350 = vld [vmem:[%s265 + $0xe8] sm:$0xf]
        %v351 = vld [vmem:[%s265 + $0xec] sm:$0xf]
        %v352 = vld [vmem:[%s265 + $0xf0] sm:$0xf]
        %v353 = vld [vmem:[%s265 + $0xf4] sm:$0xf]
        %v354 = vld [vmem:[%s265 + $0xf8] sm:$0xf]
        %v355 = vld [vmem:[%s265 + $0xfc] sm:$0xf]
        %v360 = vunpack.c.l.b16 %v288
        %v361 = vunpack.c.h.b16 %v288
        %v362 = vunpack.c.l.b16 %v289
        %v363 = vunpack.c.h.b16 %v289
        %v364 = vunpack.c.l.b16 %v290
        %v365 = vunpack.c.h.b16 %v290
        %v366 = vunpack.c.l.b16 %v291
        %v367 = vunpack.c.h.b16 %v291
        %v368 = vpack.c.b16 %v364, %v360
        %v369 = vpack.c.b16 %v365, %v361
        %v370 = vpack.c.b16 %v366, %v362
        %v371 = vpack.c.b16 %v367, %v363
        %v440 = vunpack.c.l.b16 %v292
        %v441 = vunpack.c.l.b16 %v293
        %v442 = vunpack.c.l.b16 %v294
        %v443 = vunpack.c.l.b16 %v295
        %v444 = vunpack.c.l.b16 %v296
        %v445 = vunpack.c.l.b16 %v297
        %v446 = vunpack.c.l.b16 %v298
        %v447 = vunpack.c.l.b16 %v299
        %v448 = vunpack.c.l.b16 %v300
        %v449 = vunpack.c.l.b16 %v301
        %v450 = vunpack.c.l.b16 %v302
        %v451 = vunpack.c.l.b16 %v303
        %v452 = vunpack.c.l.b16 %v304
        %v453 = vunpack.c.l.b16 %v305
        %v454 = vunpack.c.l.b16 %v306
        %v455 = vunpack.c.l.b16 %v307
        %v456 = vunpack.c.l.b16 %v308
        %v457 = vunpack.c.l.b16 %v309
        %v458 = vunpack.c.l.b16 %v310
        %v459 = vunpack.c.l.b16 %v311
        %v460 = vunpack.c.l.b16 %v312
        %v461 = vunpack.c.l.b16 %v313
        %v462 = vunpack.c.l.b16 %v314
        %v463 = vunpack.c.l.b16 %v315
        %v464 = vunpack.c.l.b16 %v316
        %v465 = vunpack.c.l.b16 %v317
        %v466 = vunpack.c.l.b16 %v318
        %v467 = vunpack.c.l.b16 %v319
        %v468 = vunpack.c.l.b16 %v320
        %v469 = vunpack.c.l.b16 %v321
        %v470 = vunpack.c.l.b16 %v322
        %v471 = vunpack.c.l.b16 %v323
        %v472 = vunpack.c.l.b16 %v324
        %v473 = vunpack.c.l.b16 %v325
        %v474 = vunpack.c.l.b16 %v326
        %v475 = vunpack.c.l.b16 %v327
        %v476 = vunpack.c.l.b16 %v328
        %v477 = vunpack.c.l.b16 %v329
        %v478 = vunpack.c.l.b16 %v330
        %v479 = vunpack.c.l.b16 %v331
        %v480 = vunpack.c.l.b16 %v332
        %v481 = vunpack.c.l.b16 %v333
        %v482 = vunpack.c.l.b16 %v334
        %v483 = vunpack.c.l.b16 %v335
        %v484 = vunpack.c.l.b16 %v336
        %v485 = vunpack.c.l.b16 %v337
        %v486 = vunpack.c.l.b16 %v338
        %v487 = vunpack.c.l.b16 %v339
        %v488 = vunpack.c.l.b16 %v340
        %v489 = vunpack.c.l.b16 %v341
        %v490 = vunpack.c.l.b16 %v342
        %v491 = vunpack.c.l.b16 %v343
        %v492 = vunpack.c.l.b16 %v344
        %v493 = vunpack.c.l.b16 %v345
        %v494 = vunpack.c.l.b16 %v346
        %v495 = vunpack.c.l.b16 %v347
        %v496 = vunpack.c.l.b16 %v348
        %v497 = vunpack.c.l.b16 %v349
        %v498 = vunpack.c.l.b16 %v350
        %v499 = vunpack.c.l.b16 %v351
        %v500 = vunpack.c.l.b16 %v352
        %v501 = vunpack.c.l.b16 %v353
        %v502 = vunpack.c.l.b16 %v354
        %v503 = vunpack.c.l.b16 %v355
        %v504 = vpack.c.b16 %v441, %v440
        %v505 = vpack.c.b16 %v443, %v442
        %v506 = vpack.c.b16 %v445, %v444
        %v507 = vpack.c.b16 %v447, %v446
        %v508 = vpack.c.b16 %v449, %v448
        %v509 = vpack.c.b16 %v451, %v450
        %v510 = vpack.c.b16 %v453, %v452
        %v511 = vpack.c.b16 %v455, %v454
        %v512 = vpack.c.b16 %v457, %v456
        %v513 = vpack.c.b16 %v459, %v458
        %v514 = vpack.c.b16 %v461, %v460
        %v515 = vpack.c.b16 %v463, %v462
        %v516 = vpack.c.b16 %v465, %v464
        %v517 = vpack.c.b16 %v467, %v466
        %v518 = vpack.c.b16 %v469, %v468
        %v519 = vpack.c.b16 %v471, %v470
        %v520 = vpack.c.b16 %v473, %v472
        %v521 = vpack.c.b16 %v475, %v474
        %v522 = vpack.c.b16 %v477, %v476
        %v523 = vpack.c.b16 %v479, %v478
        %v524 = vpack.c.b16 %v481, %v480
        %v525 = vpack.c.b16 %v483, %v482
        %v526 = vpack.c.b16 %v485, %v484
        %v527 = vpack.c.b16 %v487, %v486
        %v528 = vpack.c.b16 %v489, %v488
        %v529 = vpack.c.b16 %v491, %v490
        %v530 = vpack.c.b16 %v493, %v492
        %v531 = vpack.c.b16 %v495, %v494
        %v532 = vpack.c.b16 %v497, %v496
        %v533 = vpack.c.b16 %v499, %v498
        %v534 = vpack.c.b16 %v501, %v500
        %v535 = vpack.c.b16 %v503, %v502
        %568 = vmatprep.subr.bf16.mxu0 0
        %569 = vmatpush1.bf16.msra.mxu0 %v511
        %570 = vmatprep.subr.bf16.mxu0 0
        %571 = vmatpush1.bf16.msra.mxu0 %v510
        %572 = vmatprep.subr.bf16.mxu0 0
        %573 = vmatpush1.bf16.msra.mxu0 %v509
        %574 = vmatprep.subr.bf16.mxu0 0
        %575 = vmatpush1.bf16.msra.mxu0 %v508
        %576 = vmatprep.subr.bf16.mxu0 0
        %577 = vmatpush1.bf16.msra.mxu0 %v507
        %578 = vmatprep.subr.bf16.mxu0 0
        %579 = vmatpush1.bf16.msra.mxu0 %v506
        %580 = vmatprep.subr.bf16.mxu0 0
        %581 = vmatpush1.bf16.msra.mxu0 %v505
        %582 = vmatprep.subr.bf16.mxu0 0
        %583 = vmatpush1.bf16.msra.mxu0 %v504
        %584 = vmatprep.subr.bf16.mxu0 0
        %585 = vmatpush2.bf16.msra.mxu0 %v519
        %586 = vmatprep.subr.bf16.mxu0 0
        %587 = vmatpush2.bf16.msra.mxu0 %v518
        %588 = vmatprep.subr.bf16.mxu0 0
        %589 = vmatpush2.bf16.msra.mxu0 %v517
        %590 = vmatprep.subr.bf16.mxu0 0
        %591 = vmatpush2.bf16.msra.mxu0 %v516
        %592 = vmatprep.subr.bf16.mxu0 0
        %593 = vmatpush2.bf16.msra.mxu0 %v515
        %594 = vmatprep.subr.bf16.mxu0 0
        %595 = vmatpush2.bf16.msra.mxu0 %v514
        %596 = vmatprep.subr.bf16.mxu0 0
        %597 = vmatpush2.bf16.msra.mxu0 %v513
        %598 = vmatprep.subr.bf16.mxu0 0
        %599 = vmatpush2.bf16.msra.mxu0 %v512
        %600 = vmatprep.mubr.bf16.mxu0 %v369
        %601 = vmatmul.mubr.bf16.gmra.mxu0 %v368
        %v602 = vpop.f32.mrf.mxu0
        %v603 = vadd.f32 0.0, %v602
        %v604 = vpop.f32.mrf.mxu0
        %v605 = vpop.f32.mrf.mxu0
        %v606 = vadd.f32 0.0, %v605
        %v607 = vpop.f32.mrf.mxu0
        %608 = vdwg.mxu0
        %609 = vmatprep.subr.bf16.mxu0 0
        %610 = vmatpush1.bf16.msra.mxu0 %v527
        %611 = vmatprep.subr.bf16.mxu0 0
        %612 = vmatpush1.bf16.msra.mxu0 %v526
        %613 = vmatprep.subr.bf16.mxu0 0
        %614 = vmatpush1.bf16.msra.mxu0 %v525
        %615 = vmatprep.subr.bf16.mxu0 0
        %616 = vmatpush1.bf16.msra.mxu0 %v524
        %617 = vmatprep.subr.bf16.mxu0 0
        %618 = vmatpush1.bf16.msra.mxu0 %v523
        %619 = vmatprep.subr.bf16.mxu0 0
        %620 = vmatpush1.bf16.msra.mxu0 %v522
        %621 = vmatprep.subr.bf16.mxu0 0
        %622 = vmatpush1.bf16.msra.mxu0 %v521
        %623 = vmatprep.subr.bf16.mxu0 0
        %624 = vmatpush1.bf16.msra.mxu0 %v520
        %625 = vmatprep.subr.bf16.mxu0 0
        %626 = vmatpush2.bf16.msra.mxu0 %v535
        %627 = vmatprep.subr.bf16.mxu0 0
        %628 = vmatpush2.bf16.msra.mxu0 %v534
        %629 = vmatprep.subr.bf16.mxu0 0
        %630 = vmatpush2.bf16.msra.mxu0 %v533
        %631 = vmatprep.subr.bf16.mxu0 0
        %632 = vmatpush2.bf16.msra.mxu0 %v532
        %633 = vmatprep.subr.bf16.mxu0 0
        %634 = vmatpush2.bf16.msra.mxu0 %v531
        %635 = vmatprep.subr.bf16.mxu0 0
        %636 = vmatpush2.bf16.msra.mxu0 %v530
        %637 = vmatprep.subr.bf16.mxu0 0
        %638 = vmatpush2.bf16.msra.mxu0 %v529
        %639 = vmatprep.subr.bf16.mxu0 0
        %640 = vmatpush2.bf16.msra.mxu0 %v528
        %641 = vmatprep.mubr.bf16.mxu0 %v371
        %642 = vmatmul.mubr.bf16.gmra.mxu0 %v370
        %v643 = vpop.f32.mrf.mxu0
        %v644 = vadd.f32 %v603, %v643
        %v645 = vpop.f32.mrf.mxu0
        %v646 = vpop.f32.mrf.mxu0
        %v647 = vadd.f32 %v606, %v646
        %v648 = vpop.f32.mrf.mxu0
        %649 = vdwg.mxu0
        %v650 = vadd.f32 %v286, %v644
        %v651 = vadd.f32 %v287, %v647
        %652 = vst [vmem:[#allocation2] sm:$0xff] %v650
        %653 = vst [vmem:[#allocation2 + $0x8] sm:$0xff] %v651
        %p654 = scmp.eq.s32.totalorder %s21, 1
        // Predicated region
        $region60: #{_lambda_.10} parent=50 // pred_check
          %p655 = pneg %p654
        $region61: #{_lambda_.10} parent=50 // pred_check_branch
          %657 = sbr.rel (%p655) target = $region63
        $region62: #{_lambda_.10} parent=50 // pred_region
          %v658 = vld [vmem:[#allocation2] sm:$0xff]
          %v659 = vld [vmem:[#allocation2 + $0x8] sm:$0xff]
          %v660 = vld [vmem:[%s269] sm:$0x1]
          %v662 = vlaneseq
          %v663 = vshrl.u32 %v662, 7
          %v664 = vsub.s32 0, %v663
          %v665 = vrot.slane %v660, %v664
          %v667 = vadd.f32 %v658, %v665
          %v668 = vadd.f32 %v659, %v665
          %v669 = vmax.f32 %v667, 0.0
          %v670 = vmax.f32 %v668, 0.0
          %v671 = vpack.c.bf16 %v670, %v669
          %v673 = vunpack.c.l.b16 %v671
          %v674 = vunpack.c.h.b16 %v671
          %v675 = vpack.c.b16 %v673, %v673
          %v676 = vpack.c.b16 %v674, %v674
          %679 = vst [vmem:[%s277] sm:$0xf] %v675
          %680 = vst [vmem:[%s277 + $0x4] sm:$0xf] %v676
        $region63: #{_lambda_.10} parent=50 // pred_fallthru
          _
        %s681 = smul.u32 2, %s19
        %p682 = scmp.lt.s32.totalorder %s681, 1
        %s683 = scalar_select %p682, %s681, 1
        %p684 = scmp.lt.s32.totalorder %s20, 0
        %s685 = scalar_select %p684, %s20, 0
        %s686 = sadd.s32 %s685, %s683
        %s687 = smul.addr %s686, 4
        %s688 = scalar_lea.vmem %s3, %s687
        // Predicated region
        $region64: #{_lambda_.10} parent=50 // pred_check
          %p689 = pneg %p135
        $region65: #{_lambda_.10} parent=50 // pred_check_branch
          %691 = sbr.rel (%p689) target = $region67
        $region66: #{_lambda_.10} parent=50 // pred_region
          %s692 = smul.u32 2, %s19
        $region67: #{_lambda_.10} parent=50 // pred_fallthru
          _
        // Predicated region
        $region68: #{_lambda_.10} parent=50 // pred_check
          %p693 = pneg %p135
        $region69: #{_lambda_.10} parent=50 // pred_check_branch
          %695 = sbr.rel (%p693) target = $region71
        $region70: #{_lambda_.10} parent=50 // pred_region
          %s696 = smul.u32 2, %s19
          %p697 = scmp.lt.s32.totalorder %s696, 1
          %s698 = scalar_select %p697, %s696, 1
          %p699 = scmp.lt.s32.totalorder %s20, 0
          %s700 = scalar_select %p699, %s20, 0
          %s701 = sadd.s32 %s700, %s698
          %s702 = smul.addr %s701, 4
          %s703 = scalar_lea.vmem %s3, %s702
        $region71: #{_lambda_.10} parent=50 // pred_fallthru
          _
      $region51: #{_lambda_.10} parent=5 // pred_fallthru
        _
      %p704 = scmp.le.s32.totalorder 2, %s9
      // Predicated region
      $region72: #{_lambda_.10} parent=5 // pred_check
        %p705 = pneg %p704
      $region73: #{_lambda_.10} parent=5 // pred_check_branch
        %707 = sbr.rel (%p705) target = $region75
      $region74: #{_lambda_.10} parent=5 // pred_region
        %s708 = ssub.s32 %s9, 2
      $region75: #{_lambda_.10} parent=5 // pred_fallthru
        _
    $region6: #{_lambda_.10} parent=1 // loop_footer
      %s13 = sadd.s32 1, %s9
    $region7: #{_lambda_.10} parent=1 // loop_footer_branch
      %8 = sbr.rel target = $region3
    $region8: #{_lambda_.10} parent=1 // loop_exit
      _

// kernel: _lambda_.11
$region0: #{_lambda_.11}
  #allocation0 [shape = 'u32[]', space=smem, size = 0x4, offset = 0x4, fixed_abs, tag = 'smem constant byte address 0x4 - core index']
  #allocation1 [shape = 'u32[144,128]{1,0:T(1,128)}', space=vmem, size = 0x12000, scoped, tag = 'internal scratch']
  #allocation2 [shape = 'f32[16,32]{1,0:T(8,128)}', space=vmem, size = 0x2000, scoped, tag = 'scratch operand']
  %s0 = inlined_call_operand.vmem [shape: bf16[16,512], index: 0, kind: input, shape index: {}]
  %s1 = inlined_call_operand.vmem [shape: bf16[512,32], index: 1, kind: input, shape index: {}]
  %s2 = inlined_call_operand.vmem [shape: f32[1,32], index: 2, kind: input, shape index: {}]
  %s3 = inlined_call_operand.vmem [shape: f32[16,32], index: 3, kind: output, shape index: {}]
  %s4 = sld [smem:[#allocation0]]
  $region30: #{_lambda_.11} parent=0
    _
  %s6 = ssub.s32 1, %s4
  %s7 = scalar_select 0, %s6, %s4
  // Predicated region
  $region2: #{_lambda_.11} parent=0 // pred_check
    _
  $region3: #{_lambda_.11} parent=0 // pred_check_branch
    %9 = sbr.rel (0) target = $region5
  $region4: #{_lambda_.11} parent=0 // pred_region
    _
  $region5: #{_lambda_.11} parent=0 // pred_fallthru
    _
  // Predicated region
  $region6: #{_lambda_.11} parent=0 // pred_check
    _
  $region7: #{_lambda_.11} parent=0 // pred_check_branch
    %11 = sbr.rel (0) target = $region9
  $region8: #{_lambda_.11} parent=0 // pred_region
    _
  $region9: #{_lambda_.11} parent=0 // pred_fallthru
    _
  // Predicated region
  $region10: #{_lambda_.11} parent=0 // pred_check
    _
  $region11: #{_lambda_.11} parent=0 // pred_check_branch
    %13 = sbr.rel (0) target = $region13
  $region12: #{_lambda_.11} parent=0 // pred_region
    _
  $region13: #{_lambda_.11} parent=0 // pred_fallthru
    _
  %p15 = scmp.eq.s32.totalorder 0, 0
  // Predicated region
  $region14: #{_lambda_.11} parent=0 // pred_check
    %p16 = pneg %p15
  $region15: #{_lambda_.11} parent=0 // pred_check_branch
    %18 = sbr.rel (%p16) target = $region17
  $region16: #{_lambda_.11} parent=0 // pred_region
    %vm19 = vcmask 261120
    %20 = vst.msk [vmem:[#allocation2] sm:$0xff] %vm19, 0.0
    %21 = vst.msk [vmem:[#allocation2 + $0x8] sm:$0xff] %vm19, 0.0
  $region17: #{_lambda_.11} parent=0 // pred_fallthru
    _
  %v22 = vld [vmem:[#allocation2] sm:$0xff]
  %v23 = vld [vmem:[#allocation2 + $0x8] sm:$0xff]
  %v24 = vld [vmem:[%s0] sm:$0xff]
  %v25 = vld [vmem:[%s0 + $0x8] sm:$0xff]
  %v26 = vld [vmem:[%s0 + $0x10] sm:$0xff]
  %v27 = vld [vmem:[%s0 + $0x18] sm:$0xff]
  %v28 = vld [vmem:[%s1] sm:$0xf]
  %v29 = vld [vmem:[%s1 + $0x4] sm:$0xf]
  %v30 = vld [vmem:[%s1 + $0x8] sm:$0xf]
  %v31 = vld [vmem:[%s1 + $0xc] sm:$0xf]
  %v32 = vld [vmem:[%s1 + $0x10] sm:$0xf]
  %v33 = vld [vmem:[%s1 + $0x14] sm:$0xf]
  %v34 = vld [vmem:[%s1 + $0x18] sm:$0xf]
  %v35 = vld [vmem:[%s1 + $0x1c] sm:$0xf]
  %v36 = vld [vmem:[%s1 + $0x20] sm:$0xf]
  %v37 = vld [vmem:[%s1 + $0x24] sm:$0xf]
  %v38 = vld [vmem:[%s1 + $0x28] sm:$0xf]
  %v39 = vld [vmem:[%s1 + $0x2c] sm:$0xf]
  %v40 = vld [vmem:[%s1 + $0x30] sm:$0xf]
  %v41 = vld [vmem:[%s1 + $0x34] sm:$0xf]
  %v42 = vld [vmem:[%s1 + $0x38] sm:$0xf]
  %v43 = vld [vmem:[%s1 + $0x3c] sm:$0xf]
  %v44 = vld [vmem:[%s1 + $0x40] sm:$0xf]
  %v45 = vld [vmem:[%s1 + $0x44] sm:$0xf]
  %v46 = vld [vmem:[%s1 + $0x48] sm:$0xf]
  %v47 = vld [vmem:[%s1 + $0x4c] sm:$0xf]
  %v48 = vld [vmem:[%s1 + $0x50] sm:$0xf]
  %v49 = vld [vmem:[%s1 + $0x54] sm:$0xf]
  %v50 = vld [vmem:[%s1 + $0x58] sm:$0xf]
  %v51 = vld [vmem:[%s1 + $0x5c] sm:$0xf]
  %v52 = vld [vmem:[%s1 + $0x60] sm:$0xf]
  %v53 = vld [vmem:[%s1 + $0x64] sm:$0xf]
  %v54 = vld [vmem:[%s1 + $0x68] sm:$0xf]
  %v55 = vld [vmem:[%s1 + $0x6c] sm:$0xf]
  %v56 = vld [vmem:[%s1 + $0x70] sm:$0xf]
  %v57 = vld [vmem:[%s1 + $0x74] sm:$0xf]
  %v58 = vld [vmem:[%s1 + $0x78] sm:$0xf]
  %v59 = vld [vmem:[%s1 + $0x7c] sm:$0xf]
  %v60 = vld [vmem:[%s1 + $0x80] sm:$0xf]
  %v61 = vld [vmem:[%s1 + $0x84] sm:$0xf]
  %v62 = vld [vmem:[%s1 + $0x88] sm:$0xf]
  %v63 = vld [vmem:[%s1 + $0x8c] sm:$0xf]
  %v64 = vld [vmem:[%s1 + $0x90] sm:$0xf]
  %v65 = vld [vmem:[%s1 + $0x94] sm:$0xf]
  %v66 = vld [vmem:[%s1 + $0x98] sm:$0xf]
  %v67 = vld [vmem:[%s1 + $0x9c] sm:$0xf]
  %v68 = vld [vmem:[%s1 + $0xa0] sm:$0xf]
  %v69 = vld [vmem:[%s1 + $0xa4] sm:$0xf]
  %v70 = vld [vmem:[%s1 + $0xa8] sm:$0xf]
  %v71 = vld [vmem:[%s1 + $0xac] sm:$0xf]
  %v72 = vld [vmem:[%s1 + $0xb0] sm:$0xf]
  %v73 = vld [vmem:[%s1 + $0xb4] sm:$0xf]
  %v74 = vld [vmem:[%s1 + $0xb8] sm:$0xf]
  %v75 = vld [vmem:[%s1 + $0xbc] sm:$0xf]
  %v76 = vld [vmem:[%s1 + $0xc0] sm:$0xf]
  %v77 = vld [vmem:[%s1 + $0xc4] sm:$0xf]
  %v78 = vld [vmem:[%s1 + $0xc8] sm:$0xf]
  %v79 = vld [vmem:[%s1 + $0xcc] sm:$0xf]
  %v80 = vld [vmem:[%s1 + $0xd0] sm:$0xf]
  %v81 = vld [vmem:[%s1 + $0xd4] sm:$0xf]
  %v82 = vld [vmem:[%s1 + $0xd8] sm:$0xf]
  %v83 = vld [vmem:[%s1 + $0xdc] sm:$0xf]
  %v84 = vld [vmem:[%s1 + $0xe0] sm:$0xf]
  %v85 = vld [vmem:[%s1 + $0xe4] sm:$0xf]
  %v86 = vld [vmem:[%s1 + $0xe8] sm:$0xf]
  %v87 = vld [vmem:[%s1 + $0xec] sm:$0xf]
  %v88 = vld [vmem:[%s1 + $0xf0] sm:$0xf]
  %v89 = vld [vmem:[%s1 + $0xf4] sm:$0xf]
  %v90 = vld [vmem:[%s1 + $0xf8] sm:$0xf]
  %v91 = vld [vmem:[%s1 + $0xfc] sm:$0xf]
  %v96 = vunpack.c.l.b16 %v24
  %v97 = vunpack.c.h.b16 %v24
  %v98 = vunpack.c.l.b16 %v25
  %v99 = vunpack.c.h.b16 %v25
  %v100 = vunpack.c.l.b16 %v26
  %v101 = vunpack.c.h.b16 %v26
  %v102 = vunpack.c.l.b16 %v27
  %v103 = vunpack.c.h.b16 %v27
  %v104 = vpack.c.b16 %v100, %v96
  %v105 = vpack.c.b16 %v101, %v97
  %v106 = vpack.c.b16 %v102, %v98
  %v107 = vpack.c.b16 %v103, %v99
  %v176 = vunpack.c.l.b16 %v28
  %v177 = vunpack.c.l.b16 %v29
  %v178 = vunpack.c.l.b16 %v30
  %v179 = vunpack.c.l.b16 %v31
  %v180 = vunpack.c.l.b16 %v32
  %v181 = vunpack.c.l.b16 %v33
  %v182 = vunpack.c.l.b16 %v34
  %v183 = vunpack.c.l.b16 %v35
  %v184 = vunpack.c.l.b16 %v36
  %v185 = vunpack.c.l.b16 %v37
  %v186 = vunpack.c.l.b16 %v38
  %v187 = vunpack.c.l.b16 %v39
  %v188 = vunpack.c.l.b16 %v40
  %v189 = vunpack.c.l.b16 %v41
  %v190 = vunpack.c.l.b16 %v42
  %v191 = vunpack.c.l.b16 %v43
  %v192 = vunpack.c.l.b16 %v44
  %v193 = vunpack.c.l.b16 %v45
  %v194 = vunpack.c.l.b16 %v46
  %v195 = vunpack.c.l.b16 %v47
  %v196 = vunpack.c.l.b16 %v48
  %v197 = vunpack.c.l.b16 %v49
  %v198 = vunpack.c.l.b16 %v50
  %v199 = vunpack.c.l.b16 %v51
  %v200 = vunpack.c.l.b16 %v52
  %v201 = vunpack.c.l.b16 %v53
  %v202 = vunpack.c.l.b16 %v54
  %v203 = vunpack.c.l.b16 %v55
  %v204 = vunpack.c.l.b16 %v56
  %v205 = vunpack.c.l.b16 %v57
  %v206 = vunpack.c.l.b16 %v58
  %v207 = vunpack.c.l.b16 %v59
  %v208 = vunpack.c.l.b16 %v60
  %v209 = vunpack.c.l.b16 %v61
  %v210 = vunpack.c.l.b16 %v62
  %v211 = vunpack.c.l.b16 %v63
  %v212 = vunpack.c.l.b16 %v64
  %v213 = vunpack.c.l.b16 %v65
  %v214 = vunpack.c.l.b16 %v66
  %v215 = vunpack.c.l.b16 %v67
  %v216 = vunpack.c.l.b16 %v68
  %v217 = vunpack.c.l.b16 %v69
  %v218 = vunpack.c.l.b16 %v70
  %v219 = vunpack.c.l.b16 %v71
  %v220 = vunpack.c.l.b16 %v72
  %v221 = vunpack.c.l.b16 %v73
  %v222 = vunpack.c.l.b16 %v74
  %v223 = vunpack.c.l.b16 %v75
  %v224 = vunpack.c.l.b16 %v76
  %v225 = vunpack.c.l.b16 %v77
  %v226 = vunpack.c.l.b16 %v78
  %v227 = vunpack.c.l.b16 %v79
  %v228 = vunpack.c.l.b16 %v80
  %v229 = vunpack.c.l.b16 %v81
  %v230 = vunpack.c.l.b16 %v82
  %v231 = vunpack.c.l.b16 %v83
  %v232 = vunpack.c.l.b16 %v84
  %v233 = vunpack.c.l.b16 %v85
  %v234 = vunpack.c.l.b16 %v86
  %v235 = vunpack.c.l.b16 %v87
  %v236 = vunpack.c.l.b16 %v88
  %v237 = vunpack.c.l.b16 %v89
  %v238 = vunpack.c.l.b16 %v90
  %v239 = vunpack.c.l.b16 %v91
  %v240 = vpack.c.b16 %v177, %v176
  %v241 = vpack.c.b16 %v179, %v178
  %v242 = vpack.c.b16 %v181, %v180
  %v243 = vpack.c.b16 %v183, %v182
  %v244 = vpack.c.b16 %v185, %v184
  %v245 = vpack.c.b16 %v187, %v186
  %v246 = vpack.c.b16 %v189, %v188
  %v247 = vpack.c.b16 %v191, %v190
  %v248 = vpack.c.b16 %v193, %v192
  %v249 = vpack.c.b16 %v195, %v194
  %v250 = vpack.c.b16 %v197, %v196
  %v251 = vpack.c.b16 %v199, %v198
  %v252 = vpack.c.b16 %v201, %v200
  %v253 = vpack.c.b16 %v203, %v202
  %v254 = vpack.c.b16 %v205, %v204
  %v255 = vpack.c.b16 %v207, %v206
  %v256 = vpack.c.b16 %v209, %v208
  %v257 = vpack.c.b16 %v211, %v210
  %v258 = vpack.c.b16 %v213, %v212
  %v259 = vpack.c.b16 %v215, %v214
  %v260 = vpack.c.b16 %v217, %v216
  %v261 = vpack.c.b16 %v219, %v218
  %v262 = vpack.c.b16 %v221, %v220
  %v263 = vpack.c.b16 %v223, %v222
  %v264 = vpack.c.b16 %v225, %v224
  %v265 = vpack.c.b16 %v227, %v226
  %v266 = vpack.c.b16 %v229, %v228
  %v267 = vpack.c.b16 %v231, %v230
  %v268 = vpack.c.b16 %v233, %v232
  %v269 = vpack.c.b16 %v235, %v234
  %v270 = vpack.c.b16 %v237, %v236
  %v271 = vpack.c.b16 %v239, %v238
  %304 = vmatprep.subr.bf16.mxu0 0
  %305 = vmatpush1.bf16.msra.mxu0 %v247
  %306 = vmatprep.subr.bf16.mxu0 0
  %307 = vmatpush1.bf16.msra.mxu0 %v246
  %308 = vmatprep.subr.bf16.mxu0 0
  %309 = vmatpush1.bf16.msra.mxu0 %v245
  %310 = vmatprep.subr.bf16.mxu0 0
  %311 = vmatpush1.bf16.msra.mxu0 %v244
  %312 = vmatprep.subr.bf16.mxu0 0
  %313 = vmatpush1.bf16.msra.mxu0 %v243
  %314 = vmatprep.subr.bf16.mxu0 0
  %315 = vmatpush1.bf16.msra.mxu0 %v242
  %316 = vmatprep.subr.bf16.mxu0 0
  %317 = vmatpush1.bf16.msra.mxu0 %v241
  %318 = vmatprep.subr.bf16.mxu0 0
  %319 = vmatpush1.bf16.msra.mxu0 %v240
  %320 = vmatprep.subr.bf16.mxu0 0
  %321 = vmatpush2.bf16.msra.mxu0 %v255
  %322 = vmatprep.subr.bf16.mxu0 0
  %323 = vmatpush2.bf16.msra.mxu0 %v254
  %324 = vmatprep.subr.bf16.mxu0 0
  %325 = vmatpush2.bf16.msra.mxu0 %v253
  %326 = vmatprep.subr.bf16.mxu0 0
  %327 = vmatpush2.bf16.msra.mxu0 %v252
  %328 = vmatprep.subr.bf16.mxu0 0
  %329 = vmatpush2.bf16.msra.mxu0 %v251
  %330 = vmatprep.subr.bf16.mxu0 0
  %331 = vmatpush2.bf16.msra.mxu0 %v250
  %332 = vmatprep.subr.bf16.mxu0 0
  %333 = vmatpush2.bf16.msra.mxu0 %v249
  %334 = vmatprep.subr.bf16.mxu0 0
  %335 = vmatpush2.bf16.msra.mxu0 %v248
  %336 = vmatprep.mubr.bf16.mxu0 %v105
  %337 = vmatmul.mubr.bf16.gmra.mxu0 %v104
  %v338 = vpop.f32.mrf.mxu0
  %v339 = vadd.f32 0.0, %v338
  %v340 = vpop.f32.mrf.mxu0
  %v341 = vpop.f32.mrf.mxu0
  %v342 = vadd.f32 0.0, %v341
  %v343 = vpop.f32.mrf.mxu0
  %344 = vdwg.mxu0
  %345 = vmatprep.subr.bf16.mxu0 0
  %346 = vmatpush1.bf16.msra.mxu0 %v263
  %347 = vmatprep.subr.bf16.mxu0 0
  %348 = vmatpush1.bf16.msra.mxu0 %v262
  %349 = vmatprep.subr.bf16.mxu0 0
  %350 = vmatpush1.bf16.msra.mxu0 %v261
  %351 = vmatprep.subr.bf16.mxu0 0
  %352 = vmatpush1.bf16.msra.mxu0 %v260
  %353 = vmatprep.subr.bf16.mxu0 0
  %354 = vmatpush1.bf16.msra.mxu0 %v259
  %355 = vmatprep.subr.bf16.mxu0 0
  %356 = vmatpush1.bf16.msra.mxu0 %v258
  %357 = vmatprep.subr.bf16.mxu0 0
  %358 = vmatpush1.bf16.msra.mxu0 %v257
  %359 = vmatprep.subr.bf16.mxu0 0
  %360 = vmatpush1.bf16.msra.mxu0 %v256
  %361 = vmatprep.subr.bf16.mxu0 0
  %362 = vmatpush2.bf16.msra.mxu0 %v271
  %363 = vmatprep.subr.bf16.mxu0 0
  %364 = vmatpush2.bf16.msra.mxu0 %v270
  %365 = vmatprep.subr.bf16.mxu0 0
  %366 = vmatpush2.bf16.msra.mxu0 %v269
  %367 = vmatprep.subr.bf16.mxu0 0
  %368 = vmatpush2.bf16.msra.mxu0 %v268
  %369 = vmatprep.subr.bf16.mxu0 0
  %370 = vmatpush2.bf16.msra.mxu0 %v267
  %371 = vmatprep.subr.bf16.mxu0 0
  %372 = vmatpush2.bf16.msra.mxu0 %v266
  %373 = vmatprep.subr.bf16.mxu0 0
  %374 = vmatpush2.bf16.msra.mxu0 %v265
  %375 = vmatprep.subr.bf16.mxu0 0
  %376 = vmatpush2.bf16.msra.mxu0 %v264
  %377 = vmatprep.mubr.bf16.mxu0 %v107
  %378 = vmatmul.mubr.bf16.gmra.mxu0 %v106
  %v379 = vpop.f32.mrf.mxu0
  %v380 = vadd.f32 %v339, %v379
  %v381 = vpop.f32.mrf.mxu0
  %v382 = vpop.f32.mrf.mxu0
  %v383 = vadd.f32 %v342, %v382
  %v384 = vpop.f32.mrf.mxu0
  %385 = vdwg.mxu0
  %v386 = vadd.f32 %v22, %v380
  %v387 = vadd.f32 %v23, %v383
  %vm388 = vcmask 261120
  %389 = vst.msk [vmem:[#allocation2] sm:$0xff] %vm388, %v386
  %390 = vst.msk [vmem:[#allocation2 + $0x8] sm:$0xff] %vm388, %v387
  // Predicated region
  $region18: #{_lambda_.11} parent=0 // pred_check
    %p391 = pneg %p15
  $region19: #{_lambda_.11} parent=0 // pred_check_branch
    %393 = sbr.rel (%p391) target = $region21
  $region20: #{_lambda_.11} parent=0 // pred_region
    %v394 = vld [vmem:[#allocation2] sm:$0xff]
    %v395 = vld [vmem:[#allocation2 + $0x8] sm:$0xff]
    %v396 = vld [vmem:[%s2] sm:$0x1]
    %v398 = vlaneseq
    %v399 = vshrl.u32 %v398, 7
    %v400 = vsub.s32 0, %v399
    %v401 = vrot.slane %v396, %v400
    %v403 = vadd.f32 %v394, %v401
    %v404 = vadd.f32 %v395, %v401
    %405 = vst.msk [vmem:[%s3] sm:$0xff] %vm388, %v403
    %406 = vst.msk [vmem:[%s3 + $0x8] sm:$0xff] %vm388, %v404
  $region21: #{_lambda_.11} parent=0 // pred_fallthru
    _
  // Predicated region
  $region22: #{_lambda_.11} parent=0 // pred_check
    _
  $region23: #{_lambda_.11} parent=0 // pred_check_branch
    %408 = sbr.rel (0) target = $region25
  $region24: #{_lambda_.11} parent=0 // pred_region
    _
  $region25: #{_lambda_.11} parent=0 // pred_fallthru
    _
  // Predicated region
  $region26: #{_lambda_.11} parent=0 // pred_check
    _
  $region27: #{_lambda_.11} parent=0 // pred_check_branch
    %410 = sbr.rel (0) target = $region29
  $region28: #{_lambda_.11} parent=0 // pred_region
    _
  $region29: #{_lambda_.11} parent=0 // pred_fallthru
    _

// kernel: _lambda_.12
$region0: #{_lambda_.12}
  #allocation0 [shape = 'u32[]', space=smem, size = 0x4, offset = 0x4, fixed_abs, tag = 'smem constant byte address 0x4 - core index']
  #allocation1 [shape = 'u32[144,128]{1,0:T(1,128)}', space=vmem, size = 0x12000, scoped, tag = 'internal scratch']
  #allocation2 [shape = 'f32[16,256]{1,0:T(8,128)}', space=vmem, size = 0x4000, scoped, tag = 'scratch operand']
  %s0 = inlined_call_operand.vmem [shape: bf16[16,32], index: 0, kind: input, shape index: {}]
  %s1 = inlined_call_operand.vmem [shape: bf16[32,512], index: 1, kind: input, shape index: {}]
  %s2 = inlined_call_operand.vmem [shape: f32[1,512], index: 2, kind: input, shape index: {}]
  %s3 = inlined_call_operand.vmem [shape: bf16[16,512], index: 3, kind: output, shape index: {}]
  %s4 = sld [smem:[#allocation0]]
  $region125: #{_lambda_.12} parent=0
    _
  %s6 = ssub.s32 1, %s4
  %s7 = scalar_select 0, %s6, %s4
  $region1: #{_lambda_.12} parent=0
    #allocation3 [shape = 'u8[32768]{0}', space=vmem, size = 0x8000, scoped, tag = 'input window, operand 1']
    #allocation4 [shape = 'u8[16384]{0}', space=vmem, size = 0x4000, scoped, tag = 'output window, operand 0']
    loop: start=0, step=1, limit=4
    $region2: #{_lambda_.12} parent=1 // loop_pre_header
      _
    $region3: #{_lambda_.12} parent=1 // loop_header
      %s9 = sphi 0, %s13
      %p10 = scmp.ge.s32.totalorder %s9, 4
      %s16 = sphi 0, %s35
      %s17 = sphi 0, %s31
      %s18 = sphi 0, %s27
      %s19 = sphi 0, %s16
      %s20 = sphi 0, %s17
      %s21 = sphi 0, %s18
      %s22 = sphi 0, %s19
      %s23 = sphi 0, %s20
      %s24 = sphi 0, %s21
      %s40 = sphi 0, %s42
      %s43 = sphi 0, %s40
      %s44 = sphi 0, %s43
      %s60 = sphi 0, %s44
      %s68 = sphi 0, %s70
      %s71 = sphi 0, %s68
      %s72 = sphi 0, %s71
      %s88 = sphi 0, %s72
      %s94 = sphi 0, %s96
      %s97 = sphi 0, %s94
      %s98 = sphi 0, %s97
      %s114 = sphi 0, %s98
      %s122 = sphi 0, %s124
      %s125 = sphi 0, %s122
      %s126 = sphi 0, %s125
      %s142 = sphi 0, %s126
    $region4: #{_lambda_.12} parent=1 // loop_header_branch
      %12 = sbr.rel (%p10) target = $region8
    $region5: #{_lambda_.12} parent=1 // loop_body
      %s14 = ssub.s32 %s9, 1
      %s15 = ssub.s32 %s9, 2
      %s25 = sadd.s32 1, %s18
      %p26 = scmp.ge.s32.totalorder %s25, 1
      %s27 = scalar_select %p26, 0, %s25
      %s28 = sadd.s32 1, %s17
      %s29 = scalar_select %p26, %s28, %s17
      %p30 = scmp.ge.s32.totalorder %s29, 2
      %s31 = scalar_select %p30, 0, %s29
      %s32 = sadd.s32 1, %s16
      %s33 = scalar_select %p30, %s32, %s16
      %p34 = scmp.ge.s32.totalorder %s33, 1
      %s35 = scalar_select %p34, 0, %s33
      %s36 = ssub.s32 %s16, %s35
      %s37 = ssub.s32 %s18, %s27
      %s38 = sor.u32 %s36, %s37
      %p39 = scmp.eq.s32.totalorder %s38, 0
      %s41 = sadd.s32 %s40, 1
      %s42 = scalar_select %p39, %s40, %s41
      %p45 = pneg %p39
      %p46 = scmp.eq.s32.totalorder %s9, 1
      %p47 = por %p45, %p46
      %p48 = scmp.ne.s32.totalorder %s40, %s43
      %p49 = scmp.eq.s32.totalorder %s9, 0
      %p50 = por %p48, %p49
      %p51 = scmp.ne.s32.totalorder %s40, %s43
      %p52 = scmp.eq.s32.totalorder %s14, 1
      %p53 = por %p51, %p52
      %p54 = scmp.ne.s32.totalorder %s43, %s44
      %p55 = scmp.eq.s32.totalorder %s14, 0
      %p56 = por %p54, %p55
      %p57 = scmp.ne.s32.totalorder %s43, %s44
      %p58 = scmp.eq.s32.totalorder %s15, 1
      %p59 = por %p57, %p58
      %p61 = scmp.ne.s32.totalorder %s44, %s60
      %p62 = scmp.eq.s32.totalorder %s15, 0
      %p63 = por %p61, %p62
      %s64 = ssub.s32 %s18, %s27
      %s65 = ssub.s32 %s17, %s31
      %s66 = sor.u32 %s64, %s65
      %p67 = scmp.eq.s32.totalorder %s66, 0
      %s69 = sadd.s32 %s68, 1
      %s70 = scalar_select %p67, %s68, %s69
      %p73 = pneg %p67
      %p74 = scmp.eq.s32.totalorder %s9, 1
      %p75 = por %p73, %p74
      %p76 = scmp.ne.s32.totalorder %s68, %s71
      %p77 = scmp.eq.s32.totalorder %s9, 0
      %p78 = por %p76, %p77
      %p79 = scmp.ne.s32.totalorder %s68, %s71
      %p80 = scmp.eq.s32.totalorder %s14, 1
      %p81 = por %p79, %p80
      %p82 = scmp.ne.s32.totalorder %s71, %s72
      %p83 = scmp.eq.s32.totalorder %s14, 0
      %p84 = por %p82, %p83
      %p85 = scmp.ne.s32.totalorder %s71, %s72
      %p86 = scmp.eq.s32.totalorder %s15, 1
      %p87 = por %p85, %p86
      %p89 = scmp.ne.s32.totalorder %s72, %s88
      %p90 = scmp.eq.s32.totalorder %s15, 0
      %p91 = por %p89, %p90
      %s92 = ssub.s32 %s17, %s31
      %p93 = scmp.eq.s32.totalorder %s92, 0
      %s95 = sadd.s32 %s94, 1
      %s96 = scalar_select %p93, %s94, %s95
      %p99 = pneg %p93
      %p100 = scmp.eq.s32.totalorder %s9, 1
      %p101 = por %p99, %p100
      %p102 = scmp.ne.s32.totalorder %s94, %s97
      %p103 = scmp.eq.s32.totalorder %s9, 0
      %p104 = por %p102, %p103
      %p105 = scmp.ne.s32.totalorder %s94, %s97
      %p106 = scmp.eq.s32.totalorder %s14, 1
      %p107 = por %p105, %p106
      %p108 = scmp.ne.s32.totalorder %s97, %s98
      %p109 = scmp.eq.s32.totalorder %s14, 0
      %p110 = por %p108, %p109
      %p111 = scmp.ne.s32.totalorder %s97, %s98
      %p112 = scmp.eq.s32.totalorder %s15, 1
      %p113 = por %p111, %p112
      %p115 = scmp.ne.s32.totalorder %s98, %s114
      %p116 = scmp.eq.s32.totalorder %s15, 0
      %p117 = por %p115, %p116
      %s118 = ssub.s32 %s16, %s35
      %s119 = ssub.s32 %s17, %s31
      %s120 = sor.u32 %s118, %s119
      %p121 = scmp.eq.s32.totalorder %s120, 0
      %s123 = sadd.s32 %s122, 1
      %s124 = scalar_select %p121, %s122, %s123
      %p127 = pneg %p121
      %p128 = scmp.eq.s32.totalorder %s9, 1
      %p129 = por %p127, %p128
      %p130 = scmp.ne.s32.totalorder %s122, %s125
      %p131 = scmp.eq.s32.totalorder %s9, 0
      %p132 = por %p130, %p131
      %p133 = scmp.ne.s32.totalorder %s122, %s125
      %p134 = scmp.eq.s32.totalorder %s14, 1
      %p135 = por %p133, %p134
      %p136 = scmp.ne.s32.totalorder %s125, %s126
      %p137 = scmp.eq.s32.totalorder %s14, 0
      %p138 = por %p136, %p137
      %p139 = scmp.ne.s32.totalorder %s125, %s126
      %p140 = scmp.eq.s32.totalorder %s15, 1
      %p141 = por %p139, %p140
      %p143 = scmp.ne.s32.totalorder %s126, %s142
      %p144 = scmp.eq.s32.totalorder %s15, 0
      %p145 = por %p143, %p144
      %p146 = scmp.le.s32.totalorder 1, %s9
      %p147 = scmp.lt.s32.totalorder %s9, 3
      %p148 = pnand %p146, %p147
      %p149 = pneg %p148
      // Predicated region
      $region9: #{_lambda_.12} parent=5 // pred_check
        _
      $region10: #{_lambda_.12} parent=5 // pred_check_branch
        %151 = sbr.rel (%p148) target = $region12
      $region11: #{_lambda_.12} parent=5 // pred_region
        %s152 = ssub.s32 %s9, 1
        // Predicated region
        $region13: #{_lambda_.12} parent=11 // pred_check
          %p153 = pneg %p56
        $region14: #{_lambda_.12} parent=11 // pred_check_branch
          %155 = sbr.rel (%p153) target = $region16
        $region15: #{_lambda_.12} parent=11 // pred_region
          %s156 = smul.u32 2, %s19
          %p157 = scmp.lt.s32.totalorder %s156, 1
          %s158 = scalar_select %p157, %s156, 1
          %p159 = scmp.lt.s32.totalorder %s21, 0
          %s160 = scalar_select %p159, %s21, 0
          %s161 = sadd.s32 %s160, %s158
          %s162 = smul.addr %s161, 4
          %s163 = scalar_lea.vmem %s0, %s162
          %s164 = smul.u32 2, %s19
        $region16: #{_lambda_.12} parent=11 // pred_fallthru
          _
      $region12: #{_lambda_.12} parent=5 // pred_fallthru
        _
      %p165 = scmp.lt.s32.totalorder %s9, 2
      // Predicated region
      $region17: #{_lambda_.12} parent=5 // pred_check
        %p166 = pneg %p165
      $region18: #{_lambda_.12} parent=5 // pred_check_branch
        %168 = sbr.rel (%p166) target = $region20
      $region19: #{_lambda_.12} parent=5 // pred_region
        // Predicated region
        $region21: #{_lambda_.12} parent=19 // pred_check
          %p169 = pneg %p78
        $region22: #{_lambda_.12} parent=19 // pred_check_branch
          %171 = sbr.rel (%p169) target = $region24
        $region23: #{_lambda_.12} parent=19 // pred_region
          %s172 = sand.u32 %s68, 1
          %s173 = sand.u32 %s68, 1
          %s174 = smul.addr %s173, 32
          %s175 = scalar_lea.vmem [#allocation3], %s174
          %s176 = smul.u32 4, %s18
          %s177 = smul.u32 2, %s17
          %s178 = smul.addr %s176, 4
          %s179 = sadd.s32 %s177, %s178
          %s180 = smul.addr %s179, 4
          %s181 = scalar_lea.vmem %s1, %s180
          // Predicated region
          $region25: #{_lambda_.12} parent=23 // pred_check
            _
          $region26: #{_lambda_.12} parent=23 // pred_check_branch
            %183 = sbr.rel (0) target = $region28
          $region27: #{_lambda_.12} parent=23 // pred_region
            // Predicated region
            $region29: #{_lambda_.12} parent=27 // pred_check
              _
            $region30: #{_lambda_.12} parent=27 // pred_check_branch
              %185 = sbr.rel (0) target = $region32
            $region31: #{_lambda_.12} parent=27 // pred_region
              // Predicated region
              $region44: #{_lambda_.12} parent=31 // pred_check
                _
              $region45: #{_lambda_.12} parent=31 // pred_check_branch
                %207 = sbr.rel (0) target = $region47
              $region46: #{_lambda_.12} parent=31 // pred_region
                loop: start=0, step=1, limit=1
                $region48: #{_lambda_.12} parent=46 // loop_pre_header
                  _
                $region49: #{_lambda_.12} parent=46 // loop_header
                  %s209 = sphi 0, %s213
                  %p210 = scmp.ge.s32.totalorder %s209, 1
                  %s214 = sphi %s181, %s181
                  %s215 = sphi %s175, %s175
                $region50: #{_lambda_.12} parent=46 // loop_header_branch
                  %212 = sbr.rel (%p210) target = $region54
                $region51: #{_lambda_.12} parent=46 // loop_body
                  %v216 = vld [vmem:[%s214] sm:$0xff]
                  %217 = vst [vmem:[%s215] sm:$0xff] %v216
                  %v218 = vld [vmem:[%s214 + $0x10] sm:$0xff]
                  %219 = vst [vmem:[%s215 + $0x8] sm:$0xff] %v218
                  %v220 = vld [vmem:[%s214 + $0x20] sm:$0xff]
                  %221 = vst [vmem:[%s215 + $0x10] sm:$0xff] %v220
                  %v222 = vld [vmem:[%s214 + $0x30] sm:$0xff]
                  %223 = vst [vmem:[%s215 + $0x18] sm:$0xff] %v222
                $region52: #{_lambda_.12} parent=46 // loop_footer
                  %s213 = sadd.s32 1, %s209
                $region53: #{_lambda_.12} parent=46 // loop_footer_branch
                  %208 = sbr.rel target = $region49
                $region54: #{_lambda_.12} parent=46 // loop_exit
                  _
              $region47: #{_lambda_.12} parent=31 // pred_fallthru
                _
              // Predicated region
              $region55: #{_lambda_.12} parent=31 // pred_check
                _
              $region56: #{_lambda_.12} parent=31 // pred_check_branch
                %225 = sbr.rel target = $region58
              $region57: #{_lambda_.12} parent=31 // pred_region
                _
              $region58: #{_lambda_.12} parent=31 // pred_fallthru
                _
            $region32: #{_lambda_.12} parent=27 // pred_fallthru
              _
            // Predicated region
            $region33: #{_lambda_.12} parent=27 // pred_check
              _
            $region34: #{_lambda_.12} parent=27 // pred_check_branch
              %187 = sbr.rel target = $region36
            $region35: #{_lambda_.12} parent=27 // pred_region
              %s189 = ssub.s32 256, 1
              loop: start=0, step=1, limit=1
              $region37: #{_lambda_.12} parent=35 // loop_pre_header
                _
              $region38: #{_lambda_.12} parent=35 // loop_header
                %s191 = sphi 0, %s195
                %p192 = scmp.ge.s32.totalorder %s191, 1
                %s196 = sphi %s181, %s181
                %s197 = sphi %s175, %s175
              $region39: #{_lambda_.12} parent=35 // loop_header_branch
                %194 = sbr.rel (%p192) target = $region43
              $region40: #{_lambda_.12} parent=35 // loop_body
                %v198 = vld [vmem:[%s196] sm:%s189]
                %199 = vst [vmem:[%s197] sm:%s189] %v198
                %v200 = vld [vmem:[%s196 + $0x10] sm:%s189]
                %201 = vst [vmem:[%s197 + $0x8] sm:%s189] %v200
                %v202 = vld [vmem:[%s196 + $0x20] sm:%s189]
                %203 = vst [vmem:[%s197 + $0x10] sm:%s189] %v202
                %v204 = vld [vmem:[%s196 + $0x30] sm:%s189]
                %205 = vst [vmem:[%s197 + $0x18] sm:%s189] %v204
              $region41: #{_lambda_.12} parent=35 // loop_footer
                %s195 = sadd.s32 1, %s191
              $region42: #{_lambda_.12} parent=35 // loop_footer_branch
                %190 = sbr.rel target = $region38
              $region43: #{_lambda_.12} parent=35 // loop_exit
                _
            $region36: #{_lambda_.12} parent=27 // pred_fallthru
              _
          $region28: #{_lambda_.12} parent=23 // pred_fallthru
            _
          %226 = vnop
        $region24: #{_lambda_.12} parent=19 // pred_fallthru
          _
        // Predicated region
        $region59: #{_lambda_.12} parent=19 // pred_check
          %p227 = pneg %p104
        $region60: #{_lambda_.12} parent=19 // pred_check_branch
          %229 = sbr.rel (%p227) target = $region62
        $region61: #{_lambda_.12} parent=19 // pred_region
          %s230 = smul.u32 2, %s17
          %p231 = scmp.lt.s32.totalorder %s230, 3
          %s232 = scalar_select %p231, %s230, 3
          %s233 = scalar_lea.vmem %s2, %s232
          %s234 = smul.u32 2, %s17
        $region62: #{_lambda_.12} parent=19 // pred_fallthru
          _
      $region20: #{_lambda_.12} parent=5 // pred_fallthru
        _
      %p235 = scmp.le.s32.totalorder 1, %s9
      %p236 = scmp.lt.s32.totalorder %s9, 3
      %p237 = pnand %p235, %p236
      %p238 = pneg %p237
      // Predicated region
      $region63: #{_lambda_.12} parent=5 // pred_check
        _
      $region64: #{_lambda_.12} parent=5 // pred_check_branch
        %240 = sbr.rel (%p237) target = $region66
      $region65: #{_lambda_.12} parent=5 // pred_region
        %s241 = ssub.s32 %s9, 1
        %s242 = sand.u32 %s71, 1
        %s243 = sand.u32 %s71, 1
        %s244 = smul.addr %s243, 32
        %s245 = scalar_lea.vmem [#allocation3], %s244
        // Predicated region
        $region67: #{_lambda_.12} parent=65 // pred_check
          %p246 = pneg %p84
        $region68: #{_lambda_.12} parent=65 // pred_check_branch
          %248 = sbr.rel (%p246) target = $region70
        $region69: #{_lambda_.12} parent=65 // pred_region
          _
        $region70: #{_lambda_.12} parent=65 // pred_fallthru
          _
        %s249 = smul.u32 2, %s19
        %p250 = scmp.lt.s32.totalorder %s249, 1
        %s251 = scalar_select %p250, %s249, 1
        %p252 = scmp.lt.s32.totalorder %s21, 0
        %s253 = scalar_select %p252, %s21, 0
        %s254 = sadd.s32 %s253, %s251
        %s255 = smul.addr %s254, 4
        %s256 = scalar_lea.vmem %s0, %s255
        %p257 = pneg %p56
        %p258 = pneg %p53
        %s259 = sand.u32 %s71, 1
        %s260 = sand.u32 %s71, 1
        %s261 = smul.addr %s260, 32
        %s262 = scalar_lea.vmem [#allocation3], %s261
        %p263 = pneg %p84
        %p264 = pneg %p81
        %s265 = smul.u32 2, %s20
        %p266 = scmp.lt.s32.totalorder %s265, 3
        %s267 = scalar_select %p266, %s265, 3
        %s268 = scalar_lea.vmem %s2, %s267
        %p269 = pneg %p110
        %p270 = pneg %p107
        %p271 = pneg %p138
        %p272 = pneg %p135
        %s273 = sand.u32 %s125, 1
        %s274 = sand.u32 %s125, 1
        %s275 = smul.addr %s274, 16
        %s276 = scalar_lea.vmem [#allocation4], %s275
        %s277 = smul.u32 2, %s19
        %p278 = scmp.lt.s32.totalorder %s277, 1
        %s279 = scalar_select %p278, %s277, 1
        %p280 = scmp.lt.s32.totalorder %s21, 0
        %s281 = scalar_select %p280, %s21, 0
        %s282 = sadd.s32 %s281, %s279
        %s283 = smul.addr %s282, 4
        %s284 = scalar_lea.vmem %s0, %s283
        %s285 = smul.u32 2, %s19
        %s286 = smul.u32 4, %s21
        %s287 = smul.u32 2, %s20
        %s288 = smul.u32 2, %s20
        %p289 = scmp.lt.s32.totalorder %s288, 3
        %s290 = scalar_select %p289, %s288, 3
        %s291 = scalar_lea.vmem %s2, %s290
        %s292 = smul.u32 2, %s20
        %s293 = smul.u32 2, %s19
        %s294 = smul.u32 2, %s20
        %p296 = scmp.eq.s32.totalorder %s21, 0
        // Predicated region
        $region71: #{_lambda_.12} parent=65 // pred_check
          %p297 = pneg %p296
        $region72: #{_lambda_.12} parent=65 // pred_check_branch
          %299 = sbr.rel (%p297) target = $region74
        $region73: #{_lambda_.12} parent=65 // pred_region
          %300 = vst [vmem:[#allocation2] sm:$0xff] 0.0
          %301 = vst [vmem:[#allocation2 + $0x8] sm:$0xff] 0.0
          %302 = vst [vmem:[#allocation2 + $0x10] sm:$0xff] 0.0
          %303 = vst [vmem:[#allocation2 + $0x18] sm:$0xff] 0.0
        $region74: #{_lambda_.12} parent=65 // pred_fallthru
          _
        %v304 = vld [vmem:[#allocation2] sm:$0xff]
        %v305 = vld [vmem:[#allocation2 + $0x8] sm:$0xff]
        %v306 = vld [vmem:[#allocation2 + $0x10] sm:$0xff]
        %v307 = vld [vmem:[#allocation2 + $0x18] sm:$0xff]
        %v308 = vld [vmem:[%s284] sm:$0xf]
        %v309 = vld [vmem:[%s284 + $0x4] sm:$0xf]
        %v310 = vld [vmem:[%s245] sm:$0xff]
        %v311 = vld [vmem:[%s245 + $0x8] sm:$0xff]
        %v312 = vld [vmem:[%s245 + $0x10] sm:$0xff]
        %v313 = vld [vmem:[%s245 + $0x18] sm:$0xff]
        %v316 = vunpack.c.l.b16 %v308
        %v317 = vunpack.c.l.b16 %v309
        %v318 = vpack.c.b16 %v317, %v316
        %v323 = vunpack.c.l.b16 %v310
        %v324 = vunpack.c.h.b16 %v310
        %v325 = vunpack.c.l.b16 %v311
        %v326 = vunpack.c.h.b16 %v311
        %v327 = vunpack.c.l.b16 %v312
        %v328 = vunpack.c.h.b16 %v312
        %v329 = vunpack.c.l.b16 %v313
        %v330 = vunpack.c.h.b16 %v313
        %v331 = vpack.c.b16 %v325, %v323
        %v332 = vpack.c.b16 %v326, %v324
        %v333 = vpack.c.b16 %v329, %v327
        %v334 = vpack.c.b16 %v330, %v328
        %vm339 = vcmask 261120
        %v341 = vsel %vm339, %v318, 0
        %343 = vmatprep.subr.bf16.mxu0 0
        %344 = vmatpush1.bf16.msra.mxu0 0
        %345 = vmatprep.subr.bf16.mxu0 0
        %346 = vmatpush1.bf16.msra.mxu0 0
        %347 = vmatprep.subr.bf16.mxu0 0
        %348 = vmatpush1.bf16.msra.mxu0 0
        %349 = vmatprep.subr.bf16.mxu0 0
        %350 = vmatpush1.bf16.msra.mxu0 0
        %351 = vmatprep.subr.bf16.mxu0 0
        %352 = vmatpush1.bf16.msra.mxu0 0
        %353 = vmatprep.subr.bf16.mxu0 0
        %354 = vmatpush1.bf16.msra.mxu0 0
        %355 = vmatprep.subr.bf16.mxu0 %v334
        %356 = vmatpush1.bf16.msra.mxu0 %v333
        %357 = vmatprep.subr.bf16.mxu0 %v332
        %358 = vmatpush1.bf16.msra.mxu0 %v331
        %359 = vmatprep.subr.bf16.mxu0 0
        %360 = vmatpush2.bf16.msra.mxu0 0
        %361 = vmatprep.subr.bf16.mxu0 0
        %362 = vmatpush2.bf16.msra.mxu0 0
        %363 = vmatprep.subr.bf16.mxu0 0
        %364 = vmatpush2.bf16.msra.mxu0 0
        %365 = vmatprep.subr.bf16.mxu0 0
        %366 = vmatpush2.bf16.msra.mxu0 0
        %367 = vmatprep.subr.bf16.mxu0 0
        %368 = vmatpush2.bf16.msra.mxu0 0
        %369 = vmatprep.subr.bf16.mxu0 0
        %370 = vmatpush2.bf16.msra.mxu0 0
        %371 = vmatprep.subr.bf16.mxu0 0
        %372 = vmatpush2.bf16.msra.mxu0 0
        %373 = vmatprep.subr.bf16.mxu0 0
        %374 = vmatpush2.bf16.msra.mxu0 0
        %375 = vmatprep.mubr.bf16.mxu0 0
        %376 = vmatmul.mubr.bf16.gmra.mxu0 %v341
        %v377 = vpop.f32.mrf.mxu0
        %v378 = vadd.f32 0.0, %v377
        %v379 = vpop.f32.mrf.mxu0
        %v380 = vadd.f32 0.0, %v379
        %v381 = vpop.f32.mrf.mxu0
        %v382 = vadd.f32 0.0, %v381
        %v383 = vpop.f32.mrf.mxu0
        %v384 = vadd.f32 0.0, %v383
        %385 = vdwg.mxu0
        %v386 = vadd.f32 %v304, %v378
        %v387 = vadd.f32 %v305, %v380
        %v388 = vadd.f32 %v306, %v382
        %v389 = vadd.f32 %v307, %v384
        %390 = vst [vmem:[#allocation2] sm:$0xff] %v386
        %391 = vst [vmem:[#allocation2 + $0x8] sm:$0xff] %v387
        %392 = vst [vmem:[#allocation2 + $0x10] sm:$0xff] %v388
        %393 = vst [vmem:[#allocation2 + $0x18] sm:$0xff] %v389
        // Predicated region
        $region75: #{_lambda_.12} parent=65 // pred_check
          %p394 = pneg %p296
        $region76: #{_lambda_.12} parent=65 // pred_check_branch
          %396 = sbr.rel (%p394) target = $region78
        $region77: #{_lambda_.12} parent=65 // pred_region
          %v397 = vld [vmem:[#allocation2] sm:$0xff]
          %v398 = vld [vmem:[#allocation2 + $0x8] sm:$0xff]
          %v399 = vld [vmem:[#allocation2 + $0x10] sm:$0xff]
          %v400 = vld [vmem:[#allocation2 + $0x18] sm:$0xff]
          %v401 = vld [vmem:[%s291] sm:$0x3]
          %v403 = vlaneseq
          %v404 = vshrl.u32 %v403, 7
          %v405 = vsub.s32 0, %v404
          %v406 = vrot.slane %v401, %v405
          %v407 = vlaneseq
          %v408 = vshrl.u32 %v407, 7
          %v409 = vsub.s32 1, %v408
          %v410 = vrot.slane %v401, %v409
          %v413 = vadd.f32 %v397, %v406
          %v414 = vadd.f32 %v398, %v410
          %v415 = vadd.f32 %v399, %v406
          %v416 = vadd.f32 %v400, %v410
          %v417 = vmax.f32 %v413, 0.0
          %v418 = vmax.f32 %v414, 0.0
          %v419 = vmax.f32 %v415, 0.0
          %v420 = vmax.f32 %v416, 0.0
          %v421 = vpack.c.bf16 %v419, %v417
          %v422 = vpack.c.bf16 %v420, %v418
          %v425 = vunpack.c.l.b16 %v421
          %v426 = vunpack.c.l.b16 %v422
          %v427 = vunpack.c.h.b16 %v421
          %v428 = vunpack.c.h.b16 %v422
          %v429 = vpack.c.b16 %v426, %v425
          %v430 = vpack.c.b16 %v428, %v427
          %433 = vst [vmem:[%s276] sm:$0xff] %v429
          %434 = vst [vmem:[%s276 + $0x8] sm:$0xff] %v430
        $region78: #{_lambda_.12} parent=65 // pred_fallthru
          _
        %s435 = sand.u32 %s125, 1
        %s436 = sand.u32 %s125, 1
        %s437 = smul.addr %s436, 16
        %s438 = scalar_lea.vmem [#allocation4], %s437
        // Predicated region
        $region79: #{_lambda_.12} parent=65 // pred_check
          %p439 = pneg %p135
        $region80: #{_lambda_.12} parent=65 // pred_check_branch
          %441 = sbr.rel (%p439) target = $region82
        $region81: #{_lambda_.12} parent=65 // pred_region
          %s442 = smul.u32 2, %s19
          %s443 = smul.u32 2, %s20
          %s444 = smul.addr %s442, 4
          %s445 = sadd.s32 %s443, %s444
          %s446 = smul.addr %s445, 4
          %s447 = scalar_lea.vmem %s3, %s446
          // Predicated region
          $region83: #{_lambda_.12} parent=81 // pred_check
            _
          $region84: #{_lambda_.12} parent=81 // pred_check_branch
            %449 = sbr.rel (0) target = $region86
          $region85: #{_lambda_.12} parent=81 // pred_region
            // Predicated region
            $region87: #{_lambda_.12} parent=85 // pred_check
              _
            $region88: #{_lambda_.12} parent=85 // pred_check_branch
              %451 = sbr.rel (0) target = $region90
            $region89: #{_lambda_.12} parent=85 // pred_region
              // Predicated region
              $region102: #{_lambda_.12} parent=89 // pred_check
                _
              $region103: #{_lambda_.12} parent=89 // pred_check_branch
                %469 = sbr.rel (0) target = $region105
              $region104: #{_lambda_.12} parent=89 // pred_region
                loop: start=0, step=1, limit=1
                $region106: #{_lambda_.12} parent=104 // loop_pre_header
                  _
                $region107: #{_lambda_.12} parent=104 // loop_header
                  %s471 = sphi 0, %s475
                  %p472 = scmp.ge.s32.totalorder %s471, 1
                  %s476 = sphi %s438, %s438
                  %s477 = sphi %s447, %s447
                $region108: #{_lambda_.12} parent=104 // loop_header_branch
                  %474 = sbr.rel (%p472) target = $region112
                $region109: #{_lambda_.12} parent=104 // loop_body
                  %v478 = vld [vmem:[%s476] sm:$0xff]
                  %479 = vst [vmem:[%s477] sm:$0xff] %v478
                  %v480 = vld [vmem:[%s476 + $0x8] sm:$0xff]
                  %481 = vst [vmem:[%s477 + $0x10] sm:$0xff] %v480
                $region110: #{_lambda_.12} parent=104 // loop_footer
                  %s475 = sadd.s32 1, %s471
                $region111: #{_lambda_.12} parent=104 // loop_footer_branch
                  %470 = sbr.rel target = $region107
                $region112: #{_lambda_.12} parent=104 // loop_exit
                  _
              $region105: #{_lambda_.12} parent=89 // pred_fallthru
                _
              // Predicated region
              $region113: #{_lambda_.12} parent=89 // pred_check
                _
              $region114: #{_lambda_.12} parent=89 // pred_check_branch
                %483 = sbr.rel target = $region116
              $region115: #{_lambda_.12} parent=89 // pred_region
                _
              $region116: #{_lambda_.12} parent=89 // pred_fallthru
                _
            $region90: #{_lambda_.12} parent=85 // pred_fallthru
              _
            // Predicated region
            $region91: #{_lambda_.12} parent=85 // pred_check
              _
            $region92: #{_lambda_.12} parent=85 // pred_check_branch
              %453 = sbr.rel target = $region94
            $region93: #{_lambda_.12} parent=85 // pred_region
              %s455 = ssub.s32 256, 1
              loop: start=0, step=1, limit=1
              $region95: #{_lambda_.12} parent=93 // loop_pre_header
                _
              $region96: #{_lambda_.12} parent=93 // loop_header
                %s457 = sphi 0, %s461
                %p458 = scmp.ge.s32.totalorder %s457, 1
                %s462 = sphi %s438, %s438
                %s463 = sphi %s447, %s447
              $region97: #{_lambda_.12} parent=93 // loop_header_branch
                %460 = sbr.rel (%p458) target = $region101
              $region98: #{_lambda_.12} parent=93 // loop_body
                %v464 = vld [vmem:[%s462] sm:%s455]
                %465 = vst [vmem:[%s463] sm:%s455] %v464
                %v466 = vld [vmem:[%s462 + $0x8] sm:%s455]
                %467 = vst [vmem:[%s463 + $0x10] sm:%s455] %v466
              $region99: #{_lambda_.12} parent=93 // loop_footer
                %s461 = sadd.s32 1, %s457
              $region100: #{_lambda_.12} parent=93 // loop_footer_branch
                %456 = sbr.rel target = $region96
              $region101: #{_lambda_.12} parent=93 // loop_exit
                _
            $region94: #{_lambda_.12} parent=85 // pred_fallthru
              _
          $region86: #{_lambda_.12} parent=81 // pred_fallthru
            _
          %484 = vnop
        $region82: #{_lambda_.12} parent=65 // pred_fallthru
          _
      $region66: #{_lambda_.12} parent=5 // pred_fallthru
        _
      %p485 = scmp.le.s32.totalorder 2, %s9
      // Predicated region
      $region117: #{_lambda_.12} parent=5 // pred_check
        %p486 = pneg %p485
      $region118: #{_lambda_.12} parent=5 // pred_check_branch
        %488 = sbr.rel (%p486) target = $region120
      $region119: #{_lambda_.12} parent=5 // pred_region
        %s489 = ssub.s32 %s9, 2
        // Predicated region
        $region121: #{_lambda_.12} parent=119 // pred_check
          %p490 = pneg %p141
        $region122: #{_lambda_.12} parent=119 // pred_check_branch
          %492 = sbr.rel (%p490) target = $region124
        $region123: #{_lambda_.12} parent=119 // pred_region
          %s493 = sand.u32 %s126, 1
          %s494 = sand.u32 %s126, 1
          %s495 = smul.addr %s494, 16
          %s496 = scalar_lea.vmem [#allocation4], %s495
        $region124: #{_lambda_.12} parent=119 // pred_fallthru
          _
      $region120: #{_lambda_.12} parent=5 // pred_fallthru
        _
    $region6: #{_lambda_.12} parent=1 // loop_footer
      %s13 = sadd.s32 1, %s9
    $region7: #{_lambda_.12} parent=1 // loop_footer_branch
      %8 = sbr.rel target = $region3
    $region8: #{_lambda_.12} parent=1 // loop_exit
      _

// kernel: _lambda_.13
$region0: #{_lambda_.13}
  #allocation0 [shape = 'u32[]', space=smem, size = 0x4, offset = 0x4, fixed_abs, tag = 'smem constant byte address 0x4 - core index']
  #allocation1 [shape = 'u32[144,128]{1,0:T(1,128)}', space=vmem, size = 0x12000, scoped, tag = 'internal scratch']
  #allocation2 [shape = 'f32[32,256]{1,0:T(8,128)}', space=vmem, size = 0x8000, scoped, tag = 'scratch operand']
  %s0 = inlined_call_operand.vmem [shape: bf16[32,512], index: 0, kind: input, shape index: {}]
  %s1 = inlined_call_operand.vmem [shape: bf16[512,256], index: 1, kind: input, shape index: {}]
  %s2 = inlined_call_operand.vmem [shape: f32[1,256], index: 2, kind: input, shape index: {}]
  %s3 = inlined_call_operand.vmem [shape: bf16[32,256], index: 3, kind: output, shape index: {}]
  %s4 = sld [smem:[#allocation0]]
  $region30: #{_lambda_.13} parent=0
    _
  %s6 = ssub.s32 1, %s4
  %s7 = scalar_select 0, %s6, %s4
  // Predicated region
  $region2: #{_lambda_.13} parent=0 // pred_check
    _
  $region3: #{_lambda_.13} parent=0 // pred_check_branch
    %9 = sbr.rel (0) target = $region5
  $region4: #{_lambda_.13} parent=0 // pred_region
    _
  $region5: #{_lambda_.13} parent=0 // pred_fallthru
    _
  // Predicated region
  $region6: #{_lambda_.13} parent=0 // pred_check
    _
  $region7: #{_lambda_.13} parent=0 // pred_check_branch
    %11 = sbr.rel (0) target = $region9
  $region8: #{_lambda_.13} parent=0 // pred_region
    _
  $region9: #{_lambda_.13} parent=0 // pred_fallthru
    _
  // Predicated region
  $region10: #{_lambda_.13} parent=0 // pred_check
    _
  $region11: #{_lambda_.13} parent=0 // pred_check_branch
    %13 = sbr.rel (0) target = $region13
  $region12: #{_lambda_.13} parent=0 // pred_region
    _
  $region13: #{_lambda_.13} parent=0 // pred_fallthru
    _
  %p14 = scmp.eq.s32.totalorder 0, 0
  // Predicated region
  $region14: #{_lambda_.13} parent=0 // pred_check
    %p15 = pneg %p14
  $region15: #{_lambda_.13} parent=0 // pred_check_branch
    %17 = sbr.rel (%p15) target = $region17
  $region16: #{_lambda_.13} parent=0 // pred_region
    %18 = vst [vmem:[#allocation2] sm:$0xff] 0.0
    %19 = vst [vmem:[#allocation2 + $0x8] sm:$0xff] 0.0
    %20 = vst [vmem:[#allocation2 + $0x10] sm:$0xff] 0.0
    %21 = vst [vmem:[#allocation2 + $0x18] sm:$0xff] 0.0
    %22 = vst [vmem:[#allocation2 + $0x20] sm:$0xff] 0.0
    %23 = vst [vmem:[#allocation2 + $0x28] sm:$0xff] 0.0
    %24 = vst [vmem:[#allocation2 + $0x30] sm:$0xff] 0.0
    %25 = vst [vmem:[#allocation2 + $0x38] sm:$0xff] 0.0
  $region17: #{_lambda_.13} parent=0 // pred_fallthru
    _
  %v26 = vld [vmem:[#allocation2] sm:$0xff]
  %v27 = vld [vmem:[#allocation2 + $0x8] sm:$0xff]
  %v28 = vld [vmem:[#allocation2 + $0x10] sm:$0xff]
  %v29 = vld [vmem:[#allocation2 + $0x18] sm:$0xff]
  %v30 = vld [vmem:[#allocation2 + $0x20] sm:$0xff]
  %v31 = vld [vmem:[#allocation2 + $0x28] sm:$0xff]
  %v32 = vld [vmem:[#allocation2 + $0x30] sm:$0xff]
  %v33 = vld [vmem:[#allocation2 + $0x38] sm:$0xff]
  %v34 = vld [vmem:[%s0] sm:$0xff]
  %v35 = vld [vmem:[%s0 + $0x8] sm:$0xff]
  %v36 = vld [vmem:[%s0 + $0x10] sm:$0xff]
  %v37 = vld [vmem:[%s0 + $0x18] sm:$0xff]
  %v38 = vld [vmem:[%s0 + $0x20] sm:$0xff]
  %v39 = vld [vmem:[%s0 + $0x28] sm:$0xff]
  %v40 = vld [vmem:[%s0 + $0x30] sm:$0xff]
  %v41 = vld [vmem:[%s0 + $0x38] sm:$0xff]
  %v42 = vld [vmem:[%s1] sm:$0xff]
  %v43 = vld [vmem:[%s1 + $0x8] sm:$0xff]
  %v44 = vld [vmem:[%s1 + $0x10] sm:$0xff]
  %v45 = vld [vmem:[%s1 + $0x18] sm:$0xff]
  %v46 = vld [vmem:[%s1 + $0x20] sm:$0xff]
  %v47 = vld [vmem:[%s1 + $0x28] sm:$0xff]
  %v48 = vld [vmem:[%s1 + $0x30] sm:$0xff]
  %v49 = vld [vmem:[%s1 + $0x38] sm:$0xff]
  %v50 = vld [vmem:[%s1 + $0x40] sm:$0xff]
  %v51 = vld [vmem:[%s1 + $0x48] sm:$0xff]
  %v52 = vld [vmem:[%s1 + $0x50] sm:$0xff]
  %v53 = vld [vmem:[%s1 + $0x58] sm:$0xff]
  %v54 = vld [vmem:[%s1 + $0x60] sm:$0xff]
  %v55 = vld [vmem:[%s1 + $0x68] sm:$0xff]
  %v56 = vld [vmem:[%s1 + $0x70] sm:$0xff]
  %v57 = vld [vmem:[%s1 + $0x78] sm:$0xff]
  %v58 = vld [vmem:[%s1 + $0x80] sm:$0xff]
  %v59 = vld [vmem:[%s1 + $0x88] sm:$0xff]
  %v60 = vld [vmem:[%s1 + $0x90] sm:$0xff]
  %v61 = vld [vmem:[%s1 + $0x98] sm:$0xff]
  %v62 = vld [vmem:[%s1 + $0xa0] sm:$0xff]
  %v63 = vld [vmem:[%s1 + $0xa8] sm:$0xff]
  %v64 = vld [vmem:[%s1 + $0xb0] sm:$0xff]
  %v65 = vld [vmem:[%s1 + $0xb8] sm:$0xff]
  %v66 = vld [vmem:[%s1 + $0xc0] sm:$0xff]
  %v67 = vld [vmem:[%s1 + $0xc8] sm:$0xff]
  %v68 = vld [vmem:[%s1 + $0xd0] sm:$0xff]
  %v69 = vld [vmem:[%s1 + $0xd8] sm:$0xff]
  %v70 = vld [vmem:[%s1 + $0xe0] sm:$0xff]
  %v71 = vld [vmem:[%s1 + $0xe8] sm:$0xff]
  %v72 = vld [vmem:[%s1 + $0xf0] sm:$0xff]
  %v73 = vld [vmem:[%s1 + $0xf8] sm:$0xff]
  %v74 = vld [vmem:[%s1 + $0x100] sm:$0xff]
  %v75 = vld [vmem:[%s1 + $0x108] sm:$0xff]
  %v76 = vld [vmem:[%s1 + $0x110] sm:$0xff]
  %v77 = vld [vmem:[%s1 + $0x118] sm:$0xff]
  %v78 = vld [vmem:[%s1 + $0x120] sm:$0xff]
  %v79 = vld [vmem:[%s1 + $0x128] sm:$0xff]
  %v80 = vld [vmem:[%s1 + $0x130] sm:$0xff]
  %v81 = vld [vmem:[%s1 + $0x138] sm:$0xff]
  %v82 = vld [vmem:[%s1 + $0x140] sm:$0xff]
  %v83 = vld [vmem:[%s1 + $0x148] sm:$0xff]
  %v84 = vld [vmem:[%s1 + $0x150] sm:$0xff]
  %v85 = vld [vmem:[%s1 + $0x158] sm:$0xff]
  %v86 = vld [vmem:[%s1 + $0x160] sm:$0xff]
  %v87 = vld [vmem:[%s1 + $0x168] sm:$0xff]
  %v88 = vld [vmem:[%s1 + $0x170] sm:$0xff]
  %v89 = vld [vmem:[%s1 + $0x178] sm:$0xff]
  %v90 = vld [vmem:[%s1 + $0x180] sm:$0xff]
  %v91 = vld [vmem:[%s1 + $0x188] sm:$0xff]
  %v92 = vld [vmem:[%s1 + $0x190] sm:$0xff]
  %v93 = vld [vmem:[%s1 + $0x198] sm:$0xff]
  %v94 = vld [vmem:[%s1 + $0x1a0] sm:$0xff]
  %v95 = vld [vmem:[%s1 + $0x1a8] sm:$0xff]
  %v96 = vld [vmem:[%s1 + $0x1b0] sm:$0xff]
  %v97 = vld [vmem:[%s1 + $0x1b8] sm:$0xff]
  %v98 = vld [vmem:[%s1 + $0x1c0] sm:$0xff]
  %v99 = vld [vmem:[%s1 + $0x1c8] sm:$0xff]
  %v100 = vld [vmem:[%s1 + $0x1d0] sm:$0xff]
  %v101 = vld [vmem:[%s1 + $0x1d8] sm:$0xff]
  %v102 = vld [vmem:[%s1 + $0x1e0] sm:$0xff]
  %v103 = vld [vmem:[%s1 + $0x1e8] sm:$0xff]
  %v104 = vld [vmem:[%s1 + $0x1f0] sm:$0xff]
  %v105 = vld [vmem:[%s1 + $0x1f8] sm:$0xff]
  %v114 = vunpack.c.l.b16 %v34
  %v115 = vunpack.c.h.b16 %v34
  %v116 = vunpack.c.l.b16 %v35
  %v117 = vunpack.c.h.b16 %v35
  %v118 = vunpack.c.l.b16 %v36
  %v119 = vunpack.c.h.b16 %v36
  %v120 = vunpack.c.l.b16 %v37
  %v121 = vunpack.c.h.b16 %v37
  %v122 = vunpack.c.l.b16 %v38
  %v123 = vunpack.c.h.b16 %v38
  %v124 = vunpack.c.l.b16 %v39
  %v125 = vunpack.c.h.b16 %v39
  %v126 = vunpack.c.l.b16 %v40
  %v127 = vunpack.c.h.b16 %v40
  %v128 = vunpack.c.l.b16 %v41
  %v129 = vunpack.c.h.b16 %v41
  %v130 = vpack.c.b16 %v118, %v114
  %v131 = vpack.c.b16 %v119, %v115
  %v132 = vpack.c.b16 %v120, %v116
  %v133 = vpack.c.b16 %v121, %v117
  %v134 = vpack.c.b16 %v126, %v122
  %v135 = vpack.c.b16 %v127, %v123
  %v136 = vpack.c.b16 %v128, %v124
  %v137 = vpack.c.b16 %v129, %v125
  %v210 = vunpack.c.l.b16 %v42
  %v211 = vunpack.c.h.b16 %v42
  %v212 = vunpack.c.l.b16 %v43
  %v213 = vunpack.c.h.b16 %v43
  %v214 = vunpack.c.l.b16 %v44
  %v215 = vunpack.c.h.b16 %v44
  %v216 = vunpack.c.l.b16 %v45
  %v217 = vunpack.c.h.b16 %v45
  %v218 = vunpack.c.l.b16 %v46
  %v219 = vunpack.c.h.b16 %v46
  %v220 = vunpack.c.l.b16 %v47
  %v221 = vunpack.c.h.b16 %v47
  %v222 = vunpack.c.l.b16 %v48
  %v223 = vunpack.c.h.b16 %v48
  %v224 = vunpack.c.l.b16 %v49
  %v225 = vunpack.c.h.b16 %v49
  %v226 = vunpack.c.l.b16 %v50
  %v227 = vunpack.c.h.b16 %v50
  %v228 = vunpack.c.l.b16 %v51
  %v229 = vunpack.c.h.b16 %v51
  %v230 = vunpack.c.l.b16 %v52
  %v231 = vunpack.c.h.b16 %v52
  %v232 = vunpack.c.l.b16 %v53
  %v233 = vunpack.c.h.b16 %v53
  %v234 = vunpack.c.l.b16 %v54
  %v235 = vunpack.c.h.b16 %v54
  %v236 = vunpack.c.l.b16 %v55
  %v237 = vunpack.c.h.b16 %v55
  %v238 = vunpack.c.l.b16 %v56
  %v239 = vunpack.c.h.b16 %v56
  %v240 = vunpack.c.l.b16 %v57
  %v241 = vunpack.c.h.b16 %v57
  %v242 = vunpack.c.l.b16 %v58
  %v243 = vunpack.c.h.b16 %v58
  %v244 = vunpack.c.l.b16 %v59
  %v245 = vunpack.c.h.b16 %v59
  %v246 = vunpack.c.l.b16 %v60
  %v247 = vunpack.c.h.b16 %v60
  %v248 = vunpack.c.l.b16 %v61
  %v249 = vunpack.c.h.b16 %v61
  %v250 = vunpack.c.l.b16 %v62
  %v251 = vunpack.c.h.b16 %v62
  %v252 = vunpack.c.l.b16 %v63
  %v253 = vunpack.c.h.b16 %v63
  %v254 = vunpack.c.l.b16 %v64
  %v255 = vunpack.c.h.b16 %v64
  %v256 = vunpack.c.l.b16 %v65
  %v257 = vunpack.c.h.b16 %v65
  %v258 = vunpack.c.l.b16 %v66
  %v259 = vunpack.c.h.b16 %v66
  %v260 = vunpack.c.l.b16 %v67
  %v261 = vunpack.c.h.b16 %v67
  %v262 = vunpack.c.l.b16 %v68
  %v263 = vunpack.c.h.b16 %v68
  %v264 = vunpack.c.l.b16 %v69
  %v265 = vunpack.c.h.b16 %v69
  %v266 = vunpack.c.l.b16 %v70
  %v267 = vunpack.c.h.b16 %v70
  %v268 = vunpack.c.l.b16 %v71
  %v269 = vunpack.c.h.b16 %v71
  %v270 = vunpack.c.l.b16 %v72
  %v271 = vunpack.c.h.b16 %v72
  %v272 = vunpack.c.l.b16 %v73
  %v273 = vunpack.c.h.b16 %v73
  %v274 = vunpack.c.l.b16 %v74
  %v275 = vunpack.c.h.b16 %v74
  %v276 = vunpack.c.l.b16 %v75
  %v277 = vunpack.c.h.b16 %v75
  %v278 = vunpack.c.l.b16 %v76
  %v279 = vunpack.c.h.b16 %v76
  %v280 = vunpack.c.l.b16 %v77
  %v281 = vunpack.c.h.b16 %v77
  %v282 = vunpack.c.l.b16 %v78
  %v283 = vunpack.c.h.b16 %v78
  %v284 = vunpack.c.l.b16 %v79
  %v285 = vunpack.c.h.b16 %v79
  %v286 = vunpack.c.l.b16 %v80
  %v287 = vunpack.c.h.b16 %v80
  %v288 = vunpack.c.l.b16 %v81
  %v289 = vunpack.c.h.b16 %v81
  %v290 = vunpack.c.l.b16 %v82
  %v291 = vunpack.c.h.b16 %v82
  %v292 = vunpack.c.l.b16 %v83
  %v293 = vunpack.c.h.b16 %v83
  %v294 = vunpack.c.l.b16 %v84
  %v295 = vunpack.c.h.b16 %v84
  %v296 = vunpack.c.l.b16 %v85
  %v297 = vunpack.c.h.b16 %v85
  %v298 = vunpack.c.l.b16 %v86
  %v299 = vunpack.c.h.b16 %v86
  %v300 = vunpack.c.l.b16 %v87
  %v301 = vunpack.c.h.b16 %v87
  %v302 = vunpack.c.l.b16 %v88
  %v303 = vunpack.c.h.b16 %v88
  %v304 = vunpack.c.l.b16 %v89
  %v305 = vunpack.c.h.b16 %v89
  %v306 = vunpack.c.l.b16 %v90
  %v307 = vunpack.c.h.b16 %v90
  %v308 = vunpack.c.l.b16 %v91
  %v309 = vunpack.c.h.b16 %v91
  %v310 = vunpack.c.l.b16 %v92
  %v311 = vunpack.c.h.b16 %v92
  %v312 = vunpack.c.l.b16 %v93
  %v313 = vunpack.c.h.b16 %v93
  %v314 = vunpack.c.l.b16 %v94
  %v315 = vunpack.c.h.b16 %v94
  %v316 = vunpack.c.l.b16 %v95
  %v317 = vunpack.c.h.b16 %v95
  %v318 = vunpack.c.l.b16 %v96
  %v319 = vunpack.c.h.b16 %v96
  %v320 = vunpack.c.l.b16 %v97
  %v321 = vunpack.c.h.b16 %v97
  %v322 = vunpack.c.l.b16 %v98
  %v323 = vunpack.c.h.b16 %v98
  %v324 = vunpack.c.l.b16 %v99
  %v325 = vunpack.c.h.b16 %v99
  %v326 = vunpack.c.l.b16 %v100
  %v327 = vunpack.c.h.b16 %v100
  %v328 = vunpack.c.l.b16 %v101
  %v329 = vunpack.c.h.b16 %v101
  %v330 = vunpack.c.l.b16 %v102
  %v331 = vunpack.c.h.b16 %v102
  %v332 = vunpack.c.l.b16 %v103
  %v333 = vunpack.c.h.b16 %v103
  %v334 = vunpack.c.l.b16 %v104
  %v335 = vunpack.c.h.b16 %v104
  %v336 = vunpack.c.l.b16 %v105
  %v337 = vunpack.c.h.b16 %v105
  %v338 = vpack.c.b16 %v212, %v210
  %v339 = vpack.c.b16 %v213, %v211
  %v340 = vpack.c.b16 %v216, %v214
  %v341 = vpack.c.b16 %v217, %v215
  %v342 = vpack.c.b16 %v220, %v218
  %v343 = vpack.c.b16 %v221, %v219
  %v344 = vpack.c.b16 %v224, %v222
  %v345 = vpack.c.b16 %v225, %v223
  %v346 = vpack.c.b16 %v228, %v226
  %v347 = vpack.c.b16 %v229, %v227
  %v348 = vpack.c.b16 %v232, %v230
  %v349 = vpack.c.b16 %v233, %v231
  %v350 = vpack.c.b16 %v236, %v234
  %v351 = vpack.c.b16 %v237, %v235
  %v352 = vpack.c.b16 %v240, %v238
  %v353 = vpack.c.b16 %v241, %v239
  %v354 = vpack.c.b16 %v244, %v242
  %v355 = vpack.c.b16 %v245, %v243
  %v356 = vpack.c.b16 %v248, %v246
  %v357 = vpack.c.b16 %v249, %v247
  %v358 = vpack.c.b16 %v252, %v250
  %v359 = vpack.c.b16 %v253, %v251
  %v360 = vpack.c.b16 %v256, %v254
  %v361 = vpack.c.b16 %v257, %v255
  %v362 = vpack.c.b16 %v260, %v258
  %v363 = vpack.c.b16 %v261, %v259
  %v364 = vpack.c.b16 %v264, %v262
  %v365 = vpack.c.b16 %v265, %v263
  %v366 = vpack.c.b16 %v268, %v266
  %v367 = vpack.c.b16 %v269, %v267
  %v368 = vpack.c.b16 %v272, %v270
  %v369 = vpack.c.b16 %v273, %v271
  %v370 = vpack.c.b16 %v276, %v274
  %v371 = vpack.c.b16 %v277, %v275
  %v372 = vpack.c.b16 %v280, %v278
  %v373 = vpack.c.b16 %v281, %v279
  %v374 = vpack.c.b16 %v284, %v282
  %v375 = vpack.c.b16 %v285, %v283
  %v376 = vpack.c.b16 %v288, %v286
  %v377 = vpack.c.b16 %v289, %v287
  %v378 = vpack.c.b16 %v292, %v290
  %v379 = vpack.c.b16 %v293, %v291
  %v380 = vpack.c.b16 %v296, %v294
  %v381 = vpack.c.b16 %v297, %v295
  %v382 = vpack.c.b16 %v300, %v298
  %v383 = vpack.c.b16 %v301, %v299
  %v384 = vpack.c.b16 %v304, %v302
  %v385 = vpack.c.b16 %v305, %v303
  %v386 = vpack.c.b16 %v308, %v306
  %v387 = vpack.c.b16 %v309, %v307
  %v388 = vpack.c.b16 %v312, %v310
  %v389 = vpack.c.b16 %v313, %v311
  %v390 = vpack.c.b16 %v316, %v314
  %v391 = vpack.c.b16 %v317, %v315
  %v392 = vpack.c.b16 %v320, %v318
  %v393 = vpack.c.b16 %v321, %v319
  %v394 = vpack.c.b16 %v324, %v322
  %v395 = vpack.c.b16 %v325, %v323
  %v396 = vpack.c.b16 %v328, %v326
  %v397 = vpack.c.b16 %v329, %v327
  %v398 = vpack.c.b16 %v332, %v330
  %v399 = vpack.c.b16 %v333, %v331
  %v400 = vpack.c.b16 %v336, %v334
  %v401 = vpack.c.b16 %v337, %v335
  %466 = vmatprep.subr.bf16.mxu0 %v353
  %467 = vmatpush1.bf16.msra.mxu0 %v352
  %468 = vmatprep.subr.bf16.mxu0 %v351
  %469 = vmatpush1.bf16.msra.mxu0 %v350
  %470 = vmatprep.subr.bf16.mxu0 %v349
  %471 = vmatpush1.bf16.msra.mxu0 %v348
  %472 = vmatprep.subr.bf16.mxu0 %v347
  %473 = vmatpush1.bf16.msra.mxu0 %v346
  %474 = vmatprep.subr.bf16.mxu0 %v345
  %475 = vmatpush1.bf16.msra.mxu0 %v344
  %476 = vmatprep.subr.bf16.mxu0 %v343
  %477 = vmatpush1.bf16.msra.mxu0 %v342
  %478 = vmatprep.subr.bf16.mxu0 %v341
  %479 = vmatpush1.bf16.msra.mxu0 %v340
  %480 = vmatprep.subr.bf16.mxu0 %v339
  %481 = vmatpush1.bf16.msra.mxu0 %v338
  %482 = vmatprep.subr.bf16.mxu0 %v369
  %483 = vmatpush2.bf16.msra.mxu0 %v368
  %484 = vmatprep.subr.bf16.mxu0 %v367
  %485 = vmatpush2.bf16.msra.mxu0 %v366
  %486 = vmatprep.subr.bf16.mxu0 %v365
  %487 = vmatpush2.bf16.msra.mxu0 %v364
  %488 = vmatprep.subr.bf16.mxu0 %v363
  %489 = vmatpush2.bf16.msra.mxu0 %v362
  %490 = vmatprep.subr.bf16.mxu0 %v361
  %491 = vmatpush2.bf16.msra.mxu0 %v360
  %492 = vmatprep.subr.bf16.mxu0 %v359
  %493 = vmatpush2.bf16.msra.mxu0 %v358
  %494 = vmatprep.subr.bf16.mxu0 %v357
  %495 = vmatpush2.bf16.msra.mxu0 %v356
  %496 = vmatprep.subr.bf16.mxu0 %v355
  %497 = vmatpush2.bf16.msra.mxu0 %v354
  %498 = vmatprep.mubr.bf16.mxu0 %v131
  %499 = vmatmul.mubr.bf16.gmra.mxu0 %v130
  %v500 = vpop.f32.mrf.mxu0
  %v501 = vadd.f32 0.0, %v500
  %v502 = vpop.f32.mrf.mxu0
  %v503 = vadd.f32 0.0, %v502
  %v504 = vpop.f32.mrf.mxu0
  %v505 = vadd.f32 0.0, %v504
  %v506 = vpop.f32.mrf.mxu0
  %v507 = vadd.f32 0.0, %v506
  %508 = vmatprep.mubr.bf16.mxu0 %v135
  %509 = vmatmul.mubr.bf16.gmra.mxu0 %v134
  %v510 = vpop.f32.mrf.mxu0
  %v511 = vadd.f32 0.0, %v510
  %v512 = vpop.f32.mrf.mxu0
  %v513 = vadd.f32 0.0, %v512
  %v514 = vpop.f32.mrf.mxu0
  %v515 = vadd.f32 0.0, %v514
  %v516 = vpop.f32.mrf.mxu0
  %v517 = vadd.f32 0.0, %v516
  %518 = vdwg.mxu0
  %519 = vmatprep.subr.bf16.mxu0 %v385
  %520 = vmatpush1.bf16.msra.mxu0 %v384
  %521 = vmatprep.subr.bf16.mxu0 %v383
  %522 = vmatpush1.bf16.msra.mxu0 %v382
  %523 = vmatprep.subr.bf16.mxu0 %v381
  %524 = vmatpush1.bf16.msra.mxu0 %v380
  %525 = vmatprep.subr.bf16.mxu0 %v379
  %526 = vmatpush1.bf16.msra.mxu0 %v378
  %527 = vmatprep.subr.bf16.mxu0 %v377
  %528 = vmatpush1.bf16.msra.mxu0 %v376
  %529 = vmatprep.subr.bf16.mxu0 %v375
  %530 = vmatpush1.bf16.msra.mxu0 %v374
  %531 = vmatprep.subr.bf16.mxu0 %v373
  %532 = vmatpush1.bf16.msra.mxu0 %v372
  %533 = vmatprep.subr.bf16.mxu0 %v371
  %534 = vmatpush1.bf16.msra.mxu0 %v370
  %535 = vmatprep.subr.bf16.mxu0 %v401
  %536 = vmatpush2.bf16.msra.mxu0 %v400
  %537 = vmatprep.subr.bf16.mxu0 %v399
  %538 = vmatpush2.bf16.msra.mxu0 %v398
  %539 = vmatprep.subr.bf16.mxu0 %v397
  %540 = vmatpush2.bf16.msra.mxu0 %v396
  %541 = vmatprep.subr.bf16.mxu0 %v395
  %542 = vmatpush2.bf16.msra.mxu0 %v394
  %543 = vmatprep.subr.bf16.mxu0 %v393
  %544 = vmatpush2.bf16.msra.mxu0 %v392
  %545 = vmatprep.subr.bf16.mxu0 %v391
  %546 = vmatpush2.bf16.msra.mxu0 %v390
  %547 = vmatprep.subr.bf16.mxu0 %v389
  %548 = vmatpush2.bf16.msra.mxu0 %v388
  %549 = vmatprep.subr.bf16.mxu0 %v387
  %550 = vmatpush2.bf16.msra.mxu0 %v386
  %551 = vmatprep.mubr.bf16.mxu0 %v133
  %552 = vmatmul.mubr.bf16.gmra.mxu0 %v132
  %v553 = vpop.f32.mrf.mxu0
  %v554 = vadd.f32 %v501, %v553
  %v555 = vpop.f32.mrf.mxu0
  %v556 = vadd.f32 %v503, %v555
  %v557 = vpop.f32.mrf.mxu0
  %v558 = vadd.f32 %v505, %v557
  %v559 = vpop.f32.mrf.mxu0
  %v560 = vadd.f32 %v507, %v559
  %561 = vmatprep.mubr.bf16.mxu0 %v137
  %562 = vmatmul.mubr.bf16.gmra.mxu0 %v136
  %v563 = vpop.f32.mrf.mxu0
  %v564 = vadd.f32 %v511, %v563
  %v565 = vpop.f32.mrf.mxu0
  %v566 = vadd.f32 %v513, %v565
  %v567 = vpop.f32.mrf.mxu0
  %v568 = vadd.f32 %v515, %v567
  %v569 = vpop.f32.mrf.mxu0
  %v570 = vadd.f32 %v517, %v569
  %571 = vdwg.mxu0
  %v572 = vadd.f32 %v26, %v554
  %v573 = vadd.f32 %v27, %v556
  %v574 = vadd.f32 %v28, %v558
  %v575 = vadd.f32 %v29, %v560
  %v576 = vadd.f32 %v30, %v564
  %v577 = vadd.f32 %v31, %v566
  %v578 = vadd.f32 %v32, %v568
  %v579 = vadd.f32 %v33, %v570
  %580 = vst [vmem:[#allocation2] sm:$0xff] %v572
  %581 = vst [vmem:[#allocation2 + $0x8] sm:$0xff] %v573
  %582 = vst [vmem:[#allocation2 + $0x10] sm:$0xff] %v574
  %583 = vst [vmem:[#allocation2 + $0x18] sm:$0xff] %v575
  %584 = vst [vmem:[#allocation2 + $0x20] sm:$0xff] %v576
  %585 = vst [vmem:[#allocation2 + $0x28] sm:$0xff] %v577
  %586 = vst [vmem:[#allocation2 + $0x30] sm:$0xff] %v578
  %587 = vst [vmem:[#allocation2 + $0x38] sm:$0xff] %v579
  // Predicated region
  $region18: #{_lambda_.13} parent=0 // pred_check
    %p588 = pneg %p14
  $region19: #{_lambda_.13} parent=0 // pred_check_branch
    %590 = sbr.rel (%p588) target = $region21
  $region20: #{_lambda_.13} parent=0 // pred_region
    %v591 = vld [vmem:[#allocation2] sm:$0xff]
    %v592 = vld [vmem:[#allocation2 + $0x8] sm:$0xff]
    %v593 = vld [vmem:[#allocation2 + $0x10] sm:$0xff]
    %v594 = vld [vmem:[#allocation2 + $0x18] sm:$0xff]
    %v595 = vld [vmem:[#allocation2 + $0x20] sm:$0xff]
    %v596 = vld [vmem:[#allocation2 + $0x28] sm:$0xff]
    %v597 = vld [vmem:[#allocation2 + $0x30] sm:$0xff]
    %v598 = vld [vmem:[#allocation2 + $0x38] sm:$0xff]
    %v599 = vld [vmem:[%s2] sm:$0x3]
    %v601 = vlaneseq
    %v602 = vshrl.u32 %v601, 7
    %v603 = vsub.s32 0, %v602
    %v604 = vrot.slane %v599, %v603
    %v605 = vlaneseq
    %v606 = vshrl.u32 %v605, 7
    %v607 = vsub.s32 1, %v606
    %v608 = vrot.slane %v599, %v607
    %v611 = vadd.f32 %v591, %v604
    %v612 = vadd.f32 %v592, %v608
    %v613 = vadd.f32 %v593, %v604
    %v614 = vadd.f32 %v594, %v608
    %v615 = vadd.f32 %v595, %v604
    %v616 = vadd.f32 %v596, %v608
    %v617 = vadd.f32 %v597, %v604
    %v618 = vadd.f32 %v598, %v608
    %v619 = vmax.f32 %v611, 0.0
    %v620 = vmax.f32 %v612, 0.0
    %v621 = vmax.f32 %v613, 0.0
    %v622 = vmax.f32 %v614, 0.0
    %v623 = vmax.f32 %v615, 0.0
    %v624 = vmax.f32 %v616, 0.0
    %v625 = vmax.f32 %v617, 0.0
    %v626 = vmax.f32 %v618, 0.0
    %v627 = vpack.c.bf16 %v621, %v619
    %v628 = vpack.c.bf16 %v622, %v620
    %v629 = vpack.c.bf16 %v625, %v623
    %v630 = vpack.c.bf16 %v626, %v624
    %v635 = vunpack.c.l.b16 %v627
    %v636 = vunpack.c.l.b16 %v628
    %v637 = vunpack.c.h.b16 %v627
    %v638 = vunpack.c.h.b16 %v628
    %v639 = vunpack.c.l.b16 %v629
    %v640 = vunpack.c.l.b16 %v630
    %v641 = vunpack.c.h.b16 %v629
    %v642 = vunpack.c.h.b16 %v630
    %v643 = vpack.c.b16 %v636, %v635
    %v644 = vpack.c.b16 %v638, %v637
    %v645 = vpack.c.b16 %v640, %v639
    %v646 = vpack.c.b16 %v642, %v641
    %651 = vst [vmem:[%s3] sm:$0xff] %v643
    %652 = vst [vmem:[%s3 + $0x8] sm:$0xff] %v644
    %653 = vst [vmem:[%s3 + $0x10] sm:$0xff] %v645
    %654 = vst [vmem:[%s3 + $0x18] sm:$0xff] %v646
  $region21: #{_lambda_.13} parent=0 // pred_fallthru
    _
  // Predicated region
  $region22: #{_lambda_.13} parent=0 // pred_check
    _
  $region23: #{_lambda_.13} parent=0 // pred_check_branch
    %656 = sbr.rel (0) target = $region25
  $region24: #{_lambda_.13} parent=0 // pred_region
    _
  $region25: #{_lambda_.13} parent=0 // pred_fallthru
    _
  // Predicated region
  $region26: #{_lambda_.13} parent=0 // pred_check
    _
  $region27: #{_lambda_.13} parent=0 // pred_check_branch
    %658 = sbr.rel (0) target = $region29
  $region28: #{_lambda_.13} parent=0 // pred_region
    _
  $region29: #{_lambda_.13} parent=0 // pred_fallthru
    _

// kernel: _lambda_.14
$region0: #{_lambda_.14}
  #allocation0 [shape = 'u32[]', space=smem, size = 0x4, offset = 0x4, fixed_abs, tag = 'smem constant byte address 0x4 - core index']
  #allocation1 [shape = 'u32[144,128]{1,0:T(1,128)}', space=vmem, size = 0x12000, scoped, tag = 'internal scratch']
  #allocation2 [shape = 'f32[64,128]{1,0:T(8,128)}', space=vmem, size = 0x8000, scoped, tag = 'scratch operand']
  %s0 = inlined_call_operand.vmem [shape: bf16[64,256], index: 0, kind: input, shape index: {}]
  %s1 = inlined_call_operand.vmem [shape: bf16[256,128], index: 1, kind: input, shape index: {}]
  %s2 = inlined_call_operand.vmem [shape: f32[1,128], index: 2, kind: input, shape index: {}]
  %s3 = inlined_call_operand.vmem [shape: bf16[64,128], index: 3, kind: output, shape index: {}]
  %s4 = sld [smem:[#allocation0]]
  $region30: #{_lambda_.14} parent=0
    _
  %s6 = ssub.s32 1, %s4
  %s7 = scalar_select 0, %s6, %s4
  // Predicated region
  $region2: #{_lambda_.14} parent=0 // pred_check
    _
  $region3: #{_lambda_.14} parent=0 // pred_check_branch
    %9 = sbr.rel (0) target = $region5
  $region4: #{_lambda_.14} parent=0 // pred_region
    _
  $region5: #{_lambda_.14} parent=0 // pred_fallthru
    _
  // Predicated region
  $region6: #{_lambda_.14} parent=0 // pred_check
    _
  $region7: #{_lambda_.14} parent=0 // pred_check_branch
    %11 = sbr.rel (0) target = $region9
  $region8: #{_lambda_.14} parent=0 // pred_region
    _
  $region9: #{_lambda_.14} parent=0 // pred_fallthru
    _
  // Predicated region
  $region10: #{_lambda_.14} parent=0 // pred_check
    _
  $region11: #{_lambda_.14} parent=0 // pred_check_branch
    %13 = sbr.rel (0) target = $region13
  $region12: #{_lambda_.14} parent=0 // pred_region
    _
  $region13: #{_lambda_.14} parent=0 // pred_fallthru
    _
  %p15 = scmp.eq.s32.totalorder 0, 0
  // Predicated region
  $region14: #{_lambda_.14} parent=0 // pred_check
    %p16 = pneg %p15
  $region15: #{_lambda_.14} parent=0 // pred_check_branch
    %18 = sbr.rel (%p16) target = $region17
  $region16: #{_lambda_.14} parent=0 // pred_region
    %19 = vst [vmem:[#allocation2] sm:$0xff] 0.0
    %20 = vst [vmem:[#allocation2 + $0x8] sm:$0xff] 0.0
    %21 = vst [vmem:[#allocation2 + $0x10] sm:$0xff] 0.0
    %22 = vst [vmem:[#allocation2 + $0x18] sm:$0xff] 0.0
    %23 = vst [vmem:[#allocation2 + $0x20] sm:$0xff] 0.0
    %24 = vst [vmem:[#allocation2 + $0x28] sm:$0xff] 0.0
    %25 = vst [vmem:[#allocation2 + $0x30] sm:$0xff] 0.0
    %26 = vst [vmem:[#allocation2 + $0x38] sm:$0xff] 0.0
  $region17: #{_lambda_.14} parent=0 // pred_fallthru
    _
  %v27 = vld [vmem:[#allocation2] sm:$0xff]
  %v28 = vld [vmem:[#allocation2 + $0x8] sm:$0xff]
  %v29 = vld [vmem:[#allocation2 + $0x10] sm:$0xff]
  %v30 = vld [vmem:[#allocation2 + $0x18] sm:$0xff]
  %v31 = vld [vmem:[#allocation2 + $0x20] sm:$0xff]
  %v32 = vld [vmem:[#allocation2 + $0x28] sm:$0xff]
  %v33 = vld [vmem:[#allocation2 + $0x30] sm:$0xff]
  %v34 = vld [vmem:[#allocation2 + $0x38] sm:$0xff]
  %v35 = vld [vmem:[%s0] sm:$0xff]
  %v36 = vld [vmem:[%s0 + $0x8] sm:$0xff]
  %v37 = vld [vmem:[%s0 + $0x10] sm:$0xff]
  %v38 = vld [vmem:[%s0 + $0x18] sm:$0xff]
  %v39 = vld [vmem:[%s0 + $0x20] sm:$0xff]
  %v40 = vld [vmem:[%s0 + $0x28] sm:$0xff]
  %v41 = vld [vmem:[%s0 + $0x30] sm:$0xff]
  %v42 = vld [vmem:[%s0 + $0x38] sm:$0xff]
  %v43 = vld [vmem:[%s1] sm:$0xf]
  %v44 = vld [vmem:[%s1 + $0x4] sm:$0xf]
  %v45 = vld [vmem:[%s1 + $0x8] sm:$0xf]
  %v46 = vld [vmem:[%s1 + $0xc] sm:$0xf]
  %v47 = vld [vmem:[%s1 + $0x10] sm:$0xf]
  %v48 = vld [vmem:[%s1 + $0x14] sm:$0xf]
  %v49 = vld [vmem:[%s1 + $0x18] sm:$0xf]
  %v50 = vld [vmem:[%s1 + $0x1c] sm:$0xf]
  %v51 = vld [vmem:[%s1 + $0x20] sm:$0xf]
  %v52 = vld [vmem:[%s1 + $0x24] sm:$0xf]
  %v53 = vld [vmem:[%s1 + $0x28] sm:$0xf]
  %v54 = vld [vmem:[%s1 + $0x2c] sm:$0xf]
  %v55 = vld [vmem:[%s1 + $0x30] sm:$0xf]
  %v56 = vld [vmem:[%s1 + $0x34] sm:$0xf]
  %v57 = vld [vmem:[%s1 + $0x38] sm:$0xf]
  %v58 = vld [vmem:[%s1 + $0x3c] sm:$0xf]
  %v59 = vld [vmem:[%s1 + $0x40] sm:$0xf]
  %v60 = vld [vmem:[%s1 + $0x44] sm:$0xf]
  %v61 = vld [vmem:[%s1 + $0x48] sm:$0xf]
  %v62 = vld [vmem:[%s1 + $0x4c] sm:$0xf]
  %v63 = vld [vmem:[%s1 + $0x50] sm:$0xf]
  %v64 = vld [vmem:[%s1 + $0x54] sm:$0xf]
  %v65 = vld [vmem:[%s1 + $0x58] sm:$0xf]
  %v66 = vld [vmem:[%s1 + $0x5c] sm:$0xf]
  %v67 = vld [vmem:[%s1 + $0x60] sm:$0xf]
  %v68 = vld [vmem:[%s1 + $0x64] sm:$0xf]
  %v69 = vld [vmem:[%s1 + $0x68] sm:$0xf]
  %v70 = vld [vmem:[%s1 + $0x6c] sm:$0xf]
  %v71 = vld [vmem:[%s1 + $0x70] sm:$0xf]
  %v72 = vld [vmem:[%s1 + $0x74] sm:$0xf]
  %v73 = vld [vmem:[%s1 + $0x78] sm:$0xf]
  %v74 = vld [vmem:[%s1 + $0x7c] sm:$0xf]
  %v83 = vunpack.c.l.b16 %v35
  %v84 = vunpack.c.h.b16 %v35
  %v85 = vunpack.c.l.b16 %v36
  %v86 = vunpack.c.h.b16 %v36
  %v87 = vunpack.c.l.b16 %v37
  %v88 = vunpack.c.h.b16 %v37
  %v89 = vunpack.c.l.b16 %v38
  %v90 = vunpack.c.h.b16 %v38
  %v91 = vunpack.c.l.b16 %v39
  %v92 = vunpack.c.h.b16 %v39
  %v93 = vunpack.c.l.b16 %v40
  %v94 = vunpack.c.h.b16 %v40
  %v95 = vunpack.c.l.b16 %v41
  %v96 = vunpack.c.h.b16 %v41
  %v97 = vunpack.c.l.b16 %v42
  %v98 = vunpack.c.h.b16 %v42
  %v99 = vpack.c.b16 %v85, %v83
  %v100 = vpack.c.b16 %v86, %v84
  %v101 = vpack.c.b16 %v89, %v87
  %v102 = vpack.c.b16 %v90, %v88
  %v103 = vpack.c.b16 %v93, %v91
  %v104 = vpack.c.b16 %v94, %v92
  %v105 = vpack.c.b16 %v97, %v95
  %v106 = vpack.c.b16 %v98, %v96
  %v147 = vunpack.c.l.b16 %v43
  %v148 = vunpack.c.l.b16 %v44
  %v149 = vunpack.c.l.b16 %v45
  %v150 = vunpack.c.l.b16 %v46
  %v151 = vunpack.c.l.b16 %v47
  %v152 = vunpack.c.l.b16 %v48
  %v153 = vunpack.c.l.b16 %v49
  %v154 = vunpack.c.l.b16 %v50
  %v155 = vunpack.c.l.b16 %v51
  %v156 = vunpack.c.l.b16 %v52
  %v157 = vunpack.c.l.b16 %v53
  %v158 = vunpack.c.l.b16 %v54
  %v159 = vunpack.c.l.b16 %v55
  %v160 = vunpack.c.l.b16 %v56
  %v161 = vunpack.c.l.b16 %v57
  %v162 = vunpack.c.l.b16 %v58
  %v163 = vunpack.c.l.b16 %v59
  %v164 = vunpack.c.l.b16 %v60
  %v165 = vunpack.c.l.b16 %v61
  %v166 = vunpack.c.l.b16 %v62
  %v167 = vunpack.c.l.b16 %v63
  %v168 = vunpack.c.l.b16 %v64
  %v169 = vunpack.c.l.b16 %v65
  %v170 = vunpack.c.l.b16 %v66
  %v171 = vunpack.c.l.b16 %v67
  %v172 = vunpack.c.l.b16 %v68
  %v173 = vunpack.c.l.b16 %v69
  %v174 = vunpack.c.l.b16 %v70
  %v175 = vunpack.c.l.b16 %v71
  %v176 = vunpack.c.l.b16 %v72
  %v177 = vunpack.c.l.b16 %v73
  %v178 = vunpack.c.l.b16 %v74
  %v179 = vpack.c.b16 %v148, %v147
  %v180 = vpack.c.b16 %v150, %v149
  %v181 = vpack.c.b16 %v152, %v151
  %v182 = vpack.c.b16 %v154, %v153
  %v183 = vpack.c.b16 %v156, %v155
  %v184 = vpack.c.b16 %v158, %v157
  %v185 = vpack.c.b16 %v160, %v159
  %v186 = vpack.c.b16 %v162, %v161
  %v187 = vpack.c.b16 %v164, %v163
  %v188 = vpack.c.b16 %v166, %v165
  %v189 = vpack.c.b16 %v168, %v167
  %v190 = vpack.c.b16 %v170, %v169
  %v191 = vpack.c.b16 %v172, %v171
  %v192 = vpack.c.b16 %v174, %v173
  %v193 = vpack.c.b16 %v176, %v175
  %v194 = vpack.c.b16 %v178, %v177
  %211 = vmatprep.subr.bf16.mxu0 0
  %212 = vmatpush1.bf16.msra.mxu0 %v186
  %213 = vmatprep.subr.bf16.mxu0 0
  %214 = vmatpush1.bf16.msra.mxu0 %v185
  %215 = vmatprep.subr.bf16.mxu0 0
  %216 = vmatpush1.bf16.msra.mxu0 %v184
  %217 = vmatprep.subr.bf16.mxu0 0
  %218 = vmatpush1.bf16.msra.mxu0 %v183
  %219 = vmatprep.subr.bf16.mxu0 0
  %220 = vmatpush1.bf16.msra.mxu0 %v182
  %221 = vmatprep.subr.bf16.mxu0 0
  %222 = vmatpush1.bf16.msra.mxu0 %v181
  %223 = vmatprep.subr.bf16.mxu0 0
  %224 = vmatpush1.bf16.msra.mxu0 %v180
  %225 = vmatprep.subr.bf16.mxu0 0
  %226 = vmatpush1.bf16.msra.mxu0 %v179
  %227 = vmatprep.subr.bf16.mxu0 0
  %228 = vmatpush2.bf16.msra.mxu0 %v194
  %229 = vmatprep.subr.bf16.mxu0 0
  %230 = vmatpush2.bf16.msra.mxu0 %v193
  %231 = vmatprep.subr.bf16.mxu0 0
  %232 = vmatpush2.bf16.msra.mxu0 %v192
  %233 = vmatprep.subr.bf16.mxu0 0
  %234 = vmatpush2.bf16.msra.mxu0 %v191
  %235 = vmatprep.subr.bf16.mxu0 0
  %236 = vmatpush2.bf16.msra.mxu0 %v190
  %237 = vmatprep.subr.bf16.mxu0 0
  %238 = vmatpush2.bf16.msra.mxu0 %v189
  %239 = vmatprep.subr.bf16.mxu0 0
  %240 = vmatpush2.bf16.msra.mxu0 %v188
  %241 = vmatprep.subr.bf16.mxu0 0
  %242 = vmatpush2.bf16.msra.mxu0 %v187
  %243 = vmatprep.mubr.bf16.mxu0 %v100
  %244 = vmatmul.mubr.bf16.gmra.mxu0 %v99
  %v245 = vpop.f32.mrf.mxu0
  %v246 = vadd.f32 0.0, %v245
  %v247 = vpop.f32.mrf.mxu0
  %v248 = vpop.f32.mrf.mxu0
  %v249 = vadd.f32 0.0, %v248
  %v250 = vpop.f32.mrf.mxu0
  %251 = vmatprep.mubr.bf16.mxu0 %v102
  %252 = vmatmul.mubr.bf16.gmra.mxu0 %v101
  %v253 = vpop.f32.mrf.mxu0
  %v254 = vadd.f32 0.0, %v253
  %v255 = vpop.f32.mrf.mxu0
  %v256 = vpop.f32.mrf.mxu0
  %v257 = vadd.f32 0.0, %v256
  %v258 = vpop.f32.mrf.mxu0
  %259 = vmatprep.mubr.bf16.mxu0 %v104
  %260 = vmatmul.mubr.bf16.gmra.mxu0 %v103
  %v261 = vpop.f32.mrf.mxu0
  %v262 = vadd.f32 0.0, %v261
  %v263 = vpop.f32.mrf.mxu0
  %v264 = vpop.f32.mrf.mxu0
  %v265 = vadd.f32 0.0, %v264
  %v266 = vpop.f32.mrf.mxu0
  %267 = vmatprep.mubr.bf16.mxu0 %v106
  %268 = vmatmul.mubr.bf16.gmra.mxu0 %v105
  %v269 = vpop.f32.mrf.mxu0
  %v270 = vadd.f32 0.0, %v269
  %v271 = vpop.f32.mrf.mxu0
  %v272 = vpop.f32.mrf.mxu0
  %v273 = vadd.f32 0.0, %v272
  %v274 = vpop.f32.mrf.mxu0
  %275 = vdwg.mxu0
  %v276 = vadd.f32 %v27, %v246
  %v277 = vadd.f32 %v28, %v249
  %v278 = vadd.f32 %v29, %v254
  %v279 = vadd.f32 %v30, %v257
  %v280 = vadd.f32 %v31, %v262
  %v281 = vadd.f32 %v32, %v265
  %v282 = vadd.f32 %v33, %v270
  %v283 = vadd.f32 %v34, %v273
  %284 = vst [vmem:[#allocation2] sm:$0xff] %v276
  %285 = vst [vmem:[#allocation2 + $0x8] sm:$0xff] %v277
  %286 = vst [vmem:[#allocation2 + $0x10] sm:$0xff] %v278
  %287 = vst [vmem:[#allocation2 + $0x18] sm:$0xff] %v279
  %288 = vst [vmem:[#allocation2 + $0x20] sm:$0xff] %v280
  %289 = vst [vmem:[#allocation2 + $0x28] sm:$0xff] %v281
  %290 = vst [vmem:[#allocation2 + $0x30] sm:$0xff] %v282
  %291 = vst [vmem:[#allocation2 + $0x38] sm:$0xff] %v283
  // Predicated region
  $region18: #{_lambda_.14} parent=0 // pred_check
    %p292 = pneg %p15
  $region19: #{_lambda_.14} parent=0 // pred_check_branch
    %294 = sbr.rel (%p292) target = $region21
  $region20: #{_lambda_.14} parent=0 // pred_region
    %v295 = vld [vmem:[#allocation2] sm:$0xff]
    %v296 = vld [vmem:[#allocation2 + $0x8] sm:$0xff]
    %v297 = vld [vmem:[#allocation2 + $0x10] sm:$0xff]
    %v298 = vld [vmem:[#allocation2 + $0x18] sm:$0xff]
    %v299 = vld [vmem:[#allocation2 + $0x20] sm:$0xff]
    %v300 = vld [vmem:[#allocation2 + $0x28] sm:$0xff]
    %v301 = vld [vmem:[#allocation2 + $0x30] sm:$0xff]
    %v302 = vld [vmem:[#allocation2 + $0x38] sm:$0xff]
    %v303 = vld [vmem:[%s2] sm:$0x1]
    %v305 = vlaneseq
    %v306 = vshrl.u32 %v305, 7
    %v307 = vsub.s32 0, %v306
    %v308 = vrot.slane %v303, %v307
    %v310 = vadd.f32 %v295, %v308
    %v311 = vadd.f32 %v296, %v308
    %v312 = vadd.f32 %v297, %v308
    %v313 = vadd.f32 %v298, %v308
    %v314 = vadd.f32 %v299, %v308
    %v315 = vadd.f32 %v300, %v308
    %v316 = vadd.f32 %v301, %v308
    %v317 = vadd.f32 %v302, %v308
    %v318 = vmax.f32 %v310, 0.0
    %v319 = vmax.f32 %v311, 0.0
    %v320 = vmax.f32 %v312, 0.0
    %v321 = vmax.f32 %v313, 0.0
    %v322 = vmax.f32 %v314, 0.0
    %v323 = vmax.f32 %v315, 0.0
    %v324 = vmax.f32 %v316, 0.0
    %v325 = vmax.f32 %v317, 0.0
    %v326 = vpack.c.bf16 %v319, %v318
    %v327 = vpack.c.bf16 %v321, %v320
    %v328 = vpack.c.bf16 %v323, %v322
    %v329 = vpack.c.bf16 %v325, %v324
    %v334 = vunpack.c.l.b16 %v326
    %v335 = vunpack.c.h.b16 %v326
    %v336 = vunpack.c.l.b16 %v327
    %v337 = vunpack.c.h.b16 %v327
    %v338 = vunpack.c.l.b16 %v328
    %v339 = vunpack.c.h.b16 %v328
    %v340 = vunpack.c.l.b16 %v329
    %v341 = vunpack.c.h.b16 %v329
    %v342 = vpack.c.b16 %v334, %v334
    %v343 = vpack.c.b16 %v335, %v335
    %v344 = vpack.c.b16 %v336, %v336
    %v345 = vpack.c.b16 %v337, %v337
    %v346 = vpack.c.b16 %v338, %v338
    %v347 = vpack.c.b16 %v339, %v339
    %v348 = vpack.c.b16 %v340, %v340
    %v349 = vpack.c.b16 %v341, %v341
    %358 = vst [vmem:[%s3] sm:$0xf] %v342
    %359 = vst [vmem:[%s3 + $0x4] sm:$0xf] %v343
    %360 = vst [vmem:[%s3 + $0x8] sm:$0xf] %v344
    %361 = vst [vmem:[%s3 + $0xc] sm:$0xf] %v345
    %362 = vst [vmem:[%s3 + $0x10] sm:$0xf] %v346
    %363 = vst [vmem:[%s3 + $0x14] sm:$0xf] %v347
    %364 = vst [vmem:[%s3 + $0x18] sm:$0xf] %v348
    %365 = vst [vmem:[%s3 + $0x1c] sm:$0xf] %v349
  $region21: #{_lambda_.14} parent=0 // pred_fallthru
    _
  // Predicated region
  $region22: #{_lambda_.14} parent=0 // pred_check
    _
  $region23: #{_lambda_.14} parent=0 // pred_check_branch
    %367 = sbr.rel (0) target = $region25
  $region24: #{_lambda_.14} parent=0 // pred_region
    _
  $region25: #{_lambda_.14} parent=0 // pred_fallthru
    _
  // Predicated region
  $region26: #{_lambda_.14} parent=0 // pred_check
    _
  $region27: #{_lambda_.14} parent=0 // pred_check_branch
    %369 = sbr.rel (0) target = $region29
  $region28: #{_lambda_.14} parent=0 // pred_region
    _
  $region29: #{_lambda_.14} parent=0 // pred_fallthru
    _

// kernel: _lambda_.15
$region0: #{_lambda_.15}
  #allocation0 [shape = 'u32[]', space=smem, size = 0x4, offset = 0x4, fixed_abs, tag = 'smem constant byte address 0x4 - core index']
  #allocation1 [shape = 'u32[144,128]{1,0:T(1,128)}', space=vmem, size = 0x12000, scoped, tag = 'internal scratch']
  #allocation2 [shape = 'f32[176,16]{1,0:T(8,128)}', space=vmem, size = 0x16000, scoped, tag = 'scratch operand']
  %s0 = inlined_call_operand.vmem [shape: bf16[176,128], index: 0, kind: input, shape index: {}]
  %s1 = inlined_call_operand.vmem [shape: bf16[128,16], index: 1, kind: input, shape index: {}]
  %s2 = inlined_call_operand.vmem [shape: f32[1,16], index: 2, kind: input, shape index: {}]
  %s3 = inlined_call_operand.vmem [shape: f32[176,16], index: 3, kind: output, shape index: {}]
  %s4 = sld [smem:[#allocation0]]
  $region30: #{_lambda_.15} parent=0
    _
  %s6 = ssub.s32 1, %s4
  %s7 = scalar_select 0, %s6, %s4
  // Predicated region
  $region2: #{_lambda_.15} parent=0 // pred_check
    _
  $region3: #{_lambda_.15} parent=0 // pred_check_branch
    %9 = sbr.rel (0) target = $region5
  $region4: #{_lambda_.15} parent=0 // pred_region
    _
  $region5: #{_lambda_.15} parent=0 // pred_fallthru
    _
  // Predicated region
  $region6: #{_lambda_.15} parent=0 // pred_check
    _
  $region7: #{_lambda_.15} parent=0 // pred_check_branch
    %11 = sbr.rel (0) target = $region9
  $region8: #{_lambda_.15} parent=0 // pred_region
    _
  $region9: #{_lambda_.15} parent=0 // pred_fallthru
    _
  // Predicated region
  $region10: #{_lambda_.15} parent=0 // pred_check
    _
  $region11: #{_lambda_.15} parent=0 // pred_check_branch
    %13 = sbr.rel (0) target = $region13
  $region12: #{_lambda_.15} parent=0 // pred_region
    _
  $region13: #{_lambda_.15} parent=0 // pred_fallthru
    _
  %p15 = scmp.eq.s32.totalorder 0, 0
  // Predicated region
  $region14: #{_lambda_.15} parent=0 // pred_check
    %p16 = pneg %p15
  $region15: #{_lambda_.15} parent=0 // pred_check_branch
    %18 = sbr.rel (%p16) target = $region17
  $region16: #{_lambda_.15} parent=0 // pred_region
    %vm19 = vcmask 130048
    %20 = vst.msk [vmem:[#allocation2] sm:$0xff] %vm19, 0.0
    %21 = vst.msk [vmem:[#allocation2 + $0x8] sm:$0xff] %vm19, 0.0
    %22 = vst.msk [vmem:[#allocation2 + $0x10] sm:$0xff] %vm19, 0.0
    %23 = vst.msk [vmem:[#allocation2 + $0x18] sm:$0xff] %vm19, 0.0
    %24 = vst.msk [vmem:[#allocation2 + $0x20] sm:$0xff] %vm19, 0.0
    %25 = vst.msk [vmem:[#allocation2 + $0x28] sm:$0xff] %vm19, 0.0
    %26 = vst.msk [vmem:[#allocation2 + $0x30] sm:$0xff] %vm19, 0.0
    %27 = vst.msk [vmem:[#allocation2 + $0x38] sm:$0xff] %vm19, 0.0
    %28 = vst.msk [vmem:[#allocation2 + $0x40] sm:$0xff] %vm19, 0.0
    %29 = vst.msk [vmem:[#allocation2 + $0x48] sm:$0xff] %vm19, 0.0
    %30 = vst.msk [vmem:[#allocation2 + $0x50] sm:$0xff] %vm19, 0.0
    %31 = vst.msk [vmem:[#allocation2 + $0x58] sm:$0xff] %vm19, 0.0
    %32 = vst.msk [vmem:[#allocation2 + $0x60] sm:$0xff] %vm19, 0.0
    %33 = vst.msk [vmem:[#allocation2 + $0x68] sm:$0xff] %vm19, 0.0
    %34 = vst.msk [vmem:[#allocation2 + $0x70] sm:$0xff] %vm19, 0.0
    %35 = vst.msk [vmem:[#allocation2 + $0x78] sm:$0xff] %vm19, 0.0
    %36 = vst.msk [vmem:[#allocation2 + $0x80] sm:$0xff] %vm19, 0.0
    %37 = vst.msk [vmem:[#allocation2 + $0x88] sm:$0xff] %vm19, 0.0
    %38 = vst.msk [vmem:[#allocation2 + $0x90] sm:$0xff] %vm19, 0.0
    %39 = vst.msk [vmem:[#allocation2 + $0x98] sm:$0xff] %vm19, 0.0
    %40 = vst.msk [vmem:[#allocation2 + $0xa0] sm:$0xff] %vm19, 0.0
    %41 = vst.msk [vmem:[#allocation2 + $0xa8] sm:$0xff] %vm19, 0.0
  $region17: #{_lambda_.15} parent=0 // pred_fallthru
    _
  %v42 = vld [vmem:[#allocation2] sm:$0xff]
  %v43 = vld [vmem:[#allocation2 + $0x8] sm:$0xff]
  %v44 = vld [vmem:[#allocation2 + $0x10] sm:$0xff]
  %v45 = vld [vmem:[#allocation2 + $0x18] sm:$0xff]
  %v46 = vld [vmem:[#allocation2 + $0x20] sm:$0xff]
  %v47 = vld [vmem:[#allocation2 + $0x28] sm:$0xff]
  %v48 = vld [vmem:[#allocation2 + $0x30] sm:$0xff]
  %v49 = vld [vmem:[#allocation2 + $0x38] sm:$0xff]
  %v50 = vld [vmem:[#allocation2 + $0x40] sm:$0xff]
  %v51 = vld [vmem:[#allocation2 + $0x48] sm:$0xff]
  %v52 = vld [vmem:[#allocation2 + $0x50] sm:$0xff]
  %v53 = vld [vmem:[#allocation2 + $0x58] sm:$0xff]
  %v54 = vld [vmem:[#allocation2 + $0x60] sm:$0xff]
  %v55 = vld [vmem:[#allocation2 + $0x68] sm:$0xff]
  %v56 = vld [vmem:[#allocation2 + $0x70] sm:$0xff]
  %v57 = vld [vmem:[#allocation2 + $0x78] sm:$0xff]
  %v58 = vld [vmem:[#allocation2 + $0x80] sm:$0xff]
  %v59 = vld [vmem:[#allocation2 + $0x88] sm:$0xff]
  %v60 = vld [vmem:[#allocation2 + $0x90] sm:$0xff]
  %v61 = vld [vmem:[#allocation2 + $0x98] sm:$0xff]
  %v62 = vld [vmem:[#allocation2 + $0xa0] sm:$0xff]
  %v63 = vld [vmem:[#allocation2 + $0xa8] sm:$0xff]
  %v64 = vld [vmem:[%s0] sm:$0xf]
  %v65 = vld [vmem:[%s0 + $0x4] sm:$0xf]
  %v66 = vld [vmem:[%s0 + $0x8] sm:$0xf]
  %v67 = vld [vmem:[%s0 + $0xc] sm:$0xf]
  %v68 = vld [vmem:[%s0 + $0x10] sm:$0xf]
  %v69 = vld [vmem:[%s0 + $0x14] sm:$0xf]
  %v70 = vld [vmem:[%s0 + $0x18] sm:$0xf]
  %v71 = vld [vmem:[%s0 + $0x1c] sm:$0xf]
  %v72 = vld [vmem:[%s0 + $0x20] sm:$0xf]
  %v73 = vld [vmem:[%s0 + $0x24] sm:$0xf]
  %v74 = vld [vmem:[%s0 + $0x28] sm:$0xf]
  %v75 = vld [vmem:[%s0 + $0x2c] sm:$0xf]
  %v76 = vld [vmem:[%s0 + $0x30] sm:$0xf]
  %v77 = vld [vmem:[%s0 + $0x34] sm:$0xf]
  %v78 = vld [vmem:[%s0 + $0x38] sm:$0xf]
  %v79 = vld [vmem:[%s0 + $0x3c] sm:$0xf]
  %v80 = vld [vmem:[%s0 + $0x40] sm:$0xf]
  %v81 = vld [vmem:[%s0 + $0x44] sm:$0xf]
  %v82 = vld [vmem:[%s0 + $0x48] sm:$0xf]
  %v83 = vld [vmem:[%s0 + $0x4c] sm:$0xf]
  %v84 = vld [vmem:[%s0 + $0x50] sm:$0xf]
  %v85 = vld [vmem:[%s0 + $0x54] sm:$0xf]
  %v86 = vld [vmem:[%s1] sm:$0xf]
  %v87 = vld [vmem:[%s1 + $0x4] sm:$0xf]
  %v88 = vld [vmem:[%s1 + $0x8] sm:$0xf]
  %v89 = vld [vmem:[%s1 + $0xc] sm:$0xf]
  %v90 = vld [vmem:[%s1 + $0x10] sm:$0xf]
  %v91 = vld [vmem:[%s1 + $0x14] sm:$0xf]
  %v92 = vld [vmem:[%s1 + $0x18] sm:$0xf]
  %v93 = vld [vmem:[%s1 + $0x1c] sm:$0xf]
  %v94 = vld [vmem:[%s1 + $0x20] sm:$0xf]
  %v95 = vld [vmem:[%s1 + $0x24] sm:$0xf]
  %v96 = vld [vmem:[%s1 + $0x28] sm:$0xf]
  %v97 = vld [vmem:[%s1 + $0x2c] sm:$0xf]
  %v98 = vld [vmem:[%s1 + $0x30] sm:$0xf]
  %v99 = vld [vmem:[%s1 + $0x34] sm:$0xf]
  %v100 = vld [vmem:[%s1 + $0x38] sm:$0xf]
  %v101 = vld [vmem:[%s1 + $0x3c] sm:$0xf]
  %v124 = vunpack.c.l.b16 %v64
  %v125 = vunpack.c.l.b16 %v65
  %v126 = vunpack.c.l.b16 %v66
  %v127 = vunpack.c.l.b16 %v67
  %v128 = vunpack.c.l.b16 %v68
  %v129 = vunpack.c.l.b16 %v69
  %v130 = vunpack.c.l.b16 %v70
  %v131 = vunpack.c.l.b16 %v71
  %v132 = vunpack.c.l.b16 %v72
  %v133 = vunpack.c.l.b16 %v73
  %v134 = vunpack.c.l.b16 %v74
  %v135 = vunpack.c.l.b16 %v75
  %v136 = vunpack.c.l.b16 %v76
  %v137 = vunpack.c.l.b16 %v77
  %v138 = vunpack.c.l.b16 %v78
  %v139 = vunpack.c.l.b16 %v79
  %v140 = vunpack.c.l.b16 %v80
  %v141 = vunpack.c.l.b16 %v81
  %v142 = vunpack.c.l.b16 %v82
  %v143 = vunpack.c.l.b16 %v83
  %v144 = vunpack.c.l.b16 %v84
  %v145 = vunpack.c.l.b16 %v85
  %v146 = vpack.c.b16 %v125, %v124
  %v147 = vpack.c.b16 %v127, %v126
  %v148 = vpack.c.b16 %v129, %v128
  %v149 = vpack.c.b16 %v131, %v130
  %v150 = vpack.c.b16 %v133, %v132
  %v151 = vpack.c.b16 %v135, %v134
  %v152 = vpack.c.b16 %v137, %v136
  %v153 = vpack.c.b16 %v139, %v138
  %v154 = vpack.c.b16 %v141, %v140
  %v155 = vpack.c.b16 %v143, %v142
  %v156 = vpack.c.b16 %v145, %v144
  %v184 = vunpack.c.l.b16 %v86
  %v185 = vunpack.c.l.b16 %v87
  %v186 = vunpack.c.l.b16 %v88
  %v187 = vunpack.c.l.b16 %v89
  %v188 = vunpack.c.l.b16 %v90
  %v189 = vunpack.c.l.b16 %v91
  %v190 = vunpack.c.l.b16 %v92
  %v191 = vunpack.c.l.b16 %v93
  %v192 = vunpack.c.l.b16 %v94
  %v193 = vunpack.c.l.b16 %v95
  %v194 = vunpack.c.l.b16 %v96
  %v195 = vunpack.c.l.b16 %v97
  %v196 = vunpack.c.l.b16 %v98
  %v197 = vunpack.c.l.b16 %v99
  %v198 = vunpack.c.l.b16 %v100
  %v199 = vunpack.c.l.b16 %v101
  %v200 = vpack.c.b16 %v185, %v184
  %v201 = vpack.c.b16 %v187, %v186
  %v202 = vpack.c.b16 %v189, %v188
  %v203 = vpack.c.b16 %v191, %v190
  %v204 = vpack.c.b16 %v193, %v192
  %v205 = vpack.c.b16 %v195, %v194
  %v206 = vpack.c.b16 %v197, %v196
  %v207 = vpack.c.b16 %v199, %v198
  %216 = vmatprep.subr.bf16.mxu0 0
  %217 = vmatpush1.bf16.msra.mxu0 %v207
  %218 = vmatprep.subr.bf16.mxu0 0
  %219 = vmatpush1.bf16.msra.mxu0 %v206
  %220 = vmatprep.subr.bf16.mxu0 0
  %221 = vmatpush1.bf16.msra.mxu0 %v205
  %222 = vmatprep.subr.bf16.mxu0 0
  %223 = vmatpush1.bf16.msra.mxu0 %v204
  %224 = vmatprep.subr.bf16.mxu0 0
  %225 = vmatpush1.bf16.msra.mxu0 %v203
  %226 = vmatprep.subr.bf16.mxu0 0
  %227 = vmatpush1.bf16.msra.mxu0 %v202
  %228 = vmatprep.subr.bf16.mxu0 0
  %229 = vmatpush1.bf16.msra.mxu0 %v201
  %230 = vmatprep.subr.bf16.mxu0 0
  %231 = vmatpush1.bf16.msra.mxu0 %v200
  %232 = vmatprep.subr.bf16.mxu0 0
  %233 = vmatpush2.bf16.msra.mxu0 0
  %234 = vmatprep.subr.bf16.mxu0 0
  %235 = vmatpush2.bf16.msra.mxu0 0
  %236 = vmatprep.subr.bf16.mxu0 0
  %237 = vmatpush2.bf16.msra.mxu0 0
  %238 = vmatprep.subr.bf16.mxu0 0
  %239 = vmatpush2.bf16.msra.mxu0 0
  %240 = vmatprep.subr.bf16.mxu0 0
  %241 = vmatpush2.bf16.msra.mxu0 0
  %242 = vmatprep.subr.bf16.mxu0 0
  %243 = vmatpush2.bf16.msra.mxu0 0
  %244 = vmatprep.subr.bf16.mxu0 0
  %245 = vmatpush2.bf16.msra.mxu0 0
  %246 = vmatprep.subr.bf16.mxu0 0
  %247 = vmatpush2.bf16.msra.mxu0 0
  %248 = vmatprep.mubr.bf16.mxu0 0
  %249 = vmatmul.mubr.bf16.gmra.mxu0 %v146
  %v250 = vpop.f32.mrf.mxu0
  %v251 = vadd.f32 0.0, %v250
  %v252 = vpop.f32.mrf.mxu0
  %v253 = vpop.f32.mrf.mxu0
  %v254 = vadd.f32 0.0, %v253
  %v255 = vpop.f32.mrf.mxu0
  %256 = vmatprep.mubr.bf16.mxu0 0
  %257 = vmatmul.mubr.bf16.gmra.mxu0 %v147
  %v258 = vpop.f32.mrf.mxu0
  %v259 = vadd.f32 0.0, %v258
  %v260 = vpop.f32.mrf.mxu0
  %v261 = vpop.f32.mrf.mxu0
  %v262 = vadd.f32 0.0, %v261
  %v263 = vpop.f32.mrf.mxu0
  %264 = vmatprep.mubr.bf16.mxu0 0
  %265 = vmatmul.mubr.bf16.gmra.mxu0 %v148
  %v266 = vpop.f32.mrf.mxu0
  %v267 = vadd.f32 0.0, %v266
  %v268 = vpop.f32.mrf.mxu0
  %v269 = vpop.f32.mrf.mxu0
  %v270 = vadd.f32 0.0, %v269
  %v271 = vpop.f32.mrf.mxu0
  %272 = vmatprep.mubr.bf16.mxu0 0
  %273 = vmatmul.mubr.bf16.gmra.mxu0 %v149
  %v274 = vpop.f32.mrf.mxu0
  %v275 = vadd.f32 0.0, %v274
  %v276 = vpop.f32.mrf.mxu0
  %v277 = vpop.f32.mrf.mxu0
  %v278 = vadd.f32 0.0, %v277
  %v279 = vpop.f32.mrf.mxu0
  %280 = vmatprep.mubr.bf16.mxu0 0
  %281 = vmatmul.mubr.bf16.gmra.mxu0 %v150
  %v282 = vpop.f32.mrf.mxu0
  %v283 = vadd.f32 0.0, %v282
  %v284 = vpop.f32.mrf.mxu0
  %v285 = vpop.f32.mrf.mxu0
  %v286 = vadd.f32 0.0, %v285
  %v287 = vpop.f32.mrf.mxu0
  %288 = vmatprep.mubr.bf16.mxu0 0
  %289 = vmatmul.mubr.bf16.gmra.mxu0 %v151
  %v290 = vpop.f32.mrf.mxu0
  %v291 = vadd.f32 0.0, %v290
  %v292 = vpop.f32.mrf.mxu0
  %v293 = vpop.f32.mrf.mxu0
  %v294 = vadd.f32 0.0, %v293
  %v295 = vpop.f32.mrf.mxu0
  %296 = vmatprep.mubr.bf16.mxu0 0
  %297 = vmatmul.mubr.bf16.gmra.mxu0 %v152
  %v298 = vpop.f32.mrf.mxu0
  %v299 = vadd.f32 0.0, %v298
  %v300 = vpop.f32.mrf.mxu0
  %v301 = vpop.f32.mrf.mxu0
  %v302 = vadd.f32 0.0, %v301
  %v303 = vpop.f32.mrf.mxu0
  %304 = vmatprep.mubr.bf16.mxu0 0
  %305 = vmatmul.mubr.bf16.gmra.mxu0 %v153
  %v306 = vpop.f32.mrf.mxu0
  %v307 = vadd.f32 0.0, %v306
  %v308 = vpop.f32.mrf.mxu0
  %v309 = vpop.f32.mrf.mxu0
  %v310 = vadd.f32 0.0, %v309
  %v311 = vpop.f32.mrf.mxu0
  %312 = vmatprep.mubr.bf16.mxu0 0
  %313 = vmatmul.mubr.bf16.gmra.mxu0 %v154
  %v314 = vpop.f32.mrf.mxu0
  %v315 = vadd.f32 0.0, %v314
  %v316 = vpop.f32.mrf.mxu0
  %v317 = vpop.f32.mrf.mxu0
  %v318 = vadd.f32 0.0, %v317
  %v319 = vpop.f32.mrf.mxu0
  %320 = vmatprep.mubr.bf16.mxu0 0
  %321 = vmatmul.mubr.bf16.gmra.mxu0 %v155
  %v322 = vpop.f32.mrf.mxu0
  %v323 = vadd.f32 0.0, %v322
  %v324 = vpop.f32.mrf.mxu0
  %v325 = vpop.f32.mrf.mxu0
  %v326 = vadd.f32 0.0, %v325
  %v327 = vpop.f32.mrf.mxu0
  %328 = vmatprep.mubr.bf16.mxu0 0
  %329 = vmatmul.mubr.bf16.gmra.mxu0 %v156
  %v330 = vpop.f32.mrf.mxu0
  %v331 = vadd.f32 0.0, %v330
  %v332 = vpop.f32.mrf.mxu0
  %v333 = vpop.f32.mrf.mxu0
  %v334 = vadd.f32 0.0, %v333
  %v335 = vpop.f32.mrf.mxu0
  %336 = vdwg.mxu0
  %v337 = vadd.f32 %v42, %v251
  %v338 = vadd.f32 %v43, %v254
  %v339 = vadd.f32 %v44, %v259
  %v340 = vadd.f32 %v45, %v262
  %v341 = vadd.f32 %v46, %v267
  %v342 = vadd.f32 %v47, %v270
  %v343 = vadd.f32 %v48, %v275
  %v344 = vadd.f32 %v49, %v278
  %v345 = vadd.f32 %v50, %v283
  %v346 = vadd.f32 %v51, %v286
  %v347 = vadd.f32 %v52, %v291
  %v348 = vadd.f32 %v53, %v294
  %v349 = vadd.f32 %v54, %v299
  %v350 = vadd.f32 %v55, %v302
  %v351 = vadd.f32 %v56, %v307
  %v352 = vadd.f32 %v57, %v310
  %v353 = vadd.f32 %v58, %v315
  %v354 = vadd.f32 %v59, %v318
  %v355 = vadd.f32 %v60, %v323
  %v356 = vadd.f32 %v61, %v326
  %v357 = vadd.f32 %v62, %v331
  %v358 = vadd.f32 %v63, %v334
  %vm359 = vcmask 130048
  %360 = vst.msk [vmem:[#allocation2] sm:$0xff] %vm359, %v337
  %361 = vst.msk [vmem:[#allocation2 + $0x8] sm:$0xff] %vm359, %v338
  %362 = vst.msk [vmem:[#allocation2 + $0x10] sm:$0xff] %vm359, %v339
  %363 = vst.msk [vmem:[#allocation2 + $0x18] sm:$0xff] %vm359, %v340
  %364 = vst.msk [vmem:[#allocation2 + $0x20] sm:$0xff] %vm359, %v341
  %365 = vst.msk [vmem:[#allocation2 + $0x28] sm:$0xff] %vm359, %v342
  %366 = vst.msk [vmem:[#allocation2 + $0x30] sm:$0xff] %vm359, %v343
  %367 = vst.msk [vmem:[#allocation2 + $0x38] sm:$0xff] %vm359, %v344
  %368 = vst.msk [vmem:[#allocation2 + $0x40] sm:$0xff] %vm359, %v345
  %369 = vst.msk [vmem:[#allocation2 + $0x48] sm:$0xff] %vm359, %v346
  %370 = vst.msk [vmem:[#allocation2 + $0x50] sm:$0xff] %vm359, %v347
  %371 = vst.msk [vmem:[#allocation2 + $0x58] sm:$0xff] %vm359, %v348
  %372 = vst.msk [vmem:[#allocation2 + $0x60] sm:$0xff] %vm359, %v349
  %373 = vst.msk [vmem:[#allocation2 + $0x68] sm:$0xff] %vm359, %v350
  %374 = vst.msk [vmem:[#allocation2 + $0x70] sm:$0xff] %vm359, %v351
  %375 = vst.msk [vmem:[#allocation2 + $0x78] sm:$0xff] %vm359, %v352
  %376 = vst.msk [vmem:[#allocation2 + $0x80] sm:$0xff] %vm359, %v353
  %377 = vst.msk [vmem:[#allocation2 + $0x88] sm:$0xff] %vm359, %v354
  %378 = vst.msk [vmem:[#allocation2 + $0x90] sm:$0xff] %vm359, %v355
  %379 = vst.msk [vmem:[#allocation2 + $0x98] sm:$0xff] %vm359, %v356
  %380 = vst.msk [vmem:[#allocation2 + $0xa0] sm:$0xff] %vm359, %v357
  %381 = vst.msk [vmem:[#allocation2 + $0xa8] sm:$0xff] %vm359, %v358
  // Predicated region
  $region18: #{_lambda_.15} parent=0 // pred_check
    %p382 = pneg %p15
  $region19: #{_lambda_.15} parent=0 // pred_check_branch
    %384 = sbr.rel (%p382) target = $region21
  $region20: #{_lambda_.15} parent=0 // pred_region
    %v385 = vld [vmem:[#allocation2] sm:$0xff]
    %v386 = vld [vmem:[#allocation2 + $0x8] sm:$0xff]
    %v387 = vld [vmem:[#allocation2 + $0x10] sm:$0xff]
    %v388 = vld [vmem:[#allocation2 + $0x18] sm:$0xff]
    %v389 = vld [vmem:[#allocation2 + $0x20] sm:$0xff]
    %v390 = vld [vmem:[#allocation2 + $0x28] sm:$0xff]
    %v391 = vld [vmem:[#allocation2 + $0x30] sm:$0xff]
    %v392 = vld [vmem:[#allocation2 + $0x38] sm:$0xff]
    %v393 = vld [vmem:[#allocation2 + $0x40] sm:$0xff]
    %v394 = vld [vmem:[#allocation2 + $0x48] sm:$0xff]
    %v395 = vld [vmem:[#allocation2 + $0x50] sm:$0xff]
    %v396 = vld [vmem:[#allocation2 + $0x58] sm:$0xff]
    %v397 = vld [vmem:[#allocation2 + $0x60] sm:$0xff]
    %v398 = vld [vmem:[#allocation2 + $0x68] sm:$0xff]
    %v399 = vld [vmem:[#allocation2 + $0x70] sm:$0xff]
    %v400 = vld [vmem:[#allocation2 + $0x78] sm:$0xff]
    %v401 = vld [vmem:[#allocation2 + $0x80] sm:$0xff]
    %v402 = vld [vmem:[#allocation2 + $0x88] sm:$0xff]
    %v403 = vld [vmem:[#allocation2 + $0x90] sm:$0xff]
    %v404 = vld [vmem:[#allocation2 + $0x98] sm:$0xff]
    %v405 = vld [vmem:[#allocation2 + $0xa0] sm:$0xff]
    %v406 = vld [vmem:[#allocation2 + $0xa8] sm:$0xff]
    %v407 = vld [vmem:[%s2] sm:$0x1]
    %v409 = vlaneseq
    %v410 = vshrl.u32 %v409, 7
    %v411 = vsub.s32 0, %v410
    %v412 = vrot.slane %v407, %v411
    %v414 = vadd.f32 %v385, %v412
    %v415 = vadd.f32 %v386, %v412
    %v416 = vadd.f32 %v387, %v412
    %v417 = vadd.f32 %v388, %v412
    %v418 = vadd.f32 %v389, %v412
    %v419 = vadd.f32 %v390, %v412
    %v420 = vadd.f32 %v391, %v412
    %v421 = vadd.f32 %v392, %v412
    %v422 = vadd.f32 %v393, %v412
    %v423 = vadd.f32 %v394, %v412
    %v424 = vadd.f32 %v395, %v412
    %v425 = vadd.f32 %v396, %v412
    %v426 = vadd.f32 %v397, %v412
    %v427 = vadd.f32 %v398, %v412
    %v428 = vadd.f32 %v399, %v412
    %v429 = vadd.f32 %v400, %v412
    %v430 = vadd.f32 %v401, %v412
    %v431 = vadd.f32 %v402, %v412
    %v432 = vadd.f32 %v403, %v412
    %v433 = vadd.f32 %v404, %v412
    %v434 = vadd.f32 %v405, %v412
    %v435 = vadd.f32 %v406, %v412
    %v436 = vsub.f32 0.0, %v414
    %v437 = vsub.f32 0.0, %v415
    %v438 = vsub.f32 0.0, %v416
    %v439 = vsub.f32 0.0, %v417
    %v440 = vsub.f32 0.0, %v418
    %v441 = vsub.f32 0.0, %v419
    %v442 = vsub.f32 0.0, %v420
    %v443 = vsub.f32 0.0, %v421
    %v444 = vsub.f32 0.0, %v422
    %v445 = vsub.f32 0.0, %v423
    %v446 = vsub.f32 0.0, %v424
    %v447 = vsub.f32 0.0, %v425
    %v448 = vsub.f32 0.0, %v426
    %v449 = vsub.f32 0.0, %v427
    %v450 = vsub.f32 0.0, %v428
    %v451 = vsub.f32 0.0, %v429
    %v452 = vsub.f32 0.0, %v430
    %v453 = vsub.f32 0.0, %v431
    %v454 = vsub.f32 0.0, %v432
    %v455 = vsub.f32 0.0, %v433
    %v456 = vsub.f32 0.0, %v434
    %v457 = vsub.f32 0.0, %v435
    %v458 = vmul.f32 %v436, 1.442695
    %v459 = vpow.pop %v458
    %v460 = vmul.f32 %v437, 1.442695
    %v461 = vpow.pop %v460
    %v462 = vmul.f32 %v438, 1.442695
    %v463 = vpow.pop %v462
    %v464 = vmul.f32 %v439, 1.442695
    %v465 = vpow.pop %v464
    %v466 = vmul.f32 %v440, 1.442695
    %v467 = vpow.pop %v466
    %v468 = vmul.f32 %v441, 1.442695
    %v469 = vpow.pop %v468
    %v470 = vmul.f32 %v442, 1.442695
    %v471 = vpow.pop %v470
    %v472 = vmul.f32 %v443, 1.442695
    %v473 = vpow.pop %v472
    %v474 = vmul.f32 %v444, 1.442695
    %v475 = vpow.pop %v474
    %v476 = vmul.f32 %v445, 1.442695
    %v477 = vpow.pop %v476
    %v478 = vmul.f32 %v446, 1.442695
    %v479 = vpow.pop %v478
    %v480 = vmul.f32 %v447, 1.442695
    %v481 = vpow.pop %v480
    %v482 = vmul.f32 %v448, 1.442695
    %v483 = vpow.pop %v482
    %v484 = vmul.f32 %v449, 1.442695
    %v485 = vpow.pop %v484
    %v486 = vmul.f32 %v450, 1.442695
    %v487 = vpow.pop %v486
    %v488 = vmul.f32 %v451, 1.442695
    %v489 = vpow.pop %v488
    %v490 = vmul.f32 %v452, 1.442695
    %v491 = vpow.pop %v490
    %v492 = vmul.f32 %v453, 1.442695
    %v493 = vpow.pop %v492
    %v494 = vmul.f32 %v454, 1.442695
    %v495 = vpow.pop %v494
    %v496 = vmul.f32 %v455, 1.442695
    %v497 = vpow.pop %v496
    %v498 = vmul.f32 %v456, 1.442695
    %v499 = vpow.pop %v498
    %v500 = vmul.f32 %v457, 1.442695
    %v501 = vpow.pop %v500
    %v502 = vadd.f32 %v459, 1.0
    %v503 = vadd.f32 %v461, 1.0
    %v504 = vadd.f32 %v463, 1.0
    %v505 = vadd.f32 %v465, 1.0
    %v506 = vadd.f32 %v467, 1.0
    %v507 = vadd.f32 %v469, 1.0
    %v508 = vadd.f32 %v471, 1.0
    %v509 = vadd.f32 %v473, 1.0
    %v510 = vadd.f32 %v475, 1.0
    %v511 = vadd.f32 %v477, 1.0
    %v512 = vadd.f32 %v479, 1.0
    %v513 = vadd.f32 %v481, 1.0
    %v514 = vadd.f32 %v483, 1.0
    %v515 = vadd.f32 %v485, 1.0
    %v516 = vadd.f32 %v487, 1.0
    %v517 = vadd.f32 %v489, 1.0
    %v518 = vadd.f32 %v491, 1.0
    %v519 = vadd.f32 %v493, 1.0
    %v520 = vadd.f32 %v495, 1.0
    %v521 = vadd.f32 %v497, 1.0
    %v522 = vadd.f32 %v499, 1.0
    %v523 = vadd.f32 %v501, 1.0
    %v524 = vrcp.pop %v502
    %v525 = vmul.f32 1.0, %v524
    %v526 = vrcp.pop %v503
    %v527 = vmul.f32 1.0, %v526
    %v528 = vrcp.pop %v504
    %v529 = vmul.f32 1.0, %v528
    %v530 = vrcp.pop %v505
    %v531 = vmul.f32 1.0, %v530
    %v532 = vrcp.pop %v506
    %v533 = vmul.f32 1.0, %v532
    %v534 = vrcp.pop %v507
    %v535 = vmul.f32 1.0, %v534
    %v536 = vrcp.pop %v508
    %v537 = vmul.f32 1.0, %v536
    %v538 = vrcp.pop %v509
    %v539 = vmul.f32 1.0, %v538
    %v540 = vrcp.pop %v510
    %v541 = vmul.f32 1.0, %v540
    %v542 = vrcp.pop %v511
    %v543 = vmul.f32 1.0, %v542
    %v544 = vrcp.pop %v512
    %v545 = vmul.f32 1.0, %v544
    %v546 = vrcp.pop %v513
    %v547 = vmul.f32 1.0, %v546
    %v548 = vrcp.pop %v514
    %v549 = vmul.f32 1.0, %v548
    %v550 = vrcp.pop %v515
    %v551 = vmul.f32 1.0, %v550
    %v552 = vrcp.pop %v516
    %v553 = vmul.f32 1.0, %v552
    %v554 = vrcp.pop %v517
    %v555 = vmul.f32 1.0, %v554
    %v556 = vrcp.pop %v518
    %v557 = vmul.f32 1.0, %v556
    %v558 = vrcp.pop %v519
    %v559 = vmul.f32 1.0, %v558
    %v560 = vrcp.pop %v520
    %v561 = vmul.f32 1.0, %v560
    %v562 = vrcp.pop %v521
    %v563 = vmul.f32 1.0, %v562
    %v564 = vrcp.pop %v522
    %v565 = vmul.f32 1.0, %v564
    %v566 = vrcp.pop %v523
    %v567 = vmul.f32 1.0, %v566
    %568 = vst.msk [vmem:[%s3] sm:$0xff] %vm359, %v525
    %569 = vst.msk [vmem:[%s3 + $0x8] sm:$0xff] %vm359, %v527
    %570 = vst.msk [vmem:[%s3 + $0x10] sm:$0xff] %vm359, %v529
    %571 = vst.msk [vmem:[%s3 + $0x18] sm:$0xff] %vm359, %v531
    %572 = vst.msk [vmem:[%s3 + $0x20] sm:$0xff] %vm359, %v533
    %573 = vst.msk [vmem:[%s3 + $0x28] sm:$0xff] %vm359, %v535
    %574 = vst.msk [vmem:[%s3 + $0x30] sm:$0xff] %vm359, %v537
    %575 = vst.msk [vmem:[%s3 + $0x38] sm:$0xff] %vm359, %v539
    %576 = vst.msk [vmem:[%s3 + $0x40] sm:$0xff] %vm359, %v541
    %577 = vst.msk [vmem:[%s3 + $0x48] sm:$0xff] %vm359, %v543
    %578 = vst.msk [vmem:[%s3 + $0x50] sm:$0xff] %vm359, %v545
    %579 = vst.msk [vmem:[%s3 + $0x58] sm:$0xff] %vm359, %v547
    %580 = vst.msk [vmem:[%s3 + $0x60] sm:$0xff] %vm359, %v549
    %581 = vst.msk [vmem:[%s3 + $0x68] sm:$0xff] %vm359, %v551
    %582 = vst.msk [vmem:[%s3 + $0x70] sm:$0xff] %vm359, %v553
    %583 = vst.msk [vmem:[%s3 + $0x78] sm:$0xff] %vm359, %v555
    %584 = vst.msk [vmem:[%s3 + $0x80] sm:$0xff] %vm359, %v557
    %585 = vst.msk [vmem:[%s3 + $0x88] sm:$0xff] %vm359, %v559
    %586 = vst.msk [vmem:[%s3 + $0x90] sm:$0xff] %vm359, %v561
    %587 = vst.msk [vmem:[%s3 + $0x98] sm:$0xff] %vm359, %v563
    %588 = vst.msk [vmem:[%s3 + $0xa0] sm:$0xff] %vm359, %v565
    %589 = vst.msk [vmem:[%s3 + $0xa8] sm:$0xff] %vm359, %v567
  $region21: #{_lambda_.15} parent=0 // pred_fallthru
    _
  // Predicated region
  $region22: #{_lambda_.15} parent=0 // pred_check
    _
  $region23: #{_lambda_.15} parent=0 // pred_check_branch
    %591 = sbr.rel (0) target = $region25
  $region24: #{_lambda_.15} parent=0 // pred_region
    _
  $region25: #{_lambda_.15} parent=0 // pred_fallthru
    _
  // Predicated region
  $region26: #{_lambda_.15} parent=0 // pred_check
    _
  $region27: #{_lambda_.15} parent=0 // pred_check_branch
    %593 = sbr.rel (0) target = $region29
  $region28: #{_lambda_.15} parent=0 // pred_region
    _
  $region29: #{_lambda_.15} parent=0 // pred_fallthru
    _

</llo_original>
